<compile_context>
chip_gen: v5e
topology: v5e:2x2
jax: 0.10.0
libtpu: 0.0.40
codegen_flags: <defaults>
</compile_context>

<pallas_src>
import functools

import jax
import jax.numpy as jnp
from jax import lax
from jax.experimental import pallas as pl
from jax.experimental.pallas import tpu as pltpu


def _attention_kernel(x_ref, wq_ref, wk_ref, wv_ref, bq_ref, bk_ref, bv_ref,
                      wp_ref, bp_ref, o_ref, *,
                      n_heads, n_q_tiles, block_q, n_valid_kv, approx_recip):
    """One grid step = (batch b, query tile qi); all heads computed inside."""
    f32 = jnp.float32
    cd = wq_ref.dtype                       # MXU-input compute dtype

    xkv = x_ref[0]                          # (Nk, dim) padded sequence
    n_kv, dim = xkv.shape
    hd = dim // n_heads

    if n_q_tiles == 1:                      # common ViT case: one query tile
        xq = xkv
    else:
        start = pl.multiple_of(pl.program_id(1) * block_q, block_q)
        xq = x_ref[0, pl.ds(start, block_q), :]          # (tq, dim)

    # --- full-width fused projections (MXU, f32 accumulate, f32 bias add).
    # The softmax scale is already folded into wq / bq at repack time.
    q = jnp.dot(xq, wq_ref[...], preferred_element_type=f32) + bq_ref[...]   # (tq, dim)
    k = jnp.dot(xkv, wk_ref[...], preferred_element_type=f32) + bk_ref[...]  # (Nk, dim)
    v = jnp.dot(xkv, wv_ref[...], preferred_element_type=f32) + bv_ref[...]  # (Nk, dim)
    q_c, k_c, v_c = q.astype(cd), k.astype(cd), v.astype(cd)

    # additive mask for padded key columns (hoisted out of the head loop)
    if n_valid_kv < n_kv:
        key_idx = lax.broadcasted_iota(jnp.int32, (1, n_kv), 1)
        neg_bias = jnp.where(key_idx < n_valid_kv, 0.0, -1e30).astype(f32)
    else:
        neg_bias = None

    # --- per-head attention (static loop; weights/activations already in VMEM)
    ctx_cols = []
    for h in range(n_heads):
        sl = slice(h * hd, (h + 1) * hd)
        q_h, k_h, v_h = q_c[:, sl], k_c[:, sl], v_c[:, sl]

        # scores: contract the head dims directly (no materialized k.T)
        s = lax.dot_general(q_h, k_h, (((1,), (1,)), ((), ())),
                            preferred_element_type=f32)          # (tq, Nk)
        if neg_bias is not None:
            s = s + neg_bias

        # max-stabilized softmax in f32
        m = jnp.max(s, axis=-1, keepdims=True)
        p = jnp.exp(s - m)
        denom = jnp.sum(p, axis=-1, keepdims=True)
        if approx_recip:
            attn = p * pl.reciprocal(denom, approx=True)          # EUP (bf16 path)
        else:
            attn = p / denom                                      # exact f32 path

        ctx_h = jnp.dot(attn.astype(cd), v_h,
                        preferred_element_type=f32)               # (tq, hd)
        ctx_cols.append(ctx_h.astype(cd))

    # --- concat heads and ONE dense output projection ---
    ctx = jnp.concatenate(ctx_cols, axis=-1)                      # (tq, dim)
    out = jnp.dot(ctx, wp_ref[...], preferred_element_type=f32) + bp_ref[...]
    # TODO(synk): for dim < 128 (toy shapes only) this is a masked partial
    # store; real ViT dims (768/1024) are lane-dense multiples of 128.
    o_ref[0] = out.astype(o_ref.dtype)


def prepare_attention_params(w_qkv, b_qkv, w_proj, b_proj, *, n_heads,
                             compute_dtype=jnp.bfloat16):
    """One-time repack: split fused qkv weights, fold the softmax scale into
    Wq/bq, cast matmul inputs to the compute dtype, keep biases in f32.

    w_qkv: (dim, 3*dim); b_qkv: (1, 3*dim); w_proj: (dim, dim); b_proj: (1, dim).
    """
    dim = w_qkv.shape[0]
    assert dim % n_heads == 0
    scale = (dim // n_heads) ** (-0.5)
    f32 = jnp.float32
    cd = compute_dtype

    w = w_qkv.astype(f32)
    b = b_qkv.reshape(-1).astype(f32)
    return dict(
        wq=(w[:, :dim] * scale).astype(cd),
        wk=w[:, dim:2 * dim].astype(cd),
        wv=w[:, 2 * dim:].astype(cd),
        bq=(b[:dim] * scale).reshape(1, dim),
        bk=b[dim:2 * dim].reshape(1, dim),
        bv=b[2 * dim:].reshape(1, dim),
        wp=w_proj.astype(cd),
        bp=b_proj.reshape(1, dim).astype(f32),
        n_heads=n_heads,
        compute_dtype=cd,
    )


def attention_forward(x, params, *, block_q=256,
                      vmem_limit_bytes=48 * 1024 * 1024):
    """x: (B, N, dim) -> (B, N, dim)."""
    B, N, dim = x.shape
    H = params["n_heads"]
    cd = params["compute_dtype"]
    assert dim % H == 0

    # Pad the sequence to a lane-dense multiple of 128, then make the query
    # tile divide it exactly (padded keys are masked in-kernel, padded query
    # rows are discarded by the final slice).
    n_kv = pl.cdiv(N, 128) * 128
    tq = min(pl.cdiv(block_q, 128) * 128, n_kv)
    n_kv = pl.cdiv(n_kv, tq) * tq
    n_q = n_kv // tq

    x_c = x.astype(cd)
    if n_kv != N:
        x_c = jnp.pad(x_c, ((0, 0), (0, n_kv - N), (0, 0)))

    kernel = functools.partial(
        _attention_kernel, n_heads=H, n_q_tiles=n_q, block_q=tq,
        n_valid_kv=N,
        approx_recip=jnp.dtype(cd) != jnp.dtype(jnp.float32))

    const = lambda b, qi: (0, 0)            # VMEM-resident (fetched once)
    out = pl.pallas_call(
        kernel,
        out_shape=jax.ShapeDtypeStruct((B, n_kv, dim), x.dtype),
        grid_spec=pltpu.PrefetchScalarGridSpec(
            num_scalar_prefetch=0,
            grid=(B, n_q),
            in_specs=[
                pl.BlockSpec((1, n_kv, dim), lambda b, qi: (b, 0, 0)),  # x (padded seq)
                pl.BlockSpec((dim, dim), const),                        # Wq (scale folded)
                pl.BlockSpec((dim, dim), const),                        # Wk
                pl.BlockSpec((dim, dim), const),                        # Wv
                pl.BlockSpec((1, dim), const),                          # bq (scale folded, f32)
                pl.BlockSpec((1, dim), const),                          # bk (f32)
                pl.BlockSpec((1, dim), const),                          # bv (f32)
                pl.BlockSpec((dim, dim), const),                        # W_proj
                pl.BlockSpec((1, dim), const),                          # b_proj (f32)
            ],
            out_specs=pl.BlockSpec((1, tq, dim), lambda b, qi: (b, qi, 0)),
        ),
        compiler_params=pltpu.CompilerParams(
            dimension_semantics=("parallel", "parallel"),
            vmem_limit_bytes=vmem_limit_bytes,
        ),
    )(x_c, params["wq"], params["wk"], params["wv"],
      params["bq"], params["bk"], params["bv"], params["wp"], params["bp"])

    return out[:, :N, :] if n_kv != N else out


def attention_reference(x, w_qkv, b_qkv, w_proj, b_proj, *, n_heads,
                        compute_dtype=jnp.float32):
    """Pure-JAX reference mirroring the PyTorch forward, with the same
    matmul-input cast points as the kernel (f32 accumulation, scale folded
    into the q weights)."""
    B, N, dim = x.shape
    hd = dim // n_heads
    scale = hd ** (-0.5)
    f32 = jnp.float32
    cd = compute_dtype

    w = w_qkv.astype(f32)
    b = b_qkv.reshape(-1).astype(f32)
    wq, wk, wv = w[:, :dim] * scale, w[:, dim:2 * dim], w[:, 2 * dim:]
    bq, bk, bv = b[:dim] * scale, b[dim:2 * dim], b[2 * dim:]

    xc = x.astype(cd)
    q = jnp.dot(xc, wq.astype(cd), preferred_element_type=f32) + bq
    k = jnp.dot(xc, wk.astype(cd), preferred_element_type=f32) + bk
    v = jnp.dot(xc, wv.astype(cd), preferred_element_type=f32) + bv

    def split(a):  # (B, N, dim) -> (B, H, N, hd)
        return a.astype(cd).reshape(B, N, n_heads, hd).transpose(0, 2, 1, 3)

    qh, kh, vh = split(q), split(k), split(v)
    s = jnp.einsum("bhqd,bhkd->bhqk", qh, kh, preferred_element_type=f32)
    attn = jax.nn.softmax(s, axis=-1)
    ctx = jnp.einsum("bhqk,bhkd->bhqd", attn.astype(cd), vh,
                     preferred_element_type=f32)
    ctx = ctx.transpose(0, 2, 1, 3).reshape(B, N, dim).astype(cd)
    return (jnp.dot(ctx, w_proj.astype(cd), preferred_element_type=f32)
            + b_proj.reshape(-1).astype(f32))


if __name__ == "__main__":
    # Small shapes consistent with the module: batch=2, tokens=8, dim=32, heads=4.
    B, N, dim, n_heads = 2, 8, 32, 4

    key = jax.random.PRNGKey(0)
    kx, kwq, kbq, kwp, kbp, kx2 = jax.random.split(key, 6)

    x = jax.random.normal(kx, (B, N, dim), dtype=jnp.float32)
    # deterministic synthetic parameters (nn.Linear-like scale)
    w_qkv = jax.random.normal(kwq, (dim, 3 * dim), dtype=jnp.float32) * (dim ** -0.5)
    b_qkv = jax.random.normal(kbq, (1, 3 * dim), dtype=jnp.float32) * 0.02
    w_proj = jax.random.normal(kwp, (dim, dim), dtype=jnp.float32) * (dim ** -0.5)
    b_proj = jax.random.normal(kbp, (1, dim), dtype=jnp.float32) * 0.02

    # --- f32 MXU inputs (exact softmax path) vs pure-f32 reference ---
    params_f32 = prepare_attention_params(w_qkv, b_qkv, w_proj, b_proj,
                                          n_heads=n_heads,
                                          compute_dtype=jnp.float32)
    out_f32 = jax.block_until_ready(attention_forward(x, params_f32))
    ref_f32 = attention_reference(x, w_qkv, b_qkv, w_proj, b_proj,
                                  n_heads=n_heads, compute_dtype=jnp.float32)
    assert out_f32.shape == (B, N, dim)
    assert jnp.allclose(out_f32, ref_f32, atol=1e-2, rtol=1e-2), "f32 mismatch"

    # --- bf16 MXU inputs / f32 accumulate (default fast path) vs a reference
    #     applying the same cast points ---
    params_bf16 = prepare_attention_params(w_qkv, b_qkv, w_proj, b_proj,
                                           n_heads=n_heads,
                                           compute_dtype=jnp.bfloat16)
    out_bf16 = jax.block_until_ready(attention_forward(x, params_bf16))
    ref_bf16 = attention_reference(x, w_qkv, b_qkv, w_proj, b_proj,
                                   n_heads=n_heads, compute_dtype=jnp.bfloat16)
    assert out_bf16.shape == (B, N, dim)
    assert jnp.allclose(out_bf16, ref_bf16, atol=3e-2, rtol=3e-2), "bf16 mismatch"

    # --- multi-query-tile + padded/masked-key path (N % 128 != 0, n_q > 1) ---
    N2 = 150
    x2 = jax.random.normal(kx2, (B, N2, dim), dtype=jnp.float32)
    out2 = jax.block_until_ready(attention_forward(x2, params_f32, block_q=128))
    ref2 = attention_reference(x2, w_qkv, b_qkv, w_proj, b_proj,
                               n_heads=n_heads, compute_dtype=jnp.float32)
    assert out2.shape == (B, N2, dim)
    assert jnp.allclose(out2, ref2, atol=1e-2, rtol=1e-2), "tiled/masked mismatch"

    print("KERNEL_OK")
</pallas_src>

<mosaic_0001>
module attributes {stable_mosaic.version = 11 : i64} {
  func.func @_attention_kernel(%arg0: i32, %arg1: i32, %arg2: memref<1x128x32xf32, #tpu.memory_space<vmem>>, %arg3: memref<32x32xf32, #tpu.memory_space<vmem>>, %arg4: memref<32x32xf32, #tpu.memory_space<vmem>>, %arg5: memref<32x32xf32, #tpu.memory_space<vmem>>, %arg6: memref<1x32xf32, #tpu.memory_space<vmem>>, %arg7: memref<1x32xf32, #tpu.memory_space<vmem>>, %arg8: memref<1x32xf32, #tpu.memory_space<vmem>>, %arg9: memref<32x32xf32, #tpu.memory_space<vmem>>, %arg10: memref<1x32xf32, #tpu.memory_space<vmem>>, %arg11: memref<1x128x32xf32, #tpu.memory_space<vmem>>) attributes {dimension_semantics = [#tpu.dimension_semantics<parallel>, #tpu.dimension_semantics<parallel>], iteration_bounds = array<i64: 2, 1>, scalar_prefetch = 0 : i64, scratch_operands = 0 : i64, tpu.core_type = #tpu.core_type<tc>, window_params = [{transform_indices = @transform_0, window_bounds = array<i64: 1, 128, 32>}, {pipeline_mode = #tpu.pipeline_mode<synchronous>, transform_indices = @transform_1, window_bounds = array<i64: 32, 32>}, {pipeline_mode = #tpu.pipeline_mode<synchronous>, transform_indices = @transform_2, window_bounds = array<i64: 32, 32>}, {pipeline_mode = #tpu.pipeline_mode<synchronous>, transform_indices = @transform_3, window_bounds = array<i64: 32, 32>}, {pipeline_mode = #tpu.pipeline_mode<synchronous>, transform_indices = @transform_4, window_bounds = array<i64: 1, 32>}, {pipeline_mode = #tpu.pipeline_mode<synchronous>, transform_indices = @transform_5, window_bounds = array<i64: 1, 32>}, {pipeline_mode = #tpu.pipeline_mode<synchronous>, transform_indices = @transform_6, window_bounds = array<i64: 1, 32>}, {pipeline_mode = #tpu.pipeline_mode<synchronous>, transform_indices = @transform_7, window_bounds = array<i64: 32, 32>}, {pipeline_mode = #tpu.pipeline_mode<synchronous>, transform_indices = @transform_8, window_bounds = array<i64: 1, 32>}, {transform_indices = @transform_9, window_bounds = array<i64: 1, 128, 32>}]} {
    %c0 = arith.constant 0 : index
    %c0_0 = arith.constant 0 : index
    %c0_1 = arith.constant 0 : index
    %0 = vector.load %arg2[%c0, %c0_0, %c0_1] : memref<1x128x32xf32, #tpu.memory_space<vmem>>, vector<1x128x32xf32>
    %1 = vector.shape_cast %0 : vector<1x128x32xf32> to vector<128x32xf32>
    %c0_2 = arith.constant 0 : index
    %c0_3 = arith.constant 0 : index
    %2 = vector.load %arg3[%c0_2, %c0_3] : memref<32x32xf32, #tpu.memory_space<vmem>>, vector<32x32xf32>
    %cst = arith.constant dense<0.000000e+00> : vector<128x32xf32>
    %3 = tpu.matmul %1, %2, %cst {dimension_numbers = #tpu.dot_dimension_numbers<[1], [0], [0], [1], [0, 0, 1, 1], [], []>} : vector<128x32xf32>, vector<32x32xf32>, vector<128x32xf32> -> vector<128x32xf32>
    %c0_4 = arith.constant 0 : index
    %c0_5 = arith.constant 0 : index
    %4 = vector.load %arg6[%c0_4, %c0_5] : memref<1x32xf32, #tpu.memory_space<vmem>>, vector<1x32xf32>
    %5 = vector.broadcast %4 : vector<1x32xf32> to vector<128x32xf32>
    %6 = arith.addf %3, %5 : vector<128x32xf32>
    %c0_6 = arith.constant 0 : index
    %c0_7 = arith.constant 0 : index
    %7 = vector.load %arg4[%c0_6, %c0_7] : memref<32x32xf32, #tpu.memory_space<vmem>>, vector<32x32xf32>
    %cst_8 = arith.constant dense<0.000000e+00> : vector<128x32xf32>
    %8 = tpu.matmul %1, %7, %cst_8 {dimension_numbers = #tpu.dot_dimension_numbers<[1], [0], [0], [1], [0, 0, 1, 1], [], []>} : vector<128x32xf32>, vector<32x32xf32>, vector<128x32xf32> -> vector<128x32xf32>
    %c0_9 = arith.constant 0 : index
    %c0_10 = arith.constant 0 : index
    %9 = vector.load %arg7[%c0_9, %c0_10] : memref<1x32xf32, #tpu.memory_space<vmem>>, vector<1x32xf32>
    %10 = vector.broadcast %9 : vector<1x32xf32> to vector<128x32xf32>
    %11 = arith.addf %8, %10 : vector<128x32xf32>
    %c0_11 = arith.constant 0 : index
    %c0_12 = arith.constant 0 : index
    %12 = vector.load %arg5[%c0_11, %c0_12] : memref<32x32xf32, #tpu.memory_space<vmem>>, vector<32x32xf32>
    %cst_13 = arith.constant dense<0.000000e+00> : vector<128x32xf32>
    %13 = tpu.matmul %1, %12, %cst_13 {dimension_numbers = #tpu.dot_dimension_numbers<[1], [0], [0], [1], [0, 0, 1, 1], [], []>} : vector<128x32xf32>, vector<32x32xf32>, vector<128x32xf32> -> vector<128x32xf32>
    %c0_14 = arith.constant 0 : index
    %c0_15 = arith.constant 0 : index
    %14 = vector.load %arg8[%c0_14, %c0_15] : memref<1x32xf32, #tpu.memory_space<vmem>>, vector<1x32xf32>
    %15 = vector.broadcast %14 : vector<1x32xf32> to vector<128x32xf32>
    %16 = arith.addf %13, %15 : vector<128x32xf32>
    %17 = tpu.iota {dimensions = array<i32: 1>} : vector<1x128xi32>
    %c8_i32 = arith.constant 8 : i32
    %18 = vector.broadcast %c8_i32 : i32 to vector<1x128xi32>
    %19 = arith.cmpi slt, %17, %18 : vector<1x128xi32>
    %cst_16 = arith.constant 0.000000e+00 : f32
    %cst_17 = arith.constant -1.000000e+30 : f32
    %20 = vector.broadcast %cst_16 : f32 to vector<1x128xf32>
    %21 = vector.broadcast %cst_17 : f32 to vector<1x128xf32>
    %22 = arith.select %19, %20, %21 : vector<1x128xi1>, vector<1x128xf32>
    %23 = vector.extract_strided_slice %6 {offsets = [0, 0], sizes = [128, 8], strides = [1, 1]} : vector<128x32xf32> to vector<128x8xf32>
    %24 = vector.extract_strided_slice %11 {offsets = [0, 0], sizes = [128, 8], strides = [1, 1]} : vector<128x32xf32> to vector<128x8xf32>
    %25 = vector.extract_strided_slice %16 {offsets = [0, 0], sizes = [128, 8], strides = [1, 1]} : vector<128x32xf32> to vector<128x8xf32>
    %cst_18 = arith.constant dense<0.000000e+00> : vector<128x128xf32>
    %26 = tpu.matmul %23, %24, %cst_18 {dimension_numbers = #tpu.dot_dimension_numbers<[1], [1], [0], [0], [0, 0, 1, 0], [], []>} : vector<128x8xf32>, vector<128x8xf32>, vector<128x128xf32> -> vector<128x128xf32>
    %27 = vector.broadcast %22 : vector<1x128xf32> to vector<128x128xf32>
    %28 = arith.addf %26, %27 : vector<128x128xf32>
    %cst_19 = arith.constant dense<0xFF800000> : vector<128xf32>
    %29 = vector.multi_reduction <maximumf>, %28, %cst_19 [1] : vector<128x128xf32> to vector<128xf32>
    %30 = vector.shape_cast %29 : vector<128xf32> to vector<128x1xf32>
    %31 = vector.broadcast %30 : vector<128x1xf32> to vector<128x128xf32>
    %32 = arith.subf %28, %31 : vector<128x128xf32>
    %33 = math.exp %32 : vector<128x128xf32>
    %cst_20 = arith.constant dense<0.000000e+00> : vector<128xf32>
    %34 = vector.multi_reduction <add>, %33, %cst_20 [1] : vector<128x128xf32> to vector<128xf32>
    %35 = vector.shape_cast %34 : vector<128xf32> to vector<128x1xf32>
    %36 = vector.broadcast %35 : vector<128x1xf32> to vector<128x128xf32>
    %37 = arith.divf %33, %36 : vector<128x128xf32>
    %cst_21 = arith.constant dense<0.000000e+00> : vector<128x8xf32>
    %38 = tpu.matmul %37, %25, %cst_21 {dimension_numbers = #tpu.dot_dimension_numbers<[1], [0], [0], [1], [0, 0, 1, 1], [], []>} : vector<128x128xf32>, vector<128x8xf32>, vector<128x8xf32> -> vector<128x8xf32>
    %39 = vector.extract_strided_slice %6 {offsets = [0, 8], sizes = [128, 8], strides = [1, 1]} : vector<128x32xf32> to vector<128x8xf32>
    %40 = vector.extract_strided_slice %11 {offsets = [0, 8], sizes = [128, 8], strides = [1, 1]} : vector<128x32xf32> to vector<128x8xf32>
    %41 = vector.extract_strided_slice %16 {offsets = [0, 8], sizes = [128, 8], strides = [1, 1]} : vector<128x32xf32> to vector<128x8xf32>
    %cst_22 = arith.constant dense<0.000000e+00> : vector<128x128xf32>
    %42 = tpu.matmul %39, %40, %cst_22 {dimension_numbers = #tpu.dot_dimension_numbers<[1], [1], [0], [0], [0, 0, 1, 0], [], []>} : vector<128x8xf32>, vector<128x8xf32>, vector<128x128xf32> -> vector<128x128xf32>
    %43 = vector.broadcast %22 : vector<1x128xf32> to vector<128x128xf32>
    %44 = arith.addf %42, %43 : vector<128x128xf32>
    %cst_23 = arith.constant dense<0xFF800000> : vector<128xf32>
    %45 = vector.multi_reduction <maximumf>, %44, %cst_23 [1] : vector<128x128xf32> to vector<128xf32>
    %46 = vector.shape_cast %45 : vector<128xf32> to vector<128x1xf32>
    %47 = vector.broadcast %46 : vector<128x1xf32> to vector<128x128xf32>
    %48 = arith.subf %44, %47 : vector<128x128xf32>
    %49 = math.exp %48 : vector<128x128xf32>
    %cst_24 = arith.constant dense<0.000000e+00> : vector<128xf32>
    %50 = vector.multi_reduction <add>, %49, %cst_24 [1] : vector<128x128xf32> to vector<128xf32>
    %51 = vector.shape_cast %50 : vector<128xf32> to vector<128x1xf32>
    %52 = vector.broadcast %51 : vector<128x1xf32> to vector<128x128xf32>
    %53 = arith.divf %49, %52 : vector<128x128xf32>
    %cst_25 = arith.constant dense<0.000000e+00> : vector<128x8xf32>
    %54 = tpu.matmul %53, %41, %cst_25 {dimension_numbers = #tpu.dot_dimension_numbers<[1], [0], [0], [1], [0, 0, 1, 1], [], []>} : vector<128x128xf32>, vector<128x8xf32>, vector<128x8xf32> -> vector<128x8xf32>
    %55 = vector.extract_strided_slice %6 {offsets = [0, 16], sizes = [128, 8], strides = [1, 1]} : vector<128x32xf32> to vector<128x8xf32>
    %56 = vector.extract_strided_slice %11 {offsets = [0, 16], sizes = [128, 8], strides = [1, 1]} : vector<128x32xf32> to vector<128x8xf32>
    %57 = vector.extract_strided_slice %16 {offsets = [0, 16], sizes = [128, 8], strides = [1, 1]} : vector<128x32xf32> to vector<128x8xf32>
    %cst_26 = arith.constant dense<0.000000e+00> : vector<128x128xf32>
    %58 = tpu.matmul %55, %56, %cst_26 {dimension_numbers = #tpu.dot_dimension_numbers<[1], [1], [0], [0], [0, 0, 1, 0], [], []>} : vector<128x8xf32>, vector<128x8xf32>, vector<128x128xf32> -> vector<128x128xf32>
    %59 = vector.broadcast %22 : vector<1x128xf32> to vector<128x128xf32>
    %60 = arith.addf %58, %59 : vector<128x128xf32>
    %cst_27 = arith.constant dense<0xFF800000> : vector<128xf32>
    %61 = vector.multi_reduction <maximumf>, %60, %cst_27 [1] : vector<128x128xf32> to vector<128xf32>
    %62 = vector.shape_cast %61 : vector<128xf32> to vector<128x1xf32>
    %63 = vector.broadcast %62 : vector<128x1xf32> to vector<128x128xf32>
    %64 = arith.subf %60, %63 : vector<128x128xf32>
    %65 = math.exp %64 : vector<128x128xf32>
    %cst_28 = arith.constant dense<0.000000e+00> : vector<128xf32>
    %66 = vector.multi_reduction <add>, %65, %cst_28 [1] : vector<128x128xf32> to vector<128xf32>
    %67 = vector.shape_cast %66 : vector<128xf32> to vector<128x1xf32>
    %68 = vector.broadcast %67 : vector<128x1xf32> to vector<128x128xf32>
    %69 = arith.divf %65, %68 : vector<128x128xf32>
    %cst_29 = arith.constant dense<0.000000e+00> : vector<128x8xf32>
    %70 = tpu.matmul %69, %57, %cst_29 {dimension_numbers = #tpu.dot_dimension_numbers<[1], [0], [0], [1], [0, 0, 1, 1], [], []>} : vector<128x128xf32>, vector<128x8xf32>, vector<128x8xf32> -> vector<128x8xf32>
    %71 = vector.extract_strided_slice %6 {offsets = [0, 24], sizes = [128, 8], strides = [1, 1]} : vector<128x32xf32> to vector<128x8xf32>
    %72 = vector.extract_strided_slice %11 {offsets = [0, 24], sizes = [128, 8], strides = [1, 1]} : vector<128x32xf32> to vector<128x8xf32>
    %73 = vector.extract_strided_slice %16 {offsets = [0, 24], sizes = [128, 8], strides = [1, 1]} : vector<128x32xf32> to vector<128x8xf32>
    %cst_30 = arith.constant dense<0.000000e+00> : vector<128x128xf32>
    %74 = tpu.matmul %71, %72, %cst_30 {dimension_numbers = #tpu.dot_dimension_numbers<[1], [1], [0], [0], [0, 0, 1, 0], [], []>} : vector<128x8xf32>, vector<128x8xf32>, vector<128x128xf32> -> vector<128x128xf32>
    %75 = vector.broadcast %22 : vector<1x128xf32> to vector<128x128xf32>
    %76 = arith.addf %74, %75 : vector<128x128xf32>
    %cst_31 = arith.constant dense<0xFF800000> : vector<128xf32>
    %77 = vector.multi_reduction <maximumf>, %76, %cst_31 [1] : vector<128x128xf32> to vector<128xf32>
    %78 = vector.shape_cast %77 : vector<128xf32> to vector<128x1xf32>
    %79 = vector.broadcast %78 : vector<128x1xf32> to vector<128x128xf32>
    %80 = arith.subf %76, %79 : vector<128x128xf32>
    %81 = math.exp %80 : vector<128x128xf32>
    %cst_32 = arith.constant dense<0.000000e+00> : vector<128xf32>
    %82 = vector.multi_reduction <add>, %81, %cst_32 [1] : vector<128x128xf32> to vector<128xf32>
    %83 = vector.shape_cast %82 : vector<128xf32> to vector<128x1xf32>
    %84 = vector.broadcast %83 : vector<128x1xf32> to vector<128x128xf32>
    %85 = arith.divf %81, %84 : vector<128x128xf32>
    %cst_33 = arith.constant dense<0.000000e+00> : vector<128x8xf32>
    %86 = tpu.matmul %85, %73, %cst_33 {dimension_numbers = #tpu.dot_dimension_numbers<[1], [0], [0], [1], [0, 0, 1, 1], [], []>} : vector<128x128xf32>, vector<128x8xf32>, vector<128x8xf32> -> vector<128x8xf32>
    %87 = tpu.concatenate %38, %54, %70, %86 in 1 : vector<128x8xf32>, vector<128x8xf32>, vector<128x8xf32>, vector<128x8xf32> -> vector<128x32xf32>
    %c0_34 = arith.constant 0 : index
    %c0_35 = arith.constant 0 : index
    %88 = vector.load %arg9[%c0_34, %c0_35] : memref<32x32xf32, #tpu.memory_space<vmem>>, vector<32x32xf32>
    %cst_36 = arith.constant dense<0.000000e+00> : vector<128x32xf32>
    %89 = tpu.matmul %87, %88, %cst_36 {dimension_numbers = #tpu.dot_dimension_numbers<[1], [0], [0], [1], [0, 0, 1, 1], [], []>} : vector<128x32xf32>, vector<32x32xf32>, vector<128x32xf32> -> vector<128x32xf32>
    %c0_37 = arith.constant 0 : index
    %c0_38 = arith.constant 0 : index
    %90 = vector.load %arg10[%c0_37, %c0_38] : memref<1x32xf32, #tpu.memory_space<vmem>>, vector<1x32xf32>
    %91 = vector.broadcast %90 : vector<1x32xf32> to vector<128x32xf32>
    %92 = arith.addf %89, %91 : vector<128x32xf32>
    %c0_39 = arith.constant 0 : index
    %c0_40 = arith.constant 0 : index
    %c0_41 = arith.constant 0 : index
    %93 = vector.load %arg11[%c0_39, %c0_40, %c0_41] : memref<1x128x32xf32, #tpu.memory_space<vmem>>, vector<1x128x32xf32>
    %94 = vector.shape_cast %93 : vector<1x128x32xf32> to vector<128x32xf32>
    %95 = vector.shape_cast %92 : vector<128x32xf32> to vector<1x128x32xf32>
    tpu.vector_store %arg11[%c0_39, %c0_40, %c0_41], %95 {strides = array<i32>} : memref<1x128x32xf32, #tpu.memory_space<vmem>>, vector<1x128x32xf32>,
    return
  }
  func.func @transform_0(%arg0: i32, %arg1: i32) -> (i32, i32, i32) {
    %c0_i32 = arith.constant 0 : i32
    %c0_i32_0 = arith.constant 0 : i32
    %c0_i32_1 = arith.constant 0 : i32
    return %arg0, %c0_i32, %c0_i32_0 : i32, i32, i32
  }
  func.func @transform_1(%arg0: i32, %arg1: i32) -> (i32, i32) {
    %c0_i32 = arith.constant 0 : i32
    %c0_i32_0 = arith.constant 0 : i32
    %c0_i32_1 = arith.constant 0 : i32
    return %c0_i32, %c0_i32_0 : i32, i32
  }
  func.func @transform_2(%arg0: i32, %arg1: i32) -> (i32, i32) {
    %c0_i32 = arith.constant 0 : i32
    %c0_i32_0 = arith.constant 0 : i32
    %c0_i32_1 = arith.constant 0 : i32
    return %c0_i32, %c0_i32_0 : i32, i32
  }
  func.func @transform_3(%arg0: i32, %arg1: i32) -> (i32, i32) {
    %c0_i32 = arith.constant 0 : i32
    %c0_i32_0 = arith.constant 0 : i32
    %c0_i32_1 = arith.constant 0 : i32
    return %c0_i32, %c0_i32_0 : i32, i32
  }
  func.func @transform_4(%arg0: i32, %arg1: i32) -> (i32, i32) {
    %c0_i32 = arith.constant 0 : i32
    %c0_i32_0 = arith.constant 0 : i32
    %c0_i32_1 = arith.constant 0 : i32
    return %c0_i32, %c0_i32_0 : i32, i32
  }
  func.func @transform_5(%arg0: i32, %arg1: i32) -> (i32, i32) {
    %c0_i32 = arith.constant 0 : i32
    %c0_i32_0 = arith.constant 0 : i32
    %c0_i32_1 = arith.constant 0 : i32
    return %c0_i32, %c0_i32_0 : i32, i32
  }
  func.func @transform_6(%arg0: i32, %arg1: i32) -> (i32, i32) {
    %c0_i32 = arith.constant 0 : i32
    %c0_i32_0 = arith.constant 0 : i32
    %c0_i32_1 = arith.constant 0 : i32
    return %c0_i32, %c0_i32_0 : i32, i32
  }
  func.func @transform_7(%arg0: i32, %arg1: i32) -> (i32, i32) {
    %c0_i32 = arith.constant 0 : i32
    %c0_i32_0 = arith.constant 0 : i32
    %c0_i32_1 = arith.constant 0 : i32
    return %c0_i32, %c0_i32_0 : i32, i32
  }
  func.func @transform_8(%arg0: i32, %arg1: i32) -> (i32, i32) {
    %c0_i32 = arith.constant 0 : i32
    %c0_i32_0 = arith.constant 0 : i32
    %c0_i32_1 = arith.constant 0 : i32
    return %c0_i32, %c0_i32_0 : i32, i32
  }
  func.func @transform_9(%arg0: i32, %arg1: i32) -> (i32, i32, i32) {
    %c0_i32 = arith.constant 0 : i32
    %c0_i32_0 = arith.constant 0 : i32
    return %arg0, %arg1, %c0_i32 : i32, i32, i32
  }
}

</mosaic_0001>

<llo_original>
// kernel: tpu_custom_call.1
$region0: #{tpu_custom_call.1}
  #allocation0 [shape = 'u32[]', space=smem, size = 0x4, offset = 0x4, fixed_abs, tag = 'smem constant byte address 0x4 - core index']
  #allocation1 [shape = 'u32[72,128]{1,0:T(1,128)}', space=vmem, size = 0x9000, scoped, tag = 'internal scratch']
  %s0 = inlined_call_operand.vmem [shape: f32[2,128,32], index: 0, kind: input, shape index: {}]
  %s1 = inlined_call_operand.vmem [shape: f32[32,32], index: 1, kind: input, shape index: {}]
  %s2 = inlined_call_operand.vmem [shape: f32[32,32], index: 2, kind: input, shape index: {}]
  %s3 = inlined_call_operand.vmem [shape: f32[32,32], index: 3, kind: input, shape index: {}]
  %s4 = inlined_call_operand.vmem [shape: f32[1,32], index: 4, kind: input, shape index: {}]
  %s5 = inlined_call_operand.vmem [shape: f32[1,32], index: 5, kind: input, shape index: {}]
  %s6 = inlined_call_operand.vmem [shape: f32[1,32], index: 6, kind: input, shape index: {}]
  %s7 = inlined_call_operand.vmem [shape: f32[32,32], index: 7, kind: input, shape index: {}]
  %s8 = inlined_call_operand.vmem [shape: f32[1,32], index: 8, kind: input, shape index: {}]
  %s9 = inlined_call_operand.vmem [shape: f32[2,128,32], index: 9, kind: output, shape index: {}]
  %s10 = sld [smem:[#allocation0]]
  $region69: #{tpu_custom_call.1} parent=0
    _
  %s12 = ssub.s32 1, %s10
  %s13 = scalar_select 0, %s12, %s10
  loop: start=0, step=1, limit=4
  $region2: #{tpu_custom_call.1} parent=0 // loop_pre_header
    _
  $region3: #{tpu_custom_call.1} parent=0 // loop_header
    %s15 = sphi 0, %s19
    %p16 = scmp.ge.s32.totalorder %s15, 4
    %s22 = sphi 0, %s34
    %s23 = sphi 0, %s30
    %s24 = sphi 0, %s22
    %s25 = sphi 0, %s23
    %s26 = sphi 0, %s24
    %s27 = sphi 0, %s25
    %s37 = sphi 0, %s39
    %s40 = sphi 0, %s37
    %s41 = sphi 0, %s40
    %s57 = sphi 0, %s41
    %s61 = sphi 0, %s61
    %s63 = sphi 0, %s61
    %s64 = sphi 0, %s63
    %s78 = sphi 0, %s64
    %s82 = sphi 0, %s82
    %s84 = sphi 0, %s82
    %s85 = sphi 0, %s84
    %s99 = sphi 0, %s85
    %s103 = sphi 0, %s103
    %s105 = sphi 0, %s103
    %s106 = sphi 0, %s105
    %s120 = sphi 0, %s106
    %s124 = sphi 0, %s124
    %s126 = sphi 0, %s124
    %s127 = sphi 0, %s126
    %s141 = sphi 0, %s127
    %s145 = sphi 0, %s145
    %s147 = sphi 0, %s145
    %s148 = sphi 0, %s147
    %s162 = sphi 0, %s148
    %s166 = sphi 0, %s166
    %s168 = sphi 0, %s166
    %s169 = sphi 0, %s168
    %s183 = sphi 0, %s169
    %s187 = sphi 0, %s187
    %s189 = sphi 0, %s187
    %s190 = sphi 0, %s189
    %s204 = sphi 0, %s190
    %s208 = sphi 0, %s208
    %s210 = sphi 0, %s208
    %s211 = sphi 0, %s210
    %s225 = sphi 0, %s211
    %s233 = sphi 0, %s235
    %s236 = sphi 0, %s233
    %s237 = sphi 0, %s236
    %s253 = sphi 0, %s237
  $region4: #{tpu_custom_call.1} parent=0 // loop_header_branch
    %18 = sbr.rel (%p16) target = $region8
  $region5: #{tpu_custom_call.1} parent=0 // loop_body
    %s20 = ssub.s32 %s15, 1
    %s21 = ssub.s32 %s15, 2
    %s28 = sadd.s32 1, %s23
    %p29 = scmp.ge.s32.totalorder %s28, 1
    %s30 = scalar_select %p29, 0, %s28
    %s31 = sadd.s32 1, %s22
    %s32 = scalar_select %p29, %s31, %s22
    %p33 = scmp.ge.s32.totalorder %s32, 2
    %s34 = scalar_select %p33, 0, %s32
    %s35 = ssub.s32 %s22, %s34
    %p36 = scmp.eq.s32.totalorder %s35, 0
    %s38 = sadd.s32 %s37, 1
    %s39 = scalar_select %p36, %s37, %s38
    %p42 = pneg %p36
    %p43 = scmp.eq.s32.totalorder %s15, 1
    %p44 = por %p42, %p43
    %p45 = scmp.ne.s32.totalorder %s37, %s40
    %p46 = scmp.eq.s32.totalorder %s15, 0
    %p47 = por %p45, %p46
    %p48 = scmp.ne.s32.totalorder %s37, %s40
    %p49 = scmp.eq.s32.totalorder %s20, 1
    %p50 = por %p48, %p49
    %p51 = scmp.ne.s32.totalorder %s40, %s41
    %p52 = scmp.eq.s32.totalorder %s20, 0
    %p53 = por %p51, %p52
    %p54 = scmp.ne.s32.totalorder %s40, %s41
    %p55 = scmp.eq.s32.totalorder %s21, 1
    %p56 = por %p54, %p55
    %p58 = scmp.ne.s32.totalorder %s41, %s57
    %p59 = scmp.eq.s32.totalorder %s21, 0
    %p60 = por %p58, %p59
    %s62 = sadd.s32 %s61, 1
    %p65 = scmp.eq.s32.totalorder %s15, 1
    %p66 = scmp.ne.s32.totalorder %s61, %s63
    %p67 = scmp.eq.s32.totalorder %s15, 0
    %p68 = por %p66, %p67
    %p69 = scmp.ne.s32.totalorder %s61, %s63
    %p70 = scmp.eq.s32.totalorder %s20, 1
    %p71 = por %p69, %p70
    %p72 = scmp.ne.s32.totalorder %s63, %s64
    %p73 = scmp.eq.s32.totalorder %s20, 0
    %p74 = por %p72, %p73
    %p75 = scmp.ne.s32.totalorder %s63, %s64
    %p76 = scmp.eq.s32.totalorder %s21, 1
    %p77 = por %p75, %p76
    %p79 = scmp.ne.s32.totalorder %s64, %s78
    %p80 = scmp.eq.s32.totalorder %s21, 0
    %p81 = por %p79, %p80
    %s83 = sadd.s32 %s82, 1
    %p86 = scmp.eq.s32.totalorder %s15, 1
    %p87 = scmp.ne.s32.totalorder %s82, %s84
    %p88 = scmp.eq.s32.totalorder %s15, 0
    %p89 = por %p87, %p88
    %p90 = scmp.ne.s32.totalorder %s82, %s84
    %p91 = scmp.eq.s32.totalorder %s20, 1
    %p92 = por %p90, %p91
    %p93 = scmp.ne.s32.totalorder %s84, %s85
    %p94 = scmp.eq.s32.totalorder %s20, 0
    %p95 = por %p93, %p94
    %p96 = scmp.ne.s32.totalorder %s84, %s85
    %p97 = scmp.eq.s32.totalorder %s21, 1
    %p98 = por %p96, %p97
    %p100 = scmp.ne.s32.totalorder %s85, %s99
    %p101 = scmp.eq.s32.totalorder %s21, 0
    %p102 = por %p100, %p101
    %s104 = sadd.s32 %s103, 1
    %p107 = scmp.eq.s32.totalorder %s15, 1
    %p108 = scmp.ne.s32.totalorder %s103, %s105
    %p109 = scmp.eq.s32.totalorder %s15, 0
    %p110 = por %p108, %p109
    %p111 = scmp.ne.s32.totalorder %s103, %s105
    %p112 = scmp.eq.s32.totalorder %s20, 1
    %p113 = por %p111, %p112
    %p114 = scmp.ne.s32.totalorder %s105, %s106
    %p115 = scmp.eq.s32.totalorder %s20, 0
    %p116 = por %p114, %p115
    %p117 = scmp.ne.s32.totalorder %s105, %s106
    %p118 = scmp.eq.s32.totalorder %s21, 1
    %p119 = por %p117, %p118
    %p121 = scmp.ne.s32.totalorder %s106, %s120
    %p122 = scmp.eq.s32.totalorder %s21, 0
    %p123 = por %p121, %p122
    %s125 = sadd.s32 %s124, 1
    %p128 = scmp.eq.s32.totalorder %s15, 1
    %p129 = scmp.ne.s32.totalorder %s124, %s126
    %p130 = scmp.eq.s32.totalorder %s15, 0
    %p131 = por %p129, %p130
    %p132 = scmp.ne.s32.totalorder %s124, %s126
    %p133 = scmp.eq.s32.totalorder %s20, 1
    %p134 = por %p132, %p133
    %p135 = scmp.ne.s32.totalorder %s126, %s127
    %p136 = scmp.eq.s32.totalorder %s20, 0
    %p137 = por %p135, %p136
    %p138 = scmp.ne.s32.totalorder %s126, %s127
    %p139 = scmp.eq.s32.totalorder %s21, 1
    %p140 = por %p138, %p139
    %p142 = scmp.ne.s32.totalorder %s127, %s141
    %p143 = scmp.eq.s32.totalorder %s21, 0
    %p144 = por %p142, %p143
    %s146 = sadd.s32 %s145, 1
    %p149 = scmp.eq.s32.totalorder %s15, 1
    %p150 = scmp.ne.s32.totalorder %s145, %s147
    %p151 = scmp.eq.s32.totalorder %s15, 0
    %p152 = por %p150, %p151
    %p153 = scmp.ne.s32.totalorder %s145, %s147
    %p154 = scmp.eq.s32.totalorder %s20, 1
    %p155 = por %p153, %p154
    %p156 = scmp.ne.s32.totalorder %s147, %s148
    %p157 = scmp.eq.s32.totalorder %s20, 0
    %p158 = por %p156, %p157
    %p159 = scmp.ne.s32.totalorder %s147, %s148
    %p160 = scmp.eq.s32.totalorder %s21, 1
    %p161 = por %p159, %p160
    %p163 = scmp.ne.s32.totalorder %s148, %s162
    %p164 = scmp.eq.s32.totalorder %s21, 0
    %p165 = por %p163, %p164
    %s167 = sadd.s32 %s166, 1
    %p170 = scmp.eq.s32.totalorder %s15, 1
    %p171 = scmp.ne.s32.totalorder %s166, %s168
    %p172 = scmp.eq.s32.totalorder %s15, 0
    %p173 = por %p171, %p172
    %p174 = scmp.ne.s32.totalorder %s166, %s168
    %p175 = scmp.eq.s32.totalorder %s20, 1
    %p176 = por %p174, %p175
    %p177 = scmp.ne.s32.totalorder %s168, %s169
    %p178 = scmp.eq.s32.totalorder %s20, 0
    %p179 = por %p177, %p178
    %p180 = scmp.ne.s32.totalorder %s168, %s169
    %p181 = scmp.eq.s32.totalorder %s21, 1
    %p182 = por %p180, %p181
    %p184 = scmp.ne.s32.totalorder %s169, %s183
    %p185 = scmp.eq.s32.totalorder %s21, 0
    %p186 = por %p184, %p185
    %s188 = sadd.s32 %s187, 1
    %p191 = scmp.eq.s32.totalorder %s15, 1
    %p192 = scmp.ne.s32.totalorder %s187, %s189
    %p193 = scmp.eq.s32.totalorder %s15, 0
    %p194 = por %p192, %p193
    %p195 = scmp.ne.s32.totalorder %s187, %s189
    %p196 = scmp.eq.s32.totalorder %s20, 1
    %p197 = por %p195, %p196
    %p198 = scmp.ne.s32.totalorder %s189, %s190
    %p199 = scmp.eq.s32.totalorder %s20, 0
    %p200 = por %p198, %p199
    %p201 = scmp.ne.s32.totalorder %s189, %s190
    %p202 = scmp.eq.s32.totalorder %s21, 1
    %p203 = por %p201, %p202
    %p205 = scmp.ne.s32.totalorder %s190, %s204
    %p206 = scmp.eq.s32.totalorder %s21, 0
    %p207 = por %p205, %p206
    %s209 = sadd.s32 %s208, 1
    %p212 = scmp.eq.s32.totalorder %s15, 1
    %p213 = scmp.ne.s32.totalorder %s208, %s210
    %p214 = scmp.eq.s32.totalorder %s15, 0
    %p215 = por %p213, %p214
    %p216 = scmp.ne.s32.totalorder %s208, %s210
    %p217 = scmp.eq.s32.totalorder %s20, 1
    %p218 = por %p216, %p217
    %p219 = scmp.ne.s32.totalorder %s210, %s211
    %p220 = scmp.eq.s32.totalorder %s20, 0
    %p221 = por %p219, %p220
    %p222 = scmp.ne.s32.totalorder %s210, %s211
    %p223 = scmp.eq.s32.totalorder %s21, 1
    %p224 = por %p222, %p223
    %p226 = scmp.ne.s32.totalorder %s211, %s225
    %p227 = scmp.eq.s32.totalorder %s21, 0
    %p228 = por %p226, %p227
    %s229 = ssub.s32 %s22, %s34
    %s230 = ssub.s32 %s23, %s30
    %s231 = sor.u32 %s229, %s230
    %p232 = scmp.eq.s32.totalorder %s231, 0
    %s234 = sadd.s32 %s233, 1
    %s235 = scalar_select %p232, %s233, %s234
    %p238 = pneg %p232
    %p239 = scmp.eq.s32.totalorder %s15, 1
    %p240 = por %p238, %p239
    %p241 = scmp.ne.s32.totalorder %s233, %s236
    %p242 = scmp.eq.s32.totalorder %s15, 0
    %p243 = por %p241, %p242
    %p244 = scmp.ne.s32.totalorder %s233, %s236
    %p245 = scmp.eq.s32.totalorder %s20, 1
    %p246 = por %p244, %p245
    %p247 = scmp.ne.s32.totalorder %s236, %s237
    %p248 = scmp.eq.s32.totalorder %s20, 0
    %p249 = por %p247, %p248
    %p250 = scmp.ne.s32.totalorder %s236, %s237
    %p251 = scmp.eq.s32.totalorder %s21, 1
    %p252 = por %p250, %p251
    %p254 = scmp.ne.s32.totalorder %s237, %s253
    %p255 = scmp.eq.s32.totalorder %s21, 0
    %p256 = por %p254, %p255
    %p257 = scmp.le.s32.totalorder 1, %s15
    %p258 = scmp.lt.s32.totalorder %s15, 3
    %p259 = pnand %p257, %p258
    %p260 = pneg %p259
    // Predicated region
    $region9: #{tpu_custom_call.1} parent=5 // pred_check
      _
    $region10: #{tpu_custom_call.1} parent=5 // pred_check_branch
      %262 = sbr.rel (%p259) target = $region12
    $region11: #{tpu_custom_call.1} parent=5 // pred_region
      %s263 = ssub.s32 %s15, 1
      // Predicated region
      $region13: #{tpu_custom_call.1} parent=11 // pred_check
        %p264 = pneg %p74
      $region14: #{tpu_custom_call.1} parent=11 // pred_check_branch
        %266 = sbr.rel (%p264) target = $region16
      $region15: #{tpu_custom_call.1} parent=11 // pred_region
        _
      $region16: #{tpu_custom_call.1} parent=11 // pred_fallthru
        _
      // Predicated region
      $region17: #{tpu_custom_call.1} parent=11 // pred_check
        %p267 = pneg %p95
      $region18: #{tpu_custom_call.1} parent=11 // pred_check_branch
        %269 = sbr.rel (%p267) target = $region20
      $region19: #{tpu_custom_call.1} parent=11 // pred_region
        _
      $region20: #{tpu_custom_call.1} parent=11 // pred_fallthru
        _
      // Predicated region
      $region21: #{tpu_custom_call.1} parent=11 // pred_check
        %p270 = pneg %p116
      $region22: #{tpu_custom_call.1} parent=11 // pred_check_branch
        %272 = sbr.rel (%p270) target = $region24
      $region23: #{tpu_custom_call.1} parent=11 // pred_region
        _
      $region24: #{tpu_custom_call.1} parent=11 // pred_fallthru
        _
      // Predicated region
      $region25: #{tpu_custom_call.1} parent=11 // pred_check
        %p273 = pneg %p137
      $region26: #{tpu_custom_call.1} parent=11 // pred_check_branch
        %275 = sbr.rel (%p273) target = $region28
      $region27: #{tpu_custom_call.1} parent=11 // pred_region
        _
      $region28: #{tpu_custom_call.1} parent=11 // pred_fallthru
        _
      // Predicated region
      $region29: #{tpu_custom_call.1} parent=11 // pred_check
        %p276 = pneg %p158
      $region30: #{tpu_custom_call.1} parent=11 // pred_check_branch
        %278 = sbr.rel (%p276) target = $region32
      $region31: #{tpu_custom_call.1} parent=11 // pred_region
        _
      $region32: #{tpu_custom_call.1} parent=11 // pred_fallthru
        _
      // Predicated region
      $region33: #{tpu_custom_call.1} parent=11 // pred_check
        %p279 = pneg %p179
      $region34: #{tpu_custom_call.1} parent=11 // pred_check_branch
        %281 = sbr.rel (%p279) target = $region36
      $region35: #{tpu_custom_call.1} parent=11 // pred_region
        _
      $region36: #{tpu_custom_call.1} parent=11 // pred_fallthru
        _
      // Predicated region
      $region37: #{tpu_custom_call.1} parent=11 // pred_check
        %p282 = pneg %p200
      $region38: #{tpu_custom_call.1} parent=11 // pred_check_branch
        %284 = sbr.rel (%p282) target = $region40
      $region39: #{tpu_custom_call.1} parent=11 // pred_region
        _
      $region40: #{tpu_custom_call.1} parent=11 // pred_fallthru
        _
      // Predicated region
      $region41: #{tpu_custom_call.1} parent=11 // pred_check
        %p285 = pneg %p221
      $region42: #{tpu_custom_call.1} parent=11 // pred_check_branch
        %287 = sbr.rel (%p285) target = $region44
      $region43: #{tpu_custom_call.1} parent=11 // pred_region
        _
      $region44: #{tpu_custom_call.1} parent=11 // pred_fallthru
        _
    $region12: #{tpu_custom_call.1} parent=5 // pred_fallthru
      _
    %p288 = scmp.lt.s32.totalorder %s15, 2
    // Predicated region
    $region45: #{tpu_custom_call.1} parent=5 // pred_check
      %p289 = pneg %p288
    $region46: #{tpu_custom_call.1} parent=5 // pred_check_branch
      %291 = sbr.rel (%p289) target = $region48
    $region47: #{tpu_custom_call.1} parent=5 // pred_region
      // Predicated region
      $region49: #{tpu_custom_call.1} parent=47 // pred_check
        %p292 = pneg %p47
      $region50: #{tpu_custom_call.1} parent=47 // pred_check_branch
        %294 = sbr.rel (%p292) target = $region52
      $region51: #{tpu_custom_call.1} parent=47 // pred_region
        %p295 = scmp.lt.s32.totalorder %s22, 1
        %s296 = scalar_select %p295, %s22, 1
        %s297 = smul.addr %s296, 16
        %s298 = smul.addr %s297, 8
        %s299 = scalar_lea.vmem %s0, %s298
      $region52: #{tpu_custom_call.1} parent=47 // pred_fallthru
        _
    $region48: #{tpu_custom_call.1} parent=5 // pred_fallthru
      _
    %p300 = scmp.le.s32.totalorder 1, %s15
    %p301 = scmp.lt.s32.totalorder %s15, 3
    %p302 = pnand %p300, %p301
    %p303 = pneg %p302
    // Predicated region
    $region53: #{tpu_custom_call.1} parent=5 // pred_check
      _
    $region54: #{tpu_custom_call.1} parent=5 // pred_check_branch
      %305 = sbr.rel (%p302) target = $region56
    $region55: #{tpu_custom_call.1} parent=5 // pred_region
      %s306 = ssub.s32 %s15, 1
      %p307 = scmp.lt.s32.totalorder %s24, 1
      %s308 = scalar_select %p307, %s24, 1
      %s309 = smul.addr %s308, 16
      %s310 = smul.addr %s309, 8
      %s311 = scalar_lea.vmem %s0, %s310
      %p312 = pneg %p53
      %p313 = pneg %p50
      %p314 = pneg %p74
      %p315 = pneg %p71
      %p316 = pneg %p95
      %p317 = pneg %p92
      %p318 = pneg %p116
      %p319 = pneg %p113
      %p320 = pneg %p137
      %p321 = pneg %p134
      %p322 = pneg %p158
      %p323 = pneg %p155
      %p324 = pneg %p179
      %p325 = pneg %p176
      %p326 = pneg %p200
      %p327 = pneg %p197
      %p328 = pneg %p221
      %p329 = pneg %p218
      %p330 = pneg %p249
      %p331 = pneg %p246
      %s332 = smul.u32 16, %s25
      %p333 = scmp.lt.s32.totalorder %s24, 1
      %s334 = scalar_select %p333, %s24, 1
      %p335 = scmp.lt.s32.totalorder %s332, 15
      %s336 = scalar_select %p335, %s332, 15
      %s337 = smul.addr %s334, 16
      %s338 = sadd.s32 %s336, %s337
      %s339 = smul.addr %s338, 8
      %s340 = scalar_lea.vmem %s9, %s339
      %p341 = scmp.lt.s32.totalorder %s24, 1
      %s342 = scalar_select %p341, %s24, 1
      %s343 = smul.addr %s342, 16
      %s344 = smul.addr %s343, 8
      %s345 = scalar_lea.vmem %s0, %s344
      %s346 = smul.u32 16, %s25
      %p347 = scmp.lt.s32.totalorder %s24, 1
      %s348 = scalar_select %p347, %s24, 1
      %p349 = scmp.lt.s32.totalorder %s346, 15
      %s350 = scalar_select %p349, %s346, 15
      %s351 = smul.addr %s348, 16
      %s352 = sadd.s32 %s350, %s351
      %s353 = smul.addr %s352, 8
      %s354 = scalar_lea.vmem %s9, %s353
      %s355 = smul.u32 16, %s25
      %v356 = vld [vmem:[%s345] sm:$0xff]
      %v357 = vld [vmem:[%s345 + $0x8] sm:$0xff]
      %v358 = vld [vmem:[%s345 + $0x10] sm:$0xff]
      %v359 = vld [vmem:[%s345 + $0x18] sm:$0xff]
      %v360 = vld [vmem:[%s345 + $0x20] sm:$0xff]
      %v361 = vld [vmem:[%s345 + $0x28] sm:$0xff]
      %v362 = vld [vmem:[%s345 + $0x30] sm:$0xff]
      %v363 = vld [vmem:[%s345 + $0x38] sm:$0xff]
      %v364 = vld [vmem:[%s345 + $0x40] sm:$0xff]
      %v365 = vld [vmem:[%s345 + $0x48] sm:$0xff]
      %v366 = vld [vmem:[%s345 + $0x50] sm:$0xff]
      %v367 = vld [vmem:[%s345 + $0x58] sm:$0xff]
      %v368 = vld [vmem:[%s345 + $0x60] sm:$0xff]
      %v369 = vld [vmem:[%s345 + $0x68] sm:$0xff]
      %v370 = vld [vmem:[%s345 + $0x70] sm:$0xff]
      %v371 = vld [vmem:[%s345 + $0x78] sm:$0xff]
      %v372 = vld [vmem:[%s1] sm:$0xff]
      %v373 = vld [vmem:[%s1 + $0x8] sm:$0xff]
      %v374 = vld [vmem:[%s1 + $0x10] sm:$0xff]
      %v375 = vld [vmem:[%s1 + $0x18] sm:$0xff]
      %v376 = vld [vmem:[%s4] sm:$0x1]
      %v378 = vperm.slane %v376, 0
      %vm380 = vcmask 261120
      %v382 = vsel %vm380, %v356, 0
      %v385 = vsel %vm380, %v357, 0
      %v388 = vsel %vm380, %v358, 0
      %v391 = vsel %vm380, %v359, 0
      %v394 = vsel %vm380, %v360, 0
      %v397 = vsel %vm380, %v361, 0
      %v400 = vsel %vm380, %v362, 0
      %v403 = vsel %vm380, %v363, 0
      %v406 = vsel %vm380, %v364, 0
      %v409 = vsel %vm380, %v365, 0
      %v412 = vsel %vm380, %v366, 0
      %v415 = vsel %vm380, %v367, 0
      %v418 = vsel %vm380, %v368, 0
      %v421 = vsel %vm380, %v369, 0
      %v424 = vsel %vm380, %v370, 0
      %v427 = vsel %vm380, %v371, 0
      %429 = vmatpush.msra.mxu0 0.0
      %430 = vmatpush.msra.mxu0 0.0
      %431 = vmatpush.msra.mxu0 0.0
      %432 = vmatpush.msra.mxu0 0.0
      %433 = vmatpush.msra.mxu0 0.0
      %434 = vmatpush.msra.mxu0 0.0
      %435 = vmatpush.msra.mxu0 0.0
      %436 = vmatpush.msra.mxu0 0.0
      %437 = vmatpush.msra.mxu0 0.0
      %438 = vmatpush.msra.mxu0 0.0
      %439 = vmatpush.msra.mxu0 0.0
      %440 = vmatpush.msra.mxu0 0.0
      %441 = vmatpush.msra.mxu0 %v375
      %442 = vmatpush.msra.mxu0 %v374
      %443 = vmatpush.msra.mxu0 %v373
      %444 = vmatpush.msra.mxu0 %v372
      %445 = vmatmul.f32.gmra.mxu0 %v382
      %v446 = vpop.f32.mrf.mxu0
      %v447 = vadd.f32 %v378, %v446
      %448 = vmatmul.f32.gmra.mxu0 %v385
      %v449 = vpop.f32.mrf.mxu0
      %v450 = vadd.f32 %v378, %v449
      %451 = vmatmul.f32.gmra.mxu0 %v388
      %v452 = vpop.f32.mrf.mxu0
      %v453 = vadd.f32 %v378, %v452
      %454 = vmatmul.f32.gmra.mxu0 %v391
      %v455 = vpop.f32.mrf.mxu0
      %v456 = vadd.f32 %v378, %v455
      %457 = vmatmul.f32.gmra.mxu0 %v394
      %v458 = vpop.f32.mrf.mxu0
      %v459 = vadd.f32 %v378, %v458
      %460 = vmatmul.f32.gmra.mxu0 %v397
      %v461 = vpop.f32.mrf.mxu0
      %v462 = vadd.f32 %v378, %v461
      %463 = vmatmul.f32.gmra.mxu0 %v400
      %v464 = vpop.f32.mrf.mxu0
      %v465 = vadd.f32 %v378, %v464
      %466 = vmatmul.f32.gmra.mxu0 %v403
      %v467 = vpop.f32.mrf.mxu0
      %v468 = vadd.f32 %v378, %v467
      %469 = vmatmul.f32.gmra.mxu0 %v406
      %v470 = vpop.f32.mrf.mxu0
      %v471 = vadd.f32 %v378, %v470
      %472 = vmatmul.f32.gmra.mxu0 %v409
      %v473 = vpop.f32.mrf.mxu0
      %v474 = vadd.f32 %v378, %v473
      %475 = vmatmul.f32.gmra.mxu0 %v412
      %v476 = vpop.f32.mrf.mxu0
      %v477 = vadd.f32 %v378, %v476
      %478 = vmatmul.f32.gmra.mxu0 %v415
      %v479 = vpop.f32.mrf.mxu0
      %v480 = vadd.f32 %v378, %v479
      %481 = vmatmul.f32.gmra.mxu0 %v418
      %v482 = vpop.f32.mrf.mxu0
      %v483 = vadd.f32 %v378, %v482
      %484 = vmatmul.f32.gmra.mxu0 %v421
      %v485 = vpop.f32.mrf.mxu0
      %v486 = vadd.f32 %v378, %v485
      %487 = vmatmul.f32.gmra.mxu0 %v424
      %v488 = vpop.f32.mrf.mxu0
      %v489 = vadd.f32 %v378, %v488
      %490 = vmatmul.f32.gmra.mxu0 %v427
      %v491 = vpop.f32.mrf.mxu0
      %v492 = vadd.f32 %v378, %v491
      %493 = vdwg.mxu0
      %v494 = vld [vmem:[%s2] sm:$0xff]
      %v495 = vld [vmem:[%s2 + $0x8] sm:$0xff]
      %v496 = vld [vmem:[%s2 + $0x10] sm:$0xff]
      %v497 = vld [vmem:[%s2 + $0x18] sm:$0xff]
      %v498 = vld [vmem:[%s5] sm:$0x1]
      %v500 = vperm.slane %v498, 0
      %502 = vmatpush.msra.mxu0 0.0
      %503 = vmatpush.msra.mxu0 0.0
      %504 = vmatpush.msra.mxu0 0.0
      %505 = vmatpush.msra.mxu0 0.0
      %506 = vmatpush.msra.mxu0 0.0
      %507 = vmatpush.msra.mxu0 0.0
      %508 = vmatpush.msra.mxu0 0.0
      %509 = vmatpush.msra.mxu0 0.0
      %510 = vmatpush.msra.mxu0 0.0
      %511 = vmatpush.msra.mxu0 0.0
      %512 = vmatpush.msra.mxu0 0.0
      %513 = vmatpush.msra.mxu0 0.0
      %514 = vmatpush.msra.mxu0 %v497
      %515 = vmatpush.msra.mxu0 %v496
      %516 = vmatpush.msra.mxu0 %v495
      %517 = vmatpush.msra.mxu0 %v494
      %518 = vmatmul.f32.gmra.mxu0 %v382
      %v519 = vpop.f32.mrf.mxu0
      %v520 = vadd.f32 %v500, %v519
      %521 = vmatmul.f32.gmra.mxu0 %v385
      %v522 = vpop.f32.mrf.mxu0
      %v523 = vadd.f32 %v500, %v522
      %524 = vmatmul.f32.gmra.mxu0 %v388
      %v525 = vpop.f32.mrf.mxu0
      %v526 = vadd.f32 %v500, %v525
      %527 = vmatmul.f32.gmra.mxu0 %v391
      %v528 = vpop.f32.mrf.mxu0
      %v529 = vadd.f32 %v500, %v528
      %530 = vmatmul.f32.gmra.mxu0 %v394
      %v531 = vpop.f32.mrf.mxu0
      %v532 = vadd.f32 %v500, %v531
      %533 = vmatmul.f32.gmra.mxu0 %v397
      %v534 = vpop.f32.mrf.mxu0
      %v535 = vadd.f32 %v500, %v534
      %536 = vmatmul.f32.gmra.mxu0 %v400
      %v537 = vpop.f32.mrf.mxu0
      %v538 = vadd.f32 %v500, %v537
      %539 = vmatmul.f32.gmra.mxu0 %v403
      %v540 = vpop.f32.mrf.mxu0
      %v541 = vadd.f32 %v500, %v540
      %542 = vmatmul.f32.gmra.mxu0 %v406
      %v543 = vpop.f32.mrf.mxu0
      %v544 = vadd.f32 %v500, %v543
      %545 = vmatmul.f32.gmra.mxu0 %v409
      %v546 = vpop.f32.mrf.mxu0
      %v547 = vadd.f32 %v500, %v546
      %548 = vmatmul.f32.gmra.mxu0 %v412
      %v549 = vpop.f32.mrf.mxu0
      %v550 = vadd.f32 %v500, %v549
      %551 = vmatmul.f32.gmra.mxu0 %v415
      %v552 = vpop.f32.mrf.mxu0
      %v553 = vadd.f32 %v500, %v552
      %554 = vmatmul.f32.gmra.mxu0 %v418
      %v555 = vpop.f32.mrf.mxu0
      %v556 = vadd.f32 %v500, %v555
      %557 = vmatmul.f32.gmra.mxu0 %v421
      %v558 = vpop.f32.mrf.mxu0
      %v559 = vadd.f32 %v500, %v558
      %560 = vmatmul.f32.gmra.mxu0 %v424
      %v561 = vpop.f32.mrf.mxu0
      %v562 = vadd.f32 %v500, %v561
      %563 = vmatmul.f32.gmra.mxu0 %v427
      %v564 = vpop.f32.mrf.mxu0
      %v565 = vadd.f32 %v500, %v564
      %566 = vdwg.mxu0
      %v567 = vld [vmem:[%s3] sm:$0xff]
      %v568 = vld [vmem:[%s3 + $0x8] sm:$0xff]
      %v569 = vld [vmem:[%s3 + $0x10] sm:$0xff]
      %v570 = vld [vmem:[%s3 + $0x18] sm:$0xff]
      %v571 = vld [vmem:[%s6] sm:$0x1]
      %v573 = vperm.slane %v571, 0
      %575 = vmatpush.msra.mxu0 0.0
      %576 = vmatpush.msra.mxu0 0.0
      %577 = vmatpush.msra.mxu0 0.0
      %578 = vmatpush.msra.mxu0 0.0
      %579 = vmatpush.msra.mxu0 0.0
      %580 = vmatpush.msra.mxu0 0.0
      %581 = vmatpush.msra.mxu0 0.0
      %582 = vmatpush.msra.mxu0 0.0
      %583 = vmatpush.msra.mxu0 0.0
      %584 = vmatpush.msra.mxu0 0.0
      %585 = vmatpush.msra.mxu0 0.0
      %586 = vmatpush.msra.mxu0 0.0
      %587 = vmatpush.msra.mxu0 %v570
      %588 = vmatpush.msra.mxu0 %v569
      %589 = vmatpush.msra.mxu0 %v568
      %590 = vmatpush.msra.mxu0 %v567
      %591 = vmatmul.f32.gmra.mxu0 %v382
      %v592 = vpop.f32.mrf.mxu0
      %v593 = vadd.f32 %v573, %v592
      %594 = vmatmul.f32.gmra.mxu0 %v385
      %v595 = vpop.f32.mrf.mxu0
      %v596 = vadd.f32 %v573, %v595
      %597 = vmatmul.f32.gmra.mxu0 %v388
      %v598 = vpop.f32.mrf.mxu0
      %v599 = vadd.f32 %v573, %v598
      %600 = vmatmul.f32.gmra.mxu0 %v391
      %v601 = vpop.f32.mrf.mxu0
      %v602 = vadd.f32 %v573, %v601
      %603 = vmatmul.f32.gmra.mxu0 %v394
      %v604 = vpop.f32.mrf.mxu0
      %v605 = vadd.f32 %v573, %v604
      %606 = vmatmul.f32.gmra.mxu0 %v397
      %v607 = vpop.f32.mrf.mxu0
      %v608 = vadd.f32 %v573, %v607
      %609 = vmatmul.f32.gmra.mxu0 %v400
      %v610 = vpop.f32.mrf.mxu0
      %v611 = vadd.f32 %v573, %v610
      %612 = vmatmul.f32.gmra.mxu0 %v403
      %v613 = vpop.f32.mrf.mxu0
      %v614 = vadd.f32 %v573, %v613
      %615 = vmatmul.f32.gmra.mxu0 %v406
      %v616 = vpop.f32.mrf.mxu0
      %v617 = vadd.f32 %v573, %v616
      %618 = vmatmul.f32.gmra.mxu0 %v409
      %v619 = vpop.f32.mrf.mxu0
      %v620 = vadd.f32 %v573, %v619
      %621 = vmatmul.f32.gmra.mxu0 %v412
      %v622 = vpop.f32.mrf.mxu0
      %v623 = vadd.f32 %v573, %v622
      %624 = vmatmul.f32.gmra.mxu0 %v415
      %v625 = vpop.f32.mrf.mxu0
      %v626 = vadd.f32 %v573, %v625
      %627 = vmatmul.f32.gmra.mxu0 %v418
      %v628 = vpop.f32.mrf.mxu0
      %v629 = vadd.f32 %v573, %v628
      %630 = vmatmul.f32.gmra.mxu0 %v421
      %v631 = vpop.f32.mrf.mxu0
      %v632 = vadd.f32 %v573, %v631
      %633 = vmatmul.f32.gmra.mxu0 %v424
      %v634 = vpop.f32.mrf.mxu0
      %v635 = vadd.f32 %v573, %v634
      %636 = vmatmul.f32.gmra.mxu0 %v427
      %v637 = vpop.f32.mrf.mxu0
      %v638 = vadd.f32 %v573, %v637
      %639 = vdwg.mxu0
      %v640 = vlaneseq
      %v641 = vand.u32 %v640, 127
      %vm642 = vcmp.lt.s32.totalorder %v641, 8
      %v643 = vsel %vm642, 0.0, -1e+30
      %vm644 = vcmask 64512
      %v646 = vsel %vm644, %v447, 0
      %v649 = vsel %vm644, %v450, 0
      %v652 = vsel %vm644, %v453, 0
      %v655 = vsel %vm644, %v456, 0
      %v658 = vsel %vm644, %v459, 0
      %v661 = vsel %vm644, %v462, 0
      %v664 = vsel %vm644, %v465, 0
      %v667 = vsel %vm644, %v468, 0
      %v670 = vsel %vm644, %v471, 0
      %v673 = vsel %vm644, %v474, 0
      %v676 = vsel %vm644, %v477, 0
      %v679 = vsel %vm644, %v480, 0
      %v682 = vsel %vm644, %v483, 0
      %v685 = vsel %vm644, %v486, 0
      %v688 = vsel %vm644, %v489, 0
      %v691 = vsel %vm644, %v492, 0
      %v694 = vsel %vm644, %v520, 0
      %v697 = vsel %vm644, %v523, 0
      %v700 = vsel %vm644, %v526, 0
      %v703 = vsel %vm644, %v529, 0
      %v706 = vsel %vm644, %v532, 0
      %v709 = vsel %vm644, %v535, 0
      %v712 = vsel %vm644, %v538, 0
      %v715 = vsel %vm644, %v541, 0
      %v718 = vsel %vm644, %v544, 0
      %v721 = vsel %vm644, %v547, 0
      %v724 = vsel %vm644, %v550, 0
      %v727 = vsel %vm644, %v553, 0
      %v730 = vsel %vm644, %v556, 0
      %v733 = vsel %vm644, %v559, 0
      %v736 = vsel %vm644, %v562, 0
      %v739 = vsel %vm644, %v565, 0
      %741 = vmatpush.xpose.msra.mxu0 %v739
      %742 = vmatpush.xpose.msra.mxu0 %v736
      %743 = vmatpush.xpose.msra.mxu0 %v733
      %744 = vmatpush.xpose.msra.mxu0 %v730
      %745 = vmatpush.xpose.msra.mxu0 %v727
      %746 = vmatpush.xpose.msra.mxu0 %v724
      %747 = vmatpush.xpose.msra.mxu0 %v721
      %748 = vmatpush.xpose.msra.mxu0 %v718
      %749 = vmatpush.xpose.msra.mxu0 %v715
      %750 = vmatpush.xpose.msra.mxu0 %v712
      %751 = vmatpush.xpose.msra.mxu0 %v709
      %752 = vmatpush.xpose.msra.mxu0 %v706
      %753 = vmatpush.xpose.msra.mxu0 %v703
      %754 = vmatpush.xpose.msra.mxu0 %v700
      %755 = vmatpush.xpose.msra.mxu0 %v697
      %756 = vmatpush.xpose.msra.mxu0 %v694
      %757 = vmatmul.f32.gmra.mxu0 %v646
      %v758 = vpop.f32.mrf.mxu0
      %v759 = vadd.f32 %v643, %v758
      %760 = vmatmul.f32.gmra.mxu0 %v649
      %v761 = vpop.f32.mrf.mxu0
      %v762 = vadd.f32 %v643, %v761
      %763 = vmatmul.f32.gmra.mxu0 %v652
      %v764 = vpop.f32.mrf.mxu0
      %v765 = vadd.f32 %v643, %v764
      %766 = vmatmul.f32.gmra.mxu0 %v655
      %v767 = vpop.f32.mrf.mxu0
      %v768 = vadd.f32 %v643, %v767
      %769 = vmatmul.f32.gmra.mxu0 %v658
      %v770 = vpop.f32.mrf.mxu0
      %v771 = vadd.f32 %v643, %v770
      %772 = vmatmul.f32.gmra.mxu0 %v661
      %v773 = vpop.f32.mrf.mxu0
      %v774 = vadd.f32 %v643, %v773
      %775 = vmatmul.f32.gmra.mxu0 %v664
      %v776 = vpop.f32.mrf.mxu0
      %v777 = vadd.f32 %v643, %v776
      %778 = vmatmul.f32.gmra.mxu0 %v667
      %v779 = vpop.f32.mrf.mxu0
      %v780 = vadd.f32 %v643, %v779
      %781 = vmatmul.f32.gmra.mxu0 %v670
      %v782 = vpop.f32.mrf.mxu0
      %v783 = vadd.f32 %v643, %v782
      %784 = vmatmul.f32.gmra.mxu0 %v673
      %v785 = vpop.f32.mrf.mxu0
      %v786 = vadd.f32 %v643, %v785
      %787 = vmatmul.f32.gmra.mxu0 %v676
      %v788 = vpop.f32.mrf.mxu0
      %v789 = vadd.f32 %v643, %v788
      %790 = vmatmul.f32.gmra.mxu0 %v679
      %v791 = vpop.f32.mrf.mxu0
      %v792 = vadd.f32 %v643, %v791
      %793 = vmatmul.f32.gmra.mxu0 %v682
      %v794 = vpop.f32.mrf.mxu0
      %v795 = vadd.f32 %v643, %v794
      %796 = vmatmul.f32.gmra.mxu0 %v685
      %v797 = vpop.f32.mrf.mxu0
      %v798 = vadd.f32 %v643, %v797
      %799 = vmatmul.f32.gmra.mxu0 %v688
      %v800 = vpop.f32.mrf.mxu0
      %v801 = vadd.f32 %v643, %v800
      %802 = vmatmul.f32.gmra.mxu0 %v691
      %v803 = vpop.f32.mrf.mxu0
      %v804 = vadd.f32 %v643, %v803
      %805 = vdwg.mxu0
      %806 = vmax.xlane.f32.xlu0 %v759
      %v807 = vpop.xlane.xlu0 %806
      %808 = vmax.xlane.f32.xlu0 %v762
      %v809 = vpop.xlane.xlu0 %808
      %810 = vmax.xlane.f32.xlu0 %v765
      %v811 = vpop.xlane.xlu0 %810
      %812 = vmax.xlane.f32.xlu0 %v768
      %v813 = vpop.xlane.xlu0 %812
      %814 = vmax.xlane.f32.xlu0 %v771
      %v815 = vpop.xlane.xlu0 %814
      %816 = vmax.xlane.f32.xlu0 %v774
      %v817 = vpop.xlane.xlu0 %816
      %818 = vmax.xlane.f32.xlu0 %v777
      %v819 = vpop.xlane.xlu0 %818
      %820 = vmax.xlane.f32.xlu0 %v780
      %v821 = vpop.xlane.xlu0 %820
      %822 = vmax.xlane.f32.xlu0 %v783
      %v823 = vpop.xlane.xlu0 %822
      %824 = vmax.xlane.f32.xlu0 %v786
      %v825 = vpop.xlane.xlu0 %824
      %826 = vmax.xlane.f32.xlu0 %v789
      %v827 = vpop.xlane.xlu0 %826
      %828 = vmax.xlane.f32.xlu0 %v792
      %v829 = vpop.xlane.xlu0 %828
      %830 = vmax.xlane.f32.xlu0 %v795
      %v831 = vpop.xlane.xlu0 %830
      %832 = vmax.xlane.f32.xlu0 %v798
      %v833 = vpop.xlane.xlu0 %832
      %834 = vmax.xlane.f32.xlu0 %v801
      %v835 = vpop.xlane.xlu0 %834
      %836 = vmax.xlane.f32.xlu0 %v804
      %v837 = vpop.xlane.xlu0 %836
      %v838 = vsub.f32 %v759, %v807
      %v839 = vsub.f32 %v762, %v809
      %v840 = vsub.f32 %v765, %v811
      %v841 = vsub.f32 %v768, %v813
      %v842 = vsub.f32 %v771, %v815
      %v843 = vsub.f32 %v774, %v817
      %v844 = vsub.f32 %v777, %v819
      %v845 = vsub.f32 %v780, %v821
      %v846 = vsub.f32 %v783, %v823
      %v847 = vsub.f32 %v786, %v825
      %v848 = vsub.f32 %v789, %v827
      %v849 = vsub.f32 %v792, %v829
      %v850 = vsub.f32 %v795, %v831
      %v851 = vsub.f32 %v798, %v833
      %v852 = vsub.f32 %v801, %v835
      %v853 = vsub.f32 %v804, %v837
      %v854 = vmul.f32 %v838, 1.442695
      %v855 = vpow.pop %v854
      %v856 = vmul.f32 %v839, 1.442695
      %v857 = vpow.pop %v856
      %v858 = vmul.f32 %v840, 1.442695
      %v859 = vpow.pop %v858
      %v860 = vmul.f32 %v841, 1.442695
      %v861 = vpow.pop %v860
      %v862 = vmul.f32 %v842, 1.442695
      %v863 = vpow.pop %v862
      %v864 = vmul.f32 %v843, 1.442695
      %v865 = vpow.pop %v864
      %v866 = vmul.f32 %v844, 1.442695
      %v867 = vpow.pop %v866
      %v868 = vmul.f32 %v845, 1.442695
      %v869 = vpow.pop %v868
      %v870 = vmul.f32 %v846, 1.442695
      %v871 = vpow.pop %v870
      %v872 = vmul.f32 %v847, 1.442695
      %v873 = vpow.pop %v872
      %v874 = vmul.f32 %v848, 1.442695
      %v875 = vpow.pop %v874
      %v876 = vmul.f32 %v849, 1.442695
      %v877 = vpow.pop %v876
      %v878 = vmul.f32 %v850, 1.442695
      %v879 = vpow.pop %v878
      %v880 = vmul.f32 %v851, 1.442695
      %v881 = vpow.pop %v880
      %v882 = vmul.f32 %v852, 1.442695
      %v883 = vpow.pop %v882
      %v884 = vmul.f32 %v853, 1.442695
      %v885 = vpow.pop %v884
      %886 = vadd.xlane.f32.xlu0 %v855
      %v887 = vpop.xlane.xlu0 %886
      %888 = vadd.xlane.f32.xlu0 %v857
      %v889 = vpop.xlane.xlu0 %888
      %890 = vadd.xlane.f32.xlu0 %v859
      %v891 = vpop.xlane.xlu0 %890
      %892 = vadd.xlane.f32.xlu0 %v861
      %v893 = vpop.xlane.xlu0 %892
      %894 = vadd.xlane.f32.xlu0 %v863
      %v895 = vpop.xlane.xlu0 %894
      %896 = vadd.xlane.f32.xlu0 %v865
      %v897 = vpop.xlane.xlu0 %896
      %898 = vadd.xlane.f32.xlu0 %v867
      %v899 = vpop.xlane.xlu0 %898
      %900 = vadd.xlane.f32.xlu0 %v869
      %v901 = vpop.xlane.xlu0 %900
      %902 = vadd.xlane.f32.xlu0 %v871
      %v903 = vpop.xlane.xlu0 %902
      %904 = vadd.xlane.f32.xlu0 %v873
      %v905 = vpop.xlane.xlu0 %904
      %906 = vadd.xlane.f32.xlu0 %v875
      %v907 = vpop.xlane.xlu0 %906
      %908 = vadd.xlane.f32.xlu0 %v877
      %v909 = vpop.xlane.xlu0 %908
      %910 = vadd.xlane.f32.xlu0 %v879
      %v911 = vpop.xlane.xlu0 %910
      %912 = vadd.xlane.f32.xlu0 %v881
      %v913 = vpop.xlane.xlu0 %912
      %914 = vadd.xlane.f32.xlu0 %v883
      %v915 = vpop.xlane.xlu0 %914
      %916 = vadd.xlane.f32.xlu0 %v885
      %v917 = vpop.xlane.xlu0 %916
      %v918 = vrcp.pop %v887
      %v919 = vmul.f32 %v887, %v918
      %v920 = vsub.f32 1.0, %v919
      %v921 = vmul.f32 %v918, %v920
      %v922 = vadd.f32 %v918, %v921
      %vm923 = vweird.f32 %v887
      %vm924 = vweird.f32 %v918
      %vm925 = vmor %vm923, %vm924
      %v926 = vsel %vm925, %v918, %v922
      %v927 = vand.u32 2147483647, %v887
      %vm928 = vcmp.eq.f32.partialorder %v927, 8.507059e+37
      %v929 = vand.u32 %v887, 2147483648
      %v930 = vor.u32 1.1754944e-38, %v929
      %v931 = vsel %vm928, %v930, %v926
      %v932 = vmul.f32 %v855, %v931
      %v933 = vrcp.pop %v889
      %v934 = vmul.f32 %v889, %v933
      %v935 = vsub.f32 1.0, %v934
      %v936 = vmul.f32 %v933, %v935
      %v937 = vadd.f32 %v933, %v936
      %vm938 = vweird.f32 %v889
      %vm939 = vweird.f32 %v933
      %vm940 = vmor %vm938, %vm939
      %v941 = vsel %vm940, %v933, %v937
      %v942 = vand.u32 2147483647, %v889
      %vm943 = vcmp.eq.f32.partialorder %v942, 8.507059e+37
      %v944 = vand.u32 %v889, 2147483648
      %v945 = vor.u32 1.1754944e-38, %v944
      %v946 = vsel %vm943, %v945, %v941
      %v947 = vmul.f32 %v857, %v946
      %v948 = vrcp.pop %v891
      %v949 = vmul.f32 %v891, %v948
      %v950 = vsub.f32 1.0, %v949
      %v951 = vmul.f32 %v948, %v950
      %v952 = vadd.f32 %v948, %v951
      %vm953 = vweird.f32 %v891
      %vm954 = vweird.f32 %v948
      %vm955 = vmor %vm953, %vm954
      %v956 = vsel %vm955, %v948, %v952
      %v957 = vand.u32 2147483647, %v891
      %vm958 = vcmp.eq.f32.partialorder %v957, 8.507059e+37
      %v959 = vand.u32 %v891, 2147483648
      %v960 = vor.u32 1.1754944e-38, %v959
      %v961 = vsel %vm958, %v960, %v956
      %v962 = vmul.f32 %v859, %v961
      %v963 = vrcp.pop %v893
      %v964 = vmul.f32 %v893, %v963
      %v965 = vsub.f32 1.0, %v964
      %v966 = vmul.f32 %v963, %v965
      %v967 = vadd.f32 %v963, %v966
      %vm968 = vweird.f32 %v893
      %vm969 = vweird.f32 %v963
      %vm970 = vmor %vm968, %vm969
      %v971 = vsel %vm970, %v963, %v967
      %v972 = vand.u32 2147483647, %v893
      %vm973 = vcmp.eq.f32.partialorder %v972, 8.507059e+37
      %v974 = vand.u32 %v893, 2147483648
      %v975 = vor.u32 1.1754944e-38, %v974
      %v976 = vsel %vm973, %v975, %v971
      %v977 = vmul.f32 %v861, %v976
      %v978 = vrcp.pop %v895
      %v979 = vmul.f32 %v895, %v978
      %v980 = vsub.f32 1.0, %v979
      %v981 = vmul.f32 %v978, %v980
      %v982 = vadd.f32 %v978, %v981
      %vm983 = vweird.f32 %v895
      %vm984 = vweird.f32 %v978
      %vm985 = vmor %vm983, %vm984
      %v986 = vsel %vm985, %v978, %v982
      %v987 = vand.u32 2147483647, %v895
      %vm988 = vcmp.eq.f32.partialorder %v987, 8.507059e+37
      %v989 = vand.u32 %v895, 2147483648
      %v990 = vor.u32 1.1754944e-38, %v989
      %v991 = vsel %vm988, %v990, %v986
      %v992 = vmul.f32 %v863, %v991
      %v993 = vrcp.pop %v897
      %v994 = vmul.f32 %v897, %v993
      %v995 = vsub.f32 1.0, %v994
      %v996 = vmul.f32 %v993, %v995
      %v997 = vadd.f32 %v993, %v996
      %vm998 = vweird.f32 %v897
      %vm999 = vweird.f32 %v993
      %vm1000 = vmor %vm998, %vm999
      %v1001 = vsel %vm1000, %v993, %v997
      %v1002 = vand.u32 2147483647, %v897
      %vm1003 = vcmp.eq.f32.partialorder %v1002, 8.507059e+37
      %v1004 = vand.u32 %v897, 2147483648
      %v1005 = vor.u32 1.1754944e-38, %v1004
      %v1006 = vsel %vm1003, %v1005, %v1001
      %v1007 = vmul.f32 %v865, %v1006
      %v1008 = vrcp.pop %v899
      %v1009 = vmul.f32 %v899, %v1008
      %v1010 = vsub.f32 1.0, %v1009
      %v1011 = vmul.f32 %v1008, %v1010
      %v1012 = vadd.f32 %v1008, %v1011
      %vm1013 = vweird.f32 %v899
      %vm1014 = vweird.f32 %v1008
      %vm1015 = vmor %vm1013, %vm1014
      %v1016 = vsel %vm1015, %v1008, %v1012
      %v1017 = vand.u32 2147483647, %v899
      %vm1018 = vcmp.eq.f32.partialorder %v1017, 8.507059e+37
      %v1019 = vand.u32 %v899, 2147483648
      %v1020 = vor.u32 1.1754944e-38, %v1019
      %v1021 = vsel %vm1018, %v1020, %v1016
      %v1022 = vmul.f32 %v867, %v1021
      %v1023 = vrcp.pop %v901
      %v1024 = vmul.f32 %v901, %v1023
      %v1025 = vsub.f32 1.0, %v1024
      %v1026 = vmul.f32 %v1023, %v1025
      %v1027 = vadd.f32 %v1023, %v1026
      %vm1028 = vweird.f32 %v901
      %vm1029 = vweird.f32 %v1023
      %vm1030 = vmor %vm1028, %vm1029
      %v1031 = vsel %vm1030, %v1023, %v1027
      %v1032 = vand.u32 2147483647, %v901
      %vm1033 = vcmp.eq.f32.partialorder %v1032, 8.507059e+37
      %v1034 = vand.u32 %v901, 2147483648
      %v1035 = vor.u32 1.1754944e-38, %v1034
      %v1036 = vsel %vm1033, %v1035, %v1031
      %v1037 = vmul.f32 %v869, %v1036
      %v1038 = vrcp.pop %v903
      %v1039 = vmul.f32 %v903, %v1038
      %v1040 = vsub.f32 1.0, %v1039
      %v1041 = vmul.f32 %v1038, %v1040
      %v1042 = vadd.f32 %v1038, %v1041
      %vm1043 = vweird.f32 %v903
      %vm1044 = vweird.f32 %v1038
      %vm1045 = vmor %vm1043, %vm1044
      %v1046 = vsel %vm1045, %v1038, %v1042
      %v1047 = vand.u32 2147483647, %v903
      %vm1048 = vcmp.eq.f32.partialorder %v1047, 8.507059e+37
      %v1049 = vand.u32 %v903, 2147483648
      %v1050 = vor.u32 1.1754944e-38, %v1049
      %v1051 = vsel %vm1048, %v1050, %v1046
      %v1052 = vmul.f32 %v871, %v1051
      %v1053 = vrcp.pop %v905
      %v1054 = vmul.f32 %v905, %v1053
      %v1055 = vsub.f32 1.0, %v1054
      %v1056 = vmul.f32 %v1053, %v1055
      %v1057 = vadd.f32 %v1053, %v1056
      %vm1058 = vweird.f32 %v905
      %vm1059 = vweird.f32 %v1053
      %vm1060 = vmor %vm1058, %vm1059
      %v1061 = vsel %vm1060, %v1053, %v1057
      %v1062 = vand.u32 2147483647, %v905
      %vm1063 = vcmp.eq.f32.partialorder %v1062, 8.507059e+37
      %v1064 = vand.u32 %v905, 2147483648
      %v1065 = vor.u32 1.1754944e-38, %v1064
      %v1066 = vsel %vm1063, %v1065, %v1061
      %v1067 = vmul.f32 %v873, %v1066
      %v1068 = vrcp.pop %v907
      %v1069 = vmul.f32 %v907, %v1068
      %v1070 = vsub.f32 1.0, %v1069
      %v1071 = vmul.f32 %v1068, %v1070
      %v1072 = vadd.f32 %v1068, %v1071
      %vm1073 = vweird.f32 %v907
      %vm1074 = vweird.f32 %v1068
      %vm1075 = vmor %vm1073, %vm1074
      %v1076 = vsel %vm1075, %v1068, %v1072
      %v1077 = vand.u32 2147483647, %v907
      %vm1078 = vcmp.eq.f32.partialorder %v1077, 8.507059e+37
      %v1079 = vand.u32 %v907, 2147483648
      %v1080 = vor.u32 1.1754944e-38, %v1079
      %v1081 = vsel %vm1078, %v1080, %v1076
      %v1082 = vmul.f32 %v875, %v1081
      %v1083 = vrcp.pop %v909
      %v1084 = vmul.f32 %v909, %v1083
      %v1085 = vsub.f32 1.0, %v1084
      %v1086 = vmul.f32 %v1083, %v1085
      %v1087 = vadd.f32 %v1083, %v1086
      %vm1088 = vweird.f32 %v909
      %vm1089 = vweird.f32 %v1083
      %vm1090 = vmor %vm1088, %vm1089
      %v1091 = vsel %vm1090, %v1083, %v1087
      %v1092 = vand.u32 2147483647, %v909
      %vm1093 = vcmp.eq.f32.partialorder %v1092, 8.507059e+37
      %v1094 = vand.u32 %v909, 2147483648
      %v1095 = vor.u32 1.1754944e-38, %v1094
      %v1096 = vsel %vm1093, %v1095, %v1091
      %v1097 = vmul.f32 %v877, %v1096
      %v1098 = vrcp.pop %v911
      %v1099 = vmul.f32 %v911, %v1098
      %v1100 = vsub.f32 1.0, %v1099
      %v1101 = vmul.f32 %v1098, %v1100
      %v1102 = vadd.f32 %v1098, %v1101
      %vm1103 = vweird.f32 %v911
      %vm1104 = vweird.f32 %v1098
      %vm1105 = vmor %vm1103, %vm1104
      %v1106 = vsel %vm1105, %v1098, %v1102
      %v1107 = vand.u32 2147483647, %v911
      %vm1108 = vcmp.eq.f32.partialorder %v1107, 8.507059e+37
      %v1109 = vand.u32 %v911, 2147483648
      %v1110 = vor.u32 1.1754944e-38, %v1109
      %v1111 = vsel %vm1108, %v1110, %v1106
      %v1112 = vmul.f32 %v879, %v1111
      %v1113 = vrcp.pop %v913
      %v1114 = vmul.f32 %v913, %v1113
      %v1115 = vsub.f32 1.0, %v1114
      %v1116 = vmul.f32 %v1113, %v1115
      %v1117 = vadd.f32 %v1113, %v1116
      %vm1118 = vweird.f32 %v913
      %vm1119 = vweird.f32 %v1113
      %vm1120 = vmor %vm1118, %vm1119
      %v1121 = vsel %vm1120, %v1113, %v1117
      %v1122 = vand.u32 2147483647, %v913
      %vm1123 = vcmp.eq.f32.partialorder %v1122, 8.507059e+37
      %v1124 = vand.u32 %v913, 2147483648
      %v1125 = vor.u32 1.1754944e-38, %v1124
      %v1126 = vsel %vm1123, %v1125, %v1121
      %v1127 = vmul.f32 %v881, %v1126
      %v1128 = vrcp.pop %v915
      %v1129 = vmul.f32 %v915, %v1128
      %v1130 = vsub.f32 1.0, %v1129
      %v1131 = vmul.f32 %v1128, %v1130
      %v1132 = vadd.f32 %v1128, %v1131
      %vm1133 = vweird.f32 %v915
      %vm1134 = vweird.f32 %v1128
      %vm1135 = vmor %vm1133, %vm1134
      %v1136 = vsel %vm1135, %v1128, %v1132
      %v1137 = vand.u32 2147483647, %v915
      %vm1138 = vcmp.eq.f32.partialorder %v1137, 8.507059e+37
      %v1139 = vand.u32 %v915, 2147483648
      %v1140 = vor.u32 1.1754944e-38, %v1139
      %v1141 = vsel %vm1138, %v1140, %v1136
      %v1142 = vmul.f32 %v883, %v1141
      %v1143 = vrcp.pop %v917
      %v1144 = vmul.f32 %v917, %v1143
      %v1145 = vsub.f32 1.0, %v1144
      %v1146 = vmul.f32 %v1143, %v1145
      %v1147 = vadd.f32 %v1143, %v1146
      %vm1148 = vweird.f32 %v917
      %vm1149 = vweird.f32 %v1143
      %vm1150 = vmor %vm1148, %vm1149
      %v1151 = vsel %vm1150, %v1143, %v1147
      %v1152 = vand.u32 2147483647, %v917
      %vm1153 = vcmp.eq.f32.partialorder %v1152, 8.507059e+37
      %v1154 = vand.u32 %v917, 2147483648
      %v1155 = vor.u32 1.1754944e-38, %v1154
      %v1156 = vsel %vm1153, %v1155, %v1151
      %v1157 = vmul.f32 %v885, %v1156
      %1158 = vmatpush.msra.mxu0 %v638
      %1159 = vmatpush.msra.mxu0 %v635
      %1160 = vmatpush.msra.mxu0 %v632
      %1161 = vmatpush.msra.mxu0 %v629
      %1162 = vmatpush.msra.mxu0 %v626
      %1163 = vmatpush.msra.mxu0 %v623
      %1164 = vmatpush.msra.mxu0 %v620
      %1165 = vmatpush.msra.mxu0 %v617
      %1166 = vmatpush.msra.mxu0 %v614
      %1167 = vmatpush.msra.mxu0 %v611
      %1168 = vmatpush.msra.mxu0 %v608
      %1169 = vmatpush.msra.mxu0 %v605
      %1170 = vmatpush.msra.mxu0 %v602
      %1171 = vmatpush.msra.mxu0 %v599
      %1172 = vmatpush.msra.mxu0 %v596
      %1173 = vmatpush.msra.mxu0 %v593
      %1174 = vmatmul.f32.gmra.mxu0 %v932
      %v1175 = vpop.f32.mrf.mxu0
      %v1176 = vadd.f32 0.0, %v1175
      %1177 = vmatmul.f32.gmra.mxu0 %v947
      %v1178 = vpop.f32.mrf.mxu0
      %v1179 = vadd.f32 0.0, %v1178
      %1180 = vmatmul.f32.gmra.mxu0 %v962
      %v1181 = vpop.f32.mrf.mxu0
      %v1182 = vadd.f32 0.0, %v1181
      %1183 = vmatmul.f32.gmra.mxu0 %v977
      %v1184 = vpop.f32.mrf.mxu0
      %v1185 = vadd.f32 0.0, %v1184
      %1186 = vmatmul.f32.gmra.mxu0 %v992
      %v1187 = vpop.f32.mrf.mxu0
      %v1188 = vadd.f32 0.0, %v1187
      %1189 = vmatmul.f32.gmra.mxu0 %v1007
      %v1190 = vpop.f32.mrf.mxu0
      %v1191 = vadd.f32 0.0, %v1190
      %1192 = vmatmul.f32.gmra.mxu0 %v1022
      %v1193 = vpop.f32.mrf.mxu0
      %v1194 = vadd.f32 0.0, %v1193
      %1195 = vmatmul.f32.gmra.mxu0 %v1037
      %v1196 = vpop.f32.mrf.mxu0
      %v1197 = vadd.f32 0.0, %v1196
      %1198 = vmatmul.f32.gmra.mxu0 %v1052
      %v1199 = vpop.f32.mrf.mxu0
      %v1200 = vadd.f32 0.0, %v1199
      %1201 = vmatmul.f32.gmra.mxu0 %v1067
      %v1202 = vpop.f32.mrf.mxu0
      %v1203 = vadd.f32 0.0, %v1202
      %1204 = vmatmul.f32.gmra.mxu0 %v1082
      %v1205 = vpop.f32.mrf.mxu0
      %v1206 = vadd.f32 0.0, %v1205
      %1207 = vmatmul.f32.gmra.mxu0 %v1097
      %v1208 = vpop.f32.mrf.mxu0
      %v1209 = vadd.f32 0.0, %v1208
      %1210 = vmatmul.f32.gmra.mxu0 %v1112
      %v1211 = vpop.f32.mrf.mxu0
      %v1212 = vadd.f32 0.0, %v1211
      %1213 = vmatmul.f32.gmra.mxu0 %v1127
      %v1214 = vpop.f32.mrf.mxu0
      %v1215 = vadd.f32 0.0, %v1214
      %1216 = vmatmul.f32.gmra.mxu0 %v1142
      %v1217 = vpop.f32.mrf.mxu0
      %v1218 = vadd.f32 0.0, %v1217
      %1219 = vmatmul.f32.gmra.mxu0 %v1157
      %v1220 = vpop.f32.mrf.mxu0
      %v1221 = vadd.f32 0.0, %v1220
      %1222 = vdwg.mxu0
      %1223 = vrot.lane.b32.xlu0 %v447, 120
      %v1224 = vpop.permute.xlu0 %1223
      %1225 = vrot.lane.b32.xlu0 %v450, 120
      %v1226 = vpop.permute.xlu0 %1225
      %1227 = vrot.lane.b32.xlu0 %v453, 120
      %v1228 = vpop.permute.xlu0 %1227
      %1229 = vrot.lane.b32.xlu0 %v456, 120
      %v1230 = vpop.permute.xlu0 %1229
      %1231 = vrot.lane.b32.xlu0 %v459, 120
      %v1232 = vpop.permute.xlu0 %1231
      %1233 = vrot.lane.b32.xlu0 %v462, 120
      %v1234 = vpop.permute.xlu0 %1233
      %1235 = vrot.lane.b32.xlu0 %v465, 120
      %v1236 = vpop.permute.xlu0 %1235
      %1237 = vrot.lane.b32.xlu0 %v468, 120
      %v1238 = vpop.permute.xlu0 %1237
      %1239 = vrot.lane.b32.xlu0 %v471, 120
      %v1240 = vpop.permute.xlu0 %1239
      %1241 = vrot.lane.b32.xlu0 %v474, 120
      %v1242 = vpop.permute.xlu0 %1241
      %1243 = vrot.lane.b32.xlu0 %v477, 120
      %v1244 = vpop.permute.xlu0 %1243
      %1245 = vrot.lane.b32.xlu0 %v480, 120
      %v1246 = vpop.permute.xlu0 %1245
      %1247 = vrot.lane.b32.xlu0 %v483, 120
      %v1248 = vpop.permute.xlu0 %1247
      %1249 = vrot.lane.b32.xlu0 %v486, 120
      %v1250 = vpop.permute.xlu0 %1249
      %1251 = vrot.lane.b32.xlu0 %v489, 120
      %v1252 = vpop.permute.xlu0 %1251
      %1253 = vrot.lane.b32.xlu0 %v492, 120
      %v1254 = vpop.permute.xlu0 %1253
      %1255 = vrot.lane.b32.xlu0 %v520, 120
      %v1256 = vpop.permute.xlu0 %1255
      %1257 = vrot.lane.b32.xlu0 %v523, 120
      %v1258 = vpop.permute.xlu0 %1257
      %1259 = vrot.lane.b32.xlu0 %v526, 120
      %v1260 = vpop.permute.xlu0 %1259
      %1261 = vrot.lane.b32.xlu0 %v529, 120
      %v1262 = vpop.permute.xlu0 %1261
      %1263 = vrot.lane.b32.xlu0 %v532, 120
      %v1264 = vpop.permute.xlu0 %1263
      %1265 = vrot.lane.b32.xlu0 %v535, 120
      %v1266 = vpop.permute.xlu0 %1265
      %1267 = vrot.lane.b32.xlu0 %v538, 120
      %v1268 = vpop.permute.xlu0 %1267
      %1269 = vrot.lane.b32.xlu0 %v541, 120
      %v1270 = vpop.permute.xlu0 %1269
      %1271 = vrot.lane.b32.xlu0 %v544, 120
      %v1272 = vpop.permute.xlu0 %1271
      %1273 = vrot.lane.b32.xlu0 %v547, 120
      %v1274 = vpop.permute.xlu0 %1273
      %1275 = vrot.lane.b32.xlu0 %v550, 120
      %v1276 = vpop.permute.xlu0 %1275
      %1277 = vrot.lane.b32.xlu0 %v553, 120
      %v1278 = vpop.permute.xlu0 %1277
      %1279 = vrot.lane.b32.xlu0 %v556, 120
      %v1280 = vpop.permute.xlu0 %1279
      %1281 = vrot.lane.b32.xlu0 %v559, 120
      %v1282 = vpop.permute.xlu0 %1281
      %1283 = vrot.lane.b32.xlu0 %v562, 120
      %v1284 = vpop.permute.xlu0 %1283
      %1285 = vrot.lane.b32.xlu0 %v565, 120
      %v1286 = vpop.permute.xlu0 %1285
      %v1287 = vsel %vm644, %v1224, 0
      %v1289 = vsel %vm644, %v1226, 0
      %v1291 = vsel %vm644, %v1228, 0
      %v1293 = vsel %vm644, %v1230, 0
      %v1295 = vsel %vm644, %v1232, 0
      %v1297 = vsel %vm644, %v1234, 0
      %v1299 = vsel %vm644, %v1236, 0
      %v1301 = vsel %vm644, %v1238, 0
      %v1303 = vsel %vm644, %v1240, 0
      %v1305 = vsel %vm644, %v1242, 0
      %v1307 = vsel %vm644, %v1244, 0
      %v1309 = vsel %vm644, %v1246, 0
      %v1311 = vsel %vm644, %v1248, 0
      %v1313 = vsel %vm644, %v1250, 0
      %v1315 = vsel %vm644, %v1252, 0
      %v1317 = vsel %vm644, %v1254, 0
      %v1319 = vsel %vm644, %v1256, 0
      %v1321 = vsel %vm644, %v1258, 0
      %v1323 = vsel %vm644, %v1260, 0
      %v1325 = vsel %vm644, %v1262, 0
      %v1327 = vsel %vm644, %v1264, 0
      %v1329 = vsel %vm644, %v1266, 0
      %v1331 = vsel %vm644, %v1268, 0
      %v1333 = vsel %vm644, %v1270, 0
      %v1335 = vsel %vm644, %v1272, 0
      %v1337 = vsel %vm644, %v1274, 0
      %v1339 = vsel %vm644, %v1276, 0
      %v1341 = vsel %vm644, %v1278, 0
      %v1343 = vsel %vm644, %v1280, 0
      %v1345 = vsel %vm644, %v1282, 0
      %v1347 = vsel %vm644, %v1284, 0
      %v1349 = vsel %vm644, %v1286, 0
      %1351 = vmatpush.xpose.msra.mxu0 %v1349
      %1352 = vmatpush.xpose.msra.mxu0 %v1347
      %1353 = vmatpush.xpose.msra.mxu0 %v1345
      %1354 = vmatpush.xpose.msra.mxu0 %v1343
      %1355 = vmatpush.xpose.msra.mxu0 %v1341
      %1356 = vmatpush.xpose.msra.mxu0 %v1339
      %1357 = vmatpush.xpose.msra.mxu0 %v1337
      %1358 = vmatpush.xpose.msra.mxu0 %v1335
      %1359 = vmatpush.xpose.msra.mxu0 %v1333
      %1360 = vmatpush.xpose.msra.mxu0 %v1331
      %1361 = vmatpush.xpose.msra.mxu0 %v1329
      %1362 = vmatpush.xpose.msra.mxu0 %v1327
      %1363 = vmatpush.xpose.msra.mxu0 %v1325
      %1364 = vmatpush.xpose.msra.mxu0 %v1323
      %1365 = vmatpush.xpose.msra.mxu0 %v1321
      %1366 = vmatpush.xpose.msra.mxu0 %v1319
      %1367 = vmatmul.f32.gmra.mxu0 %v1287
      %v1368 = vpop.f32.mrf.mxu0
      %v1369 = vadd.f32 %v643, %v1368
      %1370 = vmatmul.f32.gmra.mxu0 %v1289
      %v1371 = vpop.f32.mrf.mxu0
      %v1372 = vadd.f32 %v643, %v1371
      %1373 = vmatmul.f32.gmra.mxu0 %v1291
      %v1374 = vpop.f32.mrf.mxu0
      %v1375 = vadd.f32 %v643, %v1374
      %1376 = vmatmul.f32.gmra.mxu0 %v1293
      %v1377 = vpop.f32.mrf.mxu0
      %v1378 = vadd.f32 %v643, %v1377
      %1379 = vmatmul.f32.gmra.mxu0 %v1295
      %v1380 = vpop.f32.mrf.mxu0
      %v1381 = vadd.f32 %v643, %v1380
      %1382 = vmatmul.f32.gmra.mxu0 %v1297
      %v1383 = vpop.f32.mrf.mxu0
      %v1384 = vadd.f32 %v643, %v1383
      %1385 = vmatmul.f32.gmra.mxu0 %v1299
      %v1386 = vpop.f32.mrf.mxu0
      %v1387 = vadd.f32 %v643, %v1386
      %1388 = vmatmul.f32.gmra.mxu0 %v1301
      %v1389 = vpop.f32.mrf.mxu0
      %v1390 = vadd.f32 %v643, %v1389
      %1391 = vmatmul.f32.gmra.mxu0 %v1303
      %v1392 = vpop.f32.mrf.mxu0
      %v1393 = vadd.f32 %v643, %v1392
      %1394 = vmatmul.f32.gmra.mxu0 %v1305
      %v1395 = vpop.f32.mrf.mxu0
      %v1396 = vadd.f32 %v643, %v1395
      %1397 = vmatmul.f32.gmra.mxu0 %v1307
      %v1398 = vpop.f32.mrf.mxu0
      %v1399 = vadd.f32 %v643, %v1398
      %1400 = vmatmul.f32.gmra.mxu0 %v1309
      %v1401 = vpop.f32.mrf.mxu0
      %v1402 = vadd.f32 %v643, %v1401
      %1403 = vmatmul.f32.gmra.mxu0 %v1311
      %v1404 = vpop.f32.mrf.mxu0
      %v1405 = vadd.f32 %v643, %v1404
      %1406 = vmatmul.f32.gmra.mxu0 %v1313
      %v1407 = vpop.f32.mrf.mxu0
      %v1408 = vadd.f32 %v643, %v1407
      %1409 = vmatmul.f32.gmra.mxu0 %v1315
      %v1410 = vpop.f32.mrf.mxu0
      %v1411 = vadd.f32 %v643, %v1410
      %1412 = vmatmul.f32.gmra.mxu0 %v1317
      %v1413 = vpop.f32.mrf.mxu0
      %v1414 = vadd.f32 %v643, %v1413
      %1415 = vdwg.mxu0
      %1416 = vmax.xlane.f32.xlu0 %v1369
      %v1417 = vpop.xlane.xlu0 %1416
      %1418 = vmax.xlane.f32.xlu0 %v1372
      %v1419 = vpop.xlane.xlu0 %1418
      %1420 = vmax.xlane.f32.xlu0 %v1375
      %v1421 = vpop.xlane.xlu0 %1420
      %1422 = vmax.xlane.f32.xlu0 %v1378
      %v1423 = vpop.xlane.xlu0 %1422
      %1424 = vmax.xlane.f32.xlu0 %v1381
      %v1425 = vpop.xlane.xlu0 %1424
      %1426 = vmax.xlane.f32.xlu0 %v1384
      %v1427 = vpop.xlane.xlu0 %1426
      %1428 = vmax.xlane.f32.xlu0 %v1387
      %v1429 = vpop.xlane.xlu0 %1428
      %1430 = vmax.xlane.f32.xlu0 %v1390
      %v1431 = vpop.xlane.xlu0 %1430
      %1432 = vmax.xlane.f32.xlu0 %v1393
      %v1433 = vpop.xlane.xlu0 %1432
      %1434 = vmax.xlane.f32.xlu0 %v1396
      %v1435 = vpop.xlane.xlu0 %1434
      %1436 = vmax.xlane.f32.xlu0 %v1399
      %v1437 = vpop.xlane.xlu0 %1436
      %1438 = vmax.xlane.f32.xlu0 %v1402
      %v1439 = vpop.xlane.xlu0 %1438
      %1440 = vmax.xlane.f32.xlu0 %v1405
      %v1441 = vpop.xlane.xlu0 %1440
      %1442 = vmax.xlane.f32.xlu0 %v1408
      %v1443 = vpop.xlane.xlu0 %1442
      %1444 = vmax.xlane.f32.xlu0 %v1411
      %v1445 = vpop.xlane.xlu0 %1444
      %1446 = vmax.xlane.f32.xlu0 %v1414
      %v1447 = vpop.xlane.xlu0 %1446
      %v1448 = vsub.f32 %v1369, %v1417
      %v1449 = vsub.f32 %v1372, %v1419
      %v1450 = vsub.f32 %v1375, %v1421
      %v1451 = vsub.f32 %v1378, %v1423
      %v1452 = vsub.f32 %v1381, %v1425
      %v1453 = vsub.f32 %v1384, %v1427
      %v1454 = vsub.f32 %v1387, %v1429
      %v1455 = vsub.f32 %v1390, %v1431
      %v1456 = vsub.f32 %v1393, %v1433
      %v1457 = vsub.f32 %v1396, %v1435
      %v1458 = vsub.f32 %v1399, %v1437
      %v1459 = vsub.f32 %v1402, %v1439
      %v1460 = vsub.f32 %v1405, %v1441
      %v1461 = vsub.f32 %v1408, %v1443
      %v1462 = vsub.f32 %v1411, %v1445
      %v1463 = vsub.f32 %v1414, %v1447
      %v1464 = vmul.f32 %v1448, 1.442695
      %v1465 = vpow.pop %v1464
      %v1466 = vmul.f32 %v1449, 1.442695
      %v1467 = vpow.pop %v1466
      %v1468 = vmul.f32 %v1450, 1.442695
      %v1469 = vpow.pop %v1468
      %v1470 = vmul.f32 %v1451, 1.442695
      %v1471 = vpow.pop %v1470
      %v1472 = vmul.f32 %v1452, 1.442695
      %v1473 = vpow.pop %v1472
      %v1474 = vmul.f32 %v1453, 1.442695
      %v1475 = vpow.pop %v1474
      %v1476 = vmul.f32 %v1454, 1.442695
      %v1477 = vpow.pop %v1476
      %v1478 = vmul.f32 %v1455, 1.442695
      %v1479 = vpow.pop %v1478
      %v1480 = vmul.f32 %v1456, 1.442695
      %v1481 = vpow.pop %v1480
      %v1482 = vmul.f32 %v1457, 1.442695
      %v1483 = vpow.pop %v1482
      %v1484 = vmul.f32 %v1458, 1.442695
      %v1485 = vpow.pop %v1484
      %v1486 = vmul.f32 %v1459, 1.442695
      %v1487 = vpow.pop %v1486
      %v1488 = vmul.f32 %v1460, 1.442695
      %v1489 = vpow.pop %v1488
      %v1490 = vmul.f32 %v1461, 1.442695
      %v1491 = vpow.pop %v1490
      %v1492 = vmul.f32 %v1462, 1.442695
      %v1493 = vpow.pop %v1492
      %v1494 = vmul.f32 %v1463, 1.442695
      %v1495 = vpow.pop %v1494
      %1496 = vadd.xlane.f32.xlu0 %v1465
      %v1497 = vpop.xlane.xlu0 %1496
      %1498 = vadd.xlane.f32.xlu0 %v1467
      %v1499 = vpop.xlane.xlu0 %1498
      %1500 = vadd.xlane.f32.xlu0 %v1469
      %v1501 = vpop.xlane.xlu0 %1500
      %1502 = vadd.xlane.f32.xlu0 %v1471
      %v1503 = vpop.xlane.xlu0 %1502
      %1504 = vadd.xlane.f32.xlu0 %v1473
      %v1505 = vpop.xlane.xlu0 %1504
      %1506 = vadd.xlane.f32.xlu0 %v1475
      %v1507 = vpop.xlane.xlu0 %1506
      %1508 = vadd.xlane.f32.xlu0 %v1477
      %v1509 = vpop.xlane.xlu0 %1508
      %1510 = vadd.xlane.f32.xlu0 %v1479
      %v1511 = vpop.xlane.xlu0 %1510
      %1512 = vadd.xlane.f32.xlu0 %v1481
      %v1513 = vpop.xlane.xlu0 %1512
      %1514 = vadd.xlane.f32.xlu0 %v1483
      %v1515 = vpop.xlane.xlu0 %1514
      %1516 = vadd.xlane.f32.xlu0 %v1485
      %v1517 = vpop.xlane.xlu0 %1516
      %1518 = vadd.xlane.f32.xlu0 %v1487
      %v1519 = vpop.xlane.xlu0 %1518
      %1520 = vadd.xlane.f32.xlu0 %v1489
      %v1521 = vpop.xlane.xlu0 %1520
      %1522 = vadd.xlane.f32.xlu0 %v1491
      %v1523 = vpop.xlane.xlu0 %1522
      %1524 = vadd.xlane.f32.xlu0 %v1493
      %v1525 = vpop.xlane.xlu0 %1524
      %1526 = vadd.xlane.f32.xlu0 %v1495
      %v1527 = vpop.xlane.xlu0 %1526
      %v1528 = vrcp.pop %v1497
      %v1529 = vmul.f32 %v1497, %v1528
      %v1530 = vsub.f32 1.0, %v1529
      %v1531 = vmul.f32 %v1528, %v1530
      %v1532 = vadd.f32 %v1528, %v1531
      %vm1533 = vweird.f32 %v1497
      %vm1534 = vweird.f32 %v1528
      %vm1535 = vmor %vm1533, %vm1534
      %v1536 = vsel %vm1535, %v1528, %v1532
      %v1537 = vand.u32 2147483647, %v1497
      %vm1538 = vcmp.eq.f32.partialorder %v1537, 8.507059e+37
      %v1539 = vand.u32 %v1497, 2147483648
      %v1540 = vor.u32 1.1754944e-38, %v1539
      %v1541 = vsel %vm1538, %v1540, %v1536
      %v1542 = vmul.f32 %v1465, %v1541
      %v1543 = vrcp.pop %v1499
      %v1544 = vmul.f32 %v1499, %v1543
      %v1545 = vsub.f32 1.0, %v1544
      %v1546 = vmul.f32 %v1543, %v1545
      %v1547 = vadd.f32 %v1543, %v1546
      %vm1548 = vweird.f32 %v1499
      %vm1549 = vweird.f32 %v1543
      %vm1550 = vmor %vm1548, %vm1549
      %v1551 = vsel %vm1550, %v1543, %v1547
      %v1552 = vand.u32 2147483647, %v1499
      %vm1553 = vcmp.eq.f32.partialorder %v1552, 8.507059e+37
      %v1554 = vand.u32 %v1499, 2147483648
      %v1555 = vor.u32 1.1754944e-38, %v1554
      %v1556 = vsel %vm1553, %v1555, %v1551
      %v1557 = vmul.f32 %v1467, %v1556
      %v1558 = vrcp.pop %v1501
      %v1559 = vmul.f32 %v1501, %v1558
      %v1560 = vsub.f32 1.0, %v1559
      %v1561 = vmul.f32 %v1558, %v1560
      %v1562 = vadd.f32 %v1558, %v1561
      %vm1563 = vweird.f32 %v1501
      %vm1564 = vweird.f32 %v1558
      %vm1565 = vmor %vm1563, %vm1564
      %v1566 = vsel %vm1565, %v1558, %v1562
      %v1567 = vand.u32 2147483647, %v1501
      %vm1568 = vcmp.eq.f32.partialorder %v1567, 8.507059e+37
      %v1569 = vand.u32 %v1501, 2147483648
      %v1570 = vor.u32 1.1754944e-38, %v1569
      %v1571 = vsel %vm1568, %v1570, %v1566
      %v1572 = vmul.f32 %v1469, %v1571
      %v1573 = vrcp.pop %v1503
      %v1574 = vmul.f32 %v1503, %v1573
      %v1575 = vsub.f32 1.0, %v1574
      %v1576 = vmul.f32 %v1573, %v1575
      %v1577 = vadd.f32 %v1573, %v1576
      %vm1578 = vweird.f32 %v1503
      %vm1579 = vweird.f32 %v1573
      %vm1580 = vmor %vm1578, %vm1579
      %v1581 = vsel %vm1580, %v1573, %v1577
      %v1582 = vand.u32 2147483647, %v1503
      %vm1583 = vcmp.eq.f32.partialorder %v1582, 8.507059e+37
      %v1584 = vand.u32 %v1503, 2147483648
      %v1585 = vor.u32 1.1754944e-38, %v1584
      %v1586 = vsel %vm1583, %v1585, %v1581
      %v1587 = vmul.f32 %v1471, %v1586
      %v1588 = vrcp.pop %v1505
      %v1589 = vmul.f32 %v1505, %v1588
      %v1590 = vsub.f32 1.0, %v1589
      %v1591 = vmul.f32 %v1588, %v1590
      %v1592 = vadd.f32 %v1588, %v1591
      %vm1593 = vweird.f32 %v1505
      %vm1594 = vweird.f32 %v1588
      %vm1595 = vmor %vm1593, %vm1594
      %v1596 = vsel %vm1595, %v1588, %v1592
      %v1597 = vand.u32 2147483647, %v1505
      %vm1598 = vcmp.eq.f32.partialorder %v1597, 8.507059e+37
      %v1599 = vand.u32 %v1505, 2147483648
      %v1600 = vor.u32 1.1754944e-38, %v1599
      %v1601 = vsel %vm1598, %v1600, %v1596
      %v1602 = vmul.f32 %v1473, %v1601
      %v1603 = vrcp.pop %v1507
      %v1604 = vmul.f32 %v1507, %v1603
      %v1605 = vsub.f32 1.0, %v1604
      %v1606 = vmul.f32 %v1603, %v1605
      %v1607 = vadd.f32 %v1603, %v1606
      %vm1608 = vweird.f32 %v1507
      %vm1609 = vweird.f32 %v1603
      %vm1610 = vmor %vm1608, %vm1609
      %v1611 = vsel %vm1610, %v1603, %v1607
      %v1612 = vand.u32 2147483647, %v1507
      %vm1613 = vcmp.eq.f32.partialorder %v1612, 8.507059e+37
      %v1614 = vand.u32 %v1507, 2147483648
      %v1615 = vor.u32 1.1754944e-38, %v1614
      %v1616 = vsel %vm1613, %v1615, %v1611
      %v1617 = vmul.f32 %v1475, %v1616
      %v1618 = vrcp.pop %v1509
      %v1619 = vmul.f32 %v1509, %v1618
      %v1620 = vsub.f32 1.0, %v1619
      %v1621 = vmul.f32 %v1618, %v1620
      %v1622 = vadd.f32 %v1618, %v1621
      %vm1623 = vweird.f32 %v1509
      %vm1624 = vweird.f32 %v1618
      %vm1625 = vmor %vm1623, %vm1624
      %v1626 = vsel %vm1625, %v1618, %v1622
      %v1627 = vand.u32 2147483647, %v1509
      %vm1628 = vcmp.eq.f32.partialorder %v1627, 8.507059e+37
      %v1629 = vand.u32 %v1509, 2147483648
      %v1630 = vor.u32 1.1754944e-38, %v1629
      %v1631 = vsel %vm1628, %v1630, %v1626
      %v1632 = vmul.f32 %v1477, %v1631
      %v1633 = vrcp.pop %v1511
      %v1634 = vmul.f32 %v1511, %v1633
      %v1635 = vsub.f32 1.0, %v1634
      %v1636 = vmul.f32 %v1633, %v1635
      %v1637 = vadd.f32 %v1633, %v1636
      %vm1638 = vweird.f32 %v1511
      %vm1639 = vweird.f32 %v1633
      %vm1640 = vmor %vm1638, %vm1639
      %v1641 = vsel %vm1640, %v1633, %v1637
      %v1642 = vand.u32 2147483647, %v1511
      %vm1643 = vcmp.eq.f32.partialorder %v1642, 8.507059e+37
      %v1644 = vand.u32 %v1511, 2147483648
      %v1645 = vor.u32 1.1754944e-38, %v1644
      %v1646 = vsel %vm1643, %v1645, %v1641
      %v1647 = vmul.f32 %v1479, %v1646
      %v1648 = vrcp.pop %v1513
      %v1649 = vmul.f32 %v1513, %v1648
      %v1650 = vsub.f32 1.0, %v1649
      %v1651 = vmul.f32 %v1648, %v1650
      %v1652 = vadd.f32 %v1648, %v1651
      %vm1653 = vweird.f32 %v1513
      %vm1654 = vweird.f32 %v1648
      %vm1655 = vmor %vm1653, %vm1654
      %v1656 = vsel %vm1655, %v1648, %v1652
      %v1657 = vand.u32 2147483647, %v1513
      %vm1658 = vcmp.eq.f32.partialorder %v1657, 8.507059e+37
      %v1659 = vand.u32 %v1513, 2147483648
      %v1660 = vor.u32 1.1754944e-38, %v1659
      %v1661 = vsel %vm1658, %v1660, %v1656
      %v1662 = vmul.f32 %v1481, %v1661
      %v1663 = vrcp.pop %v1515
      %v1664 = vmul.f32 %v1515, %v1663
      %v1665 = vsub.f32 1.0, %v1664
      %v1666 = vmul.f32 %v1663, %v1665
      %v1667 = vadd.f32 %v1663, %v1666
      %vm1668 = vweird.f32 %v1515
      %vm1669 = vweird.f32 %v1663
      %vm1670 = vmor %vm1668, %vm1669
      %v1671 = vsel %vm1670, %v1663, %v1667
      %v1672 = vand.u32 2147483647, %v1515
      %vm1673 = vcmp.eq.f32.partialorder %v1672, 8.507059e+37
      %v1674 = vand.u32 %v1515, 2147483648
      %v1675 = vor.u32 1.1754944e-38, %v1674
      %v1676 = vsel %vm1673, %v1675, %v1671
      %v1677 = vmul.f32 %v1483, %v1676
      %v1678 = vrcp.pop %v1517
      %v1679 = vmul.f32 %v1517, %v1678
      %v1680 = vsub.f32 1.0, %v1679
      %v1681 = vmul.f32 %v1678, %v1680
      %v1682 = vadd.f32 %v1678, %v1681
      %vm1683 = vweird.f32 %v1517
      %vm1684 = vweird.f32 %v1678
      %vm1685 = vmor %vm1683, %vm1684
      %v1686 = vsel %vm1685, %v1678, %v1682
      %v1687 = vand.u32 2147483647, %v1517
      %vm1688 = vcmp.eq.f32.partialorder %v1687, 8.507059e+37
      %v1689 = vand.u32 %v1517, 2147483648
      %v1690 = vor.u32 1.1754944e-38, %v1689
      %v1691 = vsel %vm1688, %v1690, %v1686
      %v1692 = vmul.f32 %v1485, %v1691
      %v1693 = vrcp.pop %v1519
      %v1694 = vmul.f32 %v1519, %v1693
      %v1695 = vsub.f32 1.0, %v1694
      %v1696 = vmul.f32 %v1693, %v1695
      %v1697 = vadd.f32 %v1693, %v1696
      %vm1698 = vweird.f32 %v1519
      %vm1699 = vweird.f32 %v1693
      %vm1700 = vmor %vm1698, %vm1699
      %v1701 = vsel %vm1700, %v1693, %v1697
      %v1702 = vand.u32 2147483647, %v1519
      %vm1703 = vcmp.eq.f32.partialorder %v1702, 8.507059e+37
      %v1704 = vand.u32 %v1519, 2147483648
      %v1705 = vor.u32 1.1754944e-38, %v1704
      %v1706 = vsel %vm1703, %v1705, %v1701
      %v1707 = vmul.f32 %v1487, %v1706
      %v1708 = vrcp.pop %v1521
      %v1709 = vmul.f32 %v1521, %v1708
      %v1710 = vsub.f32 1.0, %v1709
      %v1711 = vmul.f32 %v1708, %v1710
      %v1712 = vadd.f32 %v1708, %v1711
      %vm1713 = vweird.f32 %v1521
      %vm1714 = vweird.f32 %v1708
      %vm1715 = vmor %vm1713, %vm1714
      %v1716 = vsel %vm1715, %v1708, %v1712
      %v1717 = vand.u32 2147483647, %v1521
      %vm1718 = vcmp.eq.f32.partialorder %v1717, 8.507059e+37
      %v1719 = vand.u32 %v1521, 2147483648
      %v1720 = vor.u32 1.1754944e-38, %v1719
      %v1721 = vsel %vm1718, %v1720, %v1716
      %v1722 = vmul.f32 %v1489, %v1721
      %v1723 = vrcp.pop %v1523
      %v1724 = vmul.f32 %v1523, %v1723
      %v1725 = vsub.f32 1.0, %v1724
      %v1726 = vmul.f32 %v1723, %v1725
      %v1727 = vadd.f32 %v1723, %v1726
      %vm1728 = vweird.f32 %v1523
      %vm1729 = vweird.f32 %v1723
      %vm1730 = vmor %vm1728, %vm1729
      %v1731 = vsel %vm1730, %v1723, %v1727
      %v1732 = vand.u32 2147483647, %v1523
      %vm1733 = vcmp.eq.f32.partialorder %v1732, 8.507059e+37
      %v1734 = vand.u32 %v1523, 2147483648
      %v1735 = vor.u32 1.1754944e-38, %v1734
      %v1736 = vsel %vm1733, %v1735, %v1731
      %v1737 = vmul.f32 %v1491, %v1736
      %v1738 = vrcp.pop %v1525
      %v1739 = vmul.f32 %v1525, %v1738
      %v1740 = vsub.f32 1.0, %v1739
      %v1741 = vmul.f32 %v1738, %v1740
      %v1742 = vadd.f32 %v1738, %v1741
      %vm1743 = vweird.f32 %v1525
      %vm1744 = vweird.f32 %v1738
      %vm1745 = vmor %vm1743, %vm1744
      %v1746 = vsel %vm1745, %v1738, %v1742
      %v1747 = vand.u32 2147483647, %v1525
      %vm1748 = vcmp.eq.f32.partialorder %v1747, 8.507059e+37
      %v1749 = vand.u32 %v1525, 2147483648
      %v1750 = vor.u32 1.1754944e-38, %v1749
      %v1751 = vsel %vm1748, %v1750, %v1746
      %v1752 = vmul.f32 %v1493, %v1751
      %v1753 = vrcp.pop %v1527
      %v1754 = vmul.f32 %v1527, %v1753
      %v1755 = vsub.f32 1.0, %v1754
      %v1756 = vmul.f32 %v1753, %v1755
      %v1757 = vadd.f32 %v1753, %v1756
      %vm1758 = vweird.f32 %v1527
      %vm1759 = vweird.f32 %v1753
      %vm1760 = vmor %vm1758, %vm1759
      %v1761 = vsel %vm1760, %v1753, %v1757
      %v1762 = vand.u32 2147483647, %v1527
      %vm1763 = vcmp.eq.f32.partialorder %v1762, 8.507059e+37
      %v1764 = vand.u32 %v1527, 2147483648
      %v1765 = vor.u32 1.1754944e-38, %v1764
      %v1766 = vsel %vm1763, %v1765, %v1761
      %v1767 = vmul.f32 %v1495, %v1766
      %1784 = vrot.lane.b32.xlu0 %v593, 120
      %v1785 = vpop.permute.xlu0 %1784
      %1786 = vrot.lane.b32.xlu0 %v596, 120
      %v1787 = vpop.permute.xlu0 %1786
      %1788 = vrot.lane.b32.xlu0 %v599, 120
      %v1789 = vpop.permute.xlu0 %1788
      %1790 = vrot.lane.b32.xlu0 %v602, 120
      %v1791 = vpop.permute.xlu0 %1790
      %1792 = vrot.lane.b32.xlu0 %v605, 120
      %v1793 = vpop.permute.xlu0 %1792
      %1794 = vrot.lane.b32.xlu0 %v608, 120
      %v1795 = vpop.permute.xlu0 %1794
      %1796 = vrot.lane.b32.xlu0 %v611, 120
      %v1797 = vpop.permute.xlu0 %1796
      %1798 = vrot.lane.b32.xlu0 %v614, 120
      %v1799 = vpop.permute.xlu0 %1798
      %1800 = vrot.lane.b32.xlu0 %v617, 120
      %v1801 = vpop.permute.xlu0 %1800
      %1802 = vrot.lane.b32.xlu0 %v620, 120
      %v1803 = vpop.permute.xlu0 %1802
      %1804 = vrot.lane.b32.xlu0 %v623, 120
      %v1805 = vpop.permute.xlu0 %1804
      %1806 = vrot.lane.b32.xlu0 %v626, 120
      %v1807 = vpop.permute.xlu0 %1806
      %1808 = vrot.lane.b32.xlu0 %v629, 120
      %v1809 = vpop.permute.xlu0 %1808
      %1810 = vrot.lane.b32.xlu0 %v632, 120
      %v1811 = vpop.permute.xlu0 %1810
      %1812 = vrot.lane.b32.xlu0 %v635, 120
      %v1813 = vpop.permute.xlu0 %1812
      %1814 = vrot.lane.b32.xlu0 %v638, 120
      %v1815 = vpop.permute.xlu0 %1814
      %1832 = vmatpush.msra.mxu0 %v1815
      %1833 = vmatpush.msra.mxu0 %v1813
      %1834 = vmatpush.msra.mxu0 %v1811
      %1835 = vmatpush.msra.mxu0 %v1809
      %1836 = vmatpush.msra.mxu0 %v1807
      %1837 = vmatpush.msra.mxu0 %v1805
      %1838 = vmatpush.msra.mxu0 %v1803
      %1839 = vmatpush.msra.mxu0 %v1801
      %1840 = vmatpush.msra.mxu0 %v1799
      %1841 = vmatpush.msra.mxu0 %v1797
      %1842 = vmatpush.msra.mxu0 %v1795
      %1843 = vmatpush.msra.mxu0 %v1793
      %1844 = vmatpush.msra.mxu0 %v1791
      %1845 = vmatpush.msra.mxu0 %v1789
      %1846 = vmatpush.msra.mxu0 %v1787
      %1847 = vmatpush.msra.mxu0 %v1785
      %1848 = vmatmul.f32.gmra.mxu0 %v1542
      %v1849 = vpop.f32.mrf.mxu0
      %v1850 = vadd.f32 0.0, %v1849
      %1851 = vmatmul.f32.gmra.mxu0 %v1557
      %v1852 = vpop.f32.mrf.mxu0
      %v1853 = vadd.f32 0.0, %v1852
      %1854 = vmatmul.f32.gmra.mxu0 %v1572
      %v1855 = vpop.f32.mrf.mxu0
      %v1856 = vadd.f32 0.0, %v1855
      %1857 = vmatmul.f32.gmra.mxu0 %v1587
      %v1858 = vpop.f32.mrf.mxu0
      %v1859 = vadd.f32 0.0, %v1858
      %1860 = vmatmul.f32.gmra.mxu0 %v1602
      %v1861 = vpop.f32.mrf.mxu0
      %v1862 = vadd.f32 0.0, %v1861
      %1863 = vmatmul.f32.gmra.mxu0 %v1617
      %v1864 = vpop.f32.mrf.mxu0
      %v1865 = vadd.f32 0.0, %v1864
      %1866 = vmatmul.f32.gmra.mxu0 %v1632
      %v1867 = vpop.f32.mrf.mxu0
      %v1868 = vadd.f32 0.0, %v1867
      %1869 = vmatmul.f32.gmra.mxu0 %v1647
      %v1870 = vpop.f32.mrf.mxu0
      %v1871 = vadd.f32 0.0, %v1870
      %1872 = vmatmul.f32.gmra.mxu0 %v1662
      %v1873 = vpop.f32.mrf.mxu0
      %v1874 = vadd.f32 0.0, %v1873
      %1875 = vmatmul.f32.gmra.mxu0 %v1677
      %v1876 = vpop.f32.mrf.mxu0
      %v1877 = vadd.f32 0.0, %v1876
      %1878 = vmatmul.f32.gmra.mxu0 %v1692
      %v1879 = vpop.f32.mrf.mxu0
      %v1880 = vadd.f32 0.0, %v1879
      %1881 = vmatmul.f32.gmra.mxu0 %v1707
      %v1882 = vpop.f32.mrf.mxu0
      %v1883 = vadd.f32 0.0, %v1882
      %1884 = vmatmul.f32.gmra.mxu0 %v1722
      %v1885 = vpop.f32.mrf.mxu0
      %v1886 = vadd.f32 0.0, %v1885
      %1887 = vmatmul.f32.gmra.mxu0 %v1737
      %v1888 = vpop.f32.mrf.mxu0
      %v1889 = vadd.f32 0.0, %v1888
      %1890 = vmatmul.f32.gmra.mxu0 %v1752
      %v1891 = vpop.f32.mrf.mxu0
      %v1892 = vadd.f32 0.0, %v1891
      %1893 = vmatmul.f32.gmra.mxu0 %v1767
      %v1894 = vpop.f32.mrf.mxu0
      %v1895 = vadd.f32 0.0, %v1894
      %1896 = vdwg.mxu0
      %1897 = vrot.lane.b32.xlu0 %v447, 112
      %v1898 = vpop.permute.xlu0 %1897
      %1899 = vrot.lane.b32.xlu0 %v450, 112
      %v1900 = vpop.permute.xlu0 %1899
      %1901 = vrot.lane.b32.xlu0 %v453, 112
      %v1902 = vpop.permute.xlu0 %1901
      %1903 = vrot.lane.b32.xlu0 %v456, 112
      %v1904 = vpop.permute.xlu0 %1903
      %1905 = vrot.lane.b32.xlu0 %v459, 112
      %v1906 = vpop.permute.xlu0 %1905
      %1907 = vrot.lane.b32.xlu0 %v462, 112
      %v1908 = vpop.permute.xlu0 %1907
      %1909 = vrot.lane.b32.xlu0 %v465, 112
      %v1910 = vpop.permute.xlu0 %1909
      %1911 = vrot.lane.b32.xlu0 %v468, 112
      %v1912 = vpop.permute.xlu0 %1911
      %1913 = vrot.lane.b32.xlu0 %v471, 112
      %v1914 = vpop.permute.xlu0 %1913
      %1915 = vrot.lane.b32.xlu0 %v474, 112
      %v1916 = vpop.permute.xlu0 %1915
      %1917 = vrot.lane.b32.xlu0 %v477, 112
      %v1918 = vpop.permute.xlu0 %1917
      %1919 = vrot.lane.b32.xlu0 %v480, 112
      %v1920 = vpop.permute.xlu0 %1919
      %1921 = vrot.lane.b32.xlu0 %v483, 112
      %v1922 = vpop.permute.xlu0 %1921
      %1923 = vrot.lane.b32.xlu0 %v486, 112
      %v1924 = vpop.permute.xlu0 %1923
      %1925 = vrot.lane.b32.xlu0 %v489, 112
      %v1926 = vpop.permute.xlu0 %1925
      %1927 = vrot.lane.b32.xlu0 %v492, 112
      %v1928 = vpop.permute.xlu0 %1927
      %1929 = vrot.lane.b32.xlu0 %v520, 112
      %v1930 = vpop.permute.xlu0 %1929
      %1931 = vrot.lane.b32.xlu0 %v523, 112
      %v1932 = vpop.permute.xlu0 %1931
      %1933 = vrot.lane.b32.xlu0 %v526, 112
      %v1934 = vpop.permute.xlu0 %1933
      %1935 = vrot.lane.b32.xlu0 %v529, 112
      %v1936 = vpop.permute.xlu0 %1935
      %1937 = vrot.lane.b32.xlu0 %v532, 112
      %v1938 = vpop.permute.xlu0 %1937
      %1939 = vrot.lane.b32.xlu0 %v535, 112
      %v1940 = vpop.permute.xlu0 %1939
      %1941 = vrot.lane.b32.xlu0 %v538, 112
      %v1942 = vpop.permute.xlu0 %1941
      %1943 = vrot.lane.b32.xlu0 %v541, 112
      %v1944 = vpop.permute.xlu0 %1943
      %1945 = vrot.lane.b32.xlu0 %v544, 112
      %v1946 = vpop.permute.xlu0 %1945
      %1947 = vrot.lane.b32.xlu0 %v547, 112
      %v1948 = vpop.permute.xlu0 %1947
      %1949 = vrot.lane.b32.xlu0 %v550, 112
      %v1950 = vpop.permute.xlu0 %1949
      %1951 = vrot.lane.b32.xlu0 %v553, 112
      %v1952 = vpop.permute.xlu0 %1951
      %1953 = vrot.lane.b32.xlu0 %v556, 112
      %v1954 = vpop.permute.xlu0 %1953
      %1955 = vrot.lane.b32.xlu0 %v559, 112
      %v1956 = vpop.permute.xlu0 %1955
      %1957 = vrot.lane.b32.xlu0 %v562, 112
      %v1958 = vpop.permute.xlu0 %1957
      %1959 = vrot.lane.b32.xlu0 %v565, 112
      %v1960 = vpop.permute.xlu0 %1959
      %v1961 = vsel %vm644, %v1898, 0
      %v1963 = vsel %vm644, %v1900, 0
      %v1965 = vsel %vm644, %v1902, 0
      %v1967 = vsel %vm644, %v1904, 0
      %v1969 = vsel %vm644, %v1906, 0
      %v1971 = vsel %vm644, %v1908, 0
      %v1973 = vsel %vm644, %v1910, 0
      %v1975 = vsel %vm644, %v1912, 0
      %v1977 = vsel %vm644, %v1914, 0
      %v1979 = vsel %vm644, %v1916, 0
      %v1981 = vsel %vm644, %v1918, 0
      %v1983 = vsel %vm644, %v1920, 0
      %v1985 = vsel %vm644, %v1922, 0
      %v1987 = vsel %vm644, %v1924, 0
      %v1989 = vsel %vm644, %v1926, 0
      %v1991 = vsel %vm644, %v1928, 0
      %v1993 = vsel %vm644, %v1930, 0
      %v1995 = vsel %vm644, %v1932, 0
      %v1997 = vsel %vm644, %v1934, 0
      %v1999 = vsel %vm644, %v1936, 0
      %v2001 = vsel %vm644, %v1938, 0
      %v2003 = vsel %vm644, %v1940, 0
      %v2005 = vsel %vm644, %v1942, 0
      %v2007 = vsel %vm644, %v1944, 0
      %v2009 = vsel %vm644, %v1946, 0
      %v2011 = vsel %vm644, %v1948, 0
      %v2013 = vsel %vm644, %v1950, 0
      %v2015 = vsel %vm644, %v1952, 0
      %v2017 = vsel %vm644, %v1954, 0
      %v2019 = vsel %vm644, %v1956, 0
      %v2021 = vsel %vm644, %v1958, 0
      %v2023 = vsel %vm644, %v1960, 0
      %2025 = vmatpush.xpose.msra.mxu0 %v2023
      %2026 = vmatpush.xpose.msra.mxu0 %v2021
      %2027 = vmatpush.xpose.msra.mxu0 %v2019
      %2028 = vmatpush.xpose.msra.mxu0 %v2017
      %2029 = vmatpush.xpose.msra.mxu0 %v2015
      %2030 = vmatpush.xpose.msra.mxu0 %v2013
      %2031 = vmatpush.xpose.msra.mxu0 %v2011
      %2032 = vmatpush.xpose.msra.mxu0 %v2009
      %2033 = vmatpush.xpose.msra.mxu0 %v2007
      %2034 = vmatpush.xpose.msra.mxu0 %v2005
      %2035 = vmatpush.xpose.msra.mxu0 %v2003
      %2036 = vmatpush.xpose.msra.mxu0 %v2001
      %2037 = vmatpush.xpose.msra.mxu0 %v1999
      %2038 = vmatpush.xpose.msra.mxu0 %v1997
      %2039 = vmatpush.xpose.msra.mxu0 %v1995
      %2040 = vmatpush.xpose.msra.mxu0 %v1993
      %2041 = vmatmul.f32.gmra.mxu0 %v1961
      %v2042 = vpop.f32.mrf.mxu0
      %v2043 = vadd.f32 %v643, %v2042
      %2044 = vmatmul.f32.gmra.mxu0 %v1963
      %v2045 = vpop.f32.mrf.mxu0
      %v2046 = vadd.f32 %v643, %v2045
      %2047 = vmatmul.f32.gmra.mxu0 %v1965
      %v2048 = vpop.f32.mrf.mxu0
      %v2049 = vadd.f32 %v643, %v2048
      %2050 = vmatmul.f32.gmra.mxu0 %v1967
      %v2051 = vpop.f32.mrf.mxu0
      %v2052 = vadd.f32 %v643, %v2051
      %2053 = vmatmul.f32.gmra.mxu0 %v1969
      %v2054 = vpop.f32.mrf.mxu0
      %v2055 = vadd.f32 %v643, %v2054
      %2056 = vmatmul.f32.gmra.mxu0 %v1971
      %v2057 = vpop.f32.mrf.mxu0
      %v2058 = vadd.f32 %v643, %v2057
      %2059 = vmatmul.f32.gmra.mxu0 %v1973
      %v2060 = vpop.f32.mrf.mxu0
      %v2061 = vadd.f32 %v643, %v2060
      %2062 = vmatmul.f32.gmra.mxu0 %v1975
      %v2063 = vpop.f32.mrf.mxu0
      %v2064 = vadd.f32 %v643, %v2063
      %2065 = vmatmul.f32.gmra.mxu0 %v1977
      %v2066 = vpop.f32.mrf.mxu0
      %v2067 = vadd.f32 %v643, %v2066
      %2068 = vmatmul.f32.gmra.mxu0 %v1979
      %v2069 = vpop.f32.mrf.mxu0
      %v2070 = vadd.f32 %v643, %v2069
      %2071 = vmatmul.f32.gmra.mxu0 %v1981
      %v2072 = vpop.f32.mrf.mxu0
      %v2073 = vadd.f32 %v643, %v2072
      %2074 = vmatmul.f32.gmra.mxu0 %v1983
      %v2075 = vpop.f32.mrf.mxu0
      %v2076 = vadd.f32 %v643, %v2075
      %2077 = vmatmul.f32.gmra.mxu0 %v1985
      %v2078 = vpop.f32.mrf.mxu0
      %v2079 = vadd.f32 %v643, %v2078
      %2080 = vmatmul.f32.gmra.mxu0 %v1987
      %v2081 = vpop.f32.mrf.mxu0
      %v2082 = vadd.f32 %v643, %v2081
      %2083 = vmatmul.f32.gmra.mxu0 %v1989
      %v2084 = vpop.f32.mrf.mxu0
      %v2085 = vadd.f32 %v643, %v2084
      %2086 = vmatmul.f32.gmra.mxu0 %v1991
      %v2087 = vpop.f32.mrf.mxu0
      %v2088 = vadd.f32 %v643, %v2087
      %2089 = vdwg.mxu0
      %2090 = vmax.xlane.f32.xlu0 %v2043
      %v2091 = vpop.xlane.xlu0 %2090
      %2092 = vmax.xlane.f32.xlu0 %v2046
      %v2093 = vpop.xlane.xlu0 %2092
      %2094 = vmax.xlane.f32.xlu0 %v2049
      %v2095 = vpop.xlane.xlu0 %2094
      %2096 = vmax.xlane.f32.xlu0 %v2052
      %v2097 = vpop.xlane.xlu0 %2096
      %2098 = vmax.xlane.f32.xlu0 %v2055
      %v2099 = vpop.xlane.xlu0 %2098
      %2100 = vmax.xlane.f32.xlu0 %v2058
      %v2101 = vpop.xlane.xlu0 %2100
      %2102 = vmax.xlane.f32.xlu0 %v2061
      %v2103 = vpop.xlane.xlu0 %2102
      %2104 = vmax.xlane.f32.xlu0 %v2064
      %v2105 = vpop.xlane.xlu0 %2104
      %2106 = vmax.xlane.f32.xlu0 %v2067
      %v2107 = vpop.xlane.xlu0 %2106
      %2108 = vmax.xlane.f32.xlu0 %v2070
      %v2109 = vpop.xlane.xlu0 %2108
      %2110 = vmax.xlane.f32.xlu0 %v2073
      %v2111 = vpop.xlane.xlu0 %2110
      %2112 = vmax.xlane.f32.xlu0 %v2076
      %v2113 = vpop.xlane.xlu0 %2112
      %2114 = vmax.xlane.f32.xlu0 %v2079
      %v2115 = vpop.xlane.xlu0 %2114
      %2116 = vmax.xlane.f32.xlu0 %v2082
      %v2117 = vpop.xlane.xlu0 %2116
      %2118 = vmax.xlane.f32.xlu0 %v2085
      %v2119 = vpop.xlane.xlu0 %2118
      %2120 = vmax.xlane.f32.xlu0 %v2088
      %v2121 = vpop.xlane.xlu0 %2120
      %v2122 = vsub.f32 %v2043, %v2091
      %v2123 = vsub.f32 %v2046, %v2093
      %v2124 = vsub.f32 %v2049, %v2095
      %v2125 = vsub.f32 %v2052, %v2097
      %v2126 = vsub.f32 %v2055, %v2099
      %v2127 = vsub.f32 %v2058, %v2101
      %v2128 = vsub.f32 %v2061, %v2103
      %v2129 = vsub.f32 %v2064, %v2105
      %v2130 = vsub.f32 %v2067, %v2107
      %v2131 = vsub.f32 %v2070, %v2109
      %v2132 = vsub.f32 %v2073, %v2111
      %v2133 = vsub.f32 %v2076, %v2113
      %v2134 = vsub.f32 %v2079, %v2115
      %v2135 = vsub.f32 %v2082, %v2117
      %v2136 = vsub.f32 %v2085, %v2119
      %v2137 = vsub.f32 %v2088, %v2121
      %v2138 = vmul.f32 %v2122, 1.442695
      %v2139 = vpow.pop %v2138
      %v2140 = vmul.f32 %v2123, 1.442695
      %v2141 = vpow.pop %v2140
      %v2142 = vmul.f32 %v2124, 1.442695
      %v2143 = vpow.pop %v2142
      %v2144 = vmul.f32 %v2125, 1.442695
      %v2145 = vpow.pop %v2144
      %v2146 = vmul.f32 %v2126, 1.442695
      %v2147 = vpow.pop %v2146
      %v2148 = vmul.f32 %v2127, 1.442695
      %v2149 = vpow.pop %v2148
      %v2150 = vmul.f32 %v2128, 1.442695
      %v2151 = vpow.pop %v2150
      %v2152 = vmul.f32 %v2129, 1.442695
      %v2153 = vpow.pop %v2152
      %v2154 = vmul.f32 %v2130, 1.442695
      %v2155 = vpow.pop %v2154
      %v2156 = vmul.f32 %v2131, 1.442695
      %v2157 = vpow.pop %v2156
      %v2158 = vmul.f32 %v2132, 1.442695
      %v2159 = vpow.pop %v2158
      %v2160 = vmul.f32 %v2133, 1.442695
      %v2161 = vpow.pop %v2160
      %v2162 = vmul.f32 %v2134, 1.442695
      %v2163 = vpow.pop %v2162
      %v2164 = vmul.f32 %v2135, 1.442695
      %v2165 = vpow.pop %v2164
      %v2166 = vmul.f32 %v2136, 1.442695
      %v2167 = vpow.pop %v2166
      %v2168 = vmul.f32 %v2137, 1.442695
      %v2169 = vpow.pop %v2168
      %2170 = vadd.xlane.f32.xlu0 %v2139
      %v2171 = vpop.xlane.xlu0 %2170
      %2172 = vadd.xlane.f32.xlu0 %v2141
      %v2173 = vpop.xlane.xlu0 %2172
      %2174 = vadd.xlane.f32.xlu0 %v2143
      %v2175 = vpop.xlane.xlu0 %2174
      %2176 = vadd.xlane.f32.xlu0 %v2145
      %v2177 = vpop.xlane.xlu0 %2176
      %2178 = vadd.xlane.f32.xlu0 %v2147
      %v2179 = vpop.xlane.xlu0 %2178
      %2180 = vadd.xlane.f32.xlu0 %v2149
      %v2181 = vpop.xlane.xlu0 %2180
      %2182 = vadd.xlane.f32.xlu0 %v2151
      %v2183 = vpop.xlane.xlu0 %2182
      %2184 = vadd.xlane.f32.xlu0 %v2153
      %v2185 = vpop.xlane.xlu0 %2184
      %2186 = vadd.xlane.f32.xlu0 %v2155
      %v2187 = vpop.xlane.xlu0 %2186
      %2188 = vadd.xlane.f32.xlu0 %v2157
      %v2189 = vpop.xlane.xlu0 %2188
      %2190 = vadd.xlane.f32.xlu0 %v2159
      %v2191 = vpop.xlane.xlu0 %2190
      %2192 = vadd.xlane.f32.xlu0 %v2161
      %v2193 = vpop.xlane.xlu0 %2192
      %2194 = vadd.xlane.f32.xlu0 %v2163
      %v2195 = vpop.xlane.xlu0 %2194
      %2196 = vadd.xlane.f32.xlu0 %v2165
      %v2197 = vpop.xlane.xlu0 %2196
      %2198 = vadd.xlane.f32.xlu0 %v2167
      %v2199 = vpop.xlane.xlu0 %2198
      %2200 = vadd.xlane.f32.xlu0 %v2169
      %v2201 = vpop.xlane.xlu0 %2200
      %v2202 = vrcp.pop %v2171
      %v2203 = vmul.f32 %v2171, %v2202
      %v2204 = vsub.f32 1.0, %v2203
      %v2205 = vmul.f32 %v2202, %v2204
      %v2206 = vadd.f32 %v2202, %v2205
      %vm2207 = vweird.f32 %v2171
      %vm2208 = vweird.f32 %v2202
      %vm2209 = vmor %vm2207, %vm2208
      %v2210 = vsel %vm2209, %v2202, %v2206
      %v2211 = vand.u32 2147483647, %v2171
      %vm2212 = vcmp.eq.f32.partialorder %v2211, 8.507059e+37
      %v2213 = vand.u32 %v2171, 2147483648
      %v2214 = vor.u32 1.1754944e-38, %v2213
      %v2215 = vsel %vm2212, %v2214, %v2210
      %v2216 = vmul.f32 %v2139, %v2215
      %v2217 = vrcp.pop %v2173
      %v2218 = vmul.f32 %v2173, %v2217
      %v2219 = vsub.f32 1.0, %v2218
      %v2220 = vmul.f32 %v2217, %v2219
      %v2221 = vadd.f32 %v2217, %v2220
      %vm2222 = vweird.f32 %v2173
      %vm2223 = vweird.f32 %v2217
      %vm2224 = vmor %vm2222, %vm2223
      %v2225 = vsel %vm2224, %v2217, %v2221
      %v2226 = vand.u32 2147483647, %v2173
      %vm2227 = vcmp.eq.f32.partialorder %v2226, 8.507059e+37
      %v2228 = vand.u32 %v2173, 2147483648
      %v2229 = vor.u32 1.1754944e-38, %v2228
      %v2230 = vsel %vm2227, %v2229, %v2225
      %v2231 = vmul.f32 %v2141, %v2230
      %v2232 = vrcp.pop %v2175
      %v2233 = vmul.f32 %v2175, %v2232
      %v2234 = vsub.f32 1.0, %v2233
      %v2235 = vmul.f32 %v2232, %v2234
      %v2236 = vadd.f32 %v2232, %v2235
      %vm2237 = vweird.f32 %v2175
      %vm2238 = vweird.f32 %v2232
      %vm2239 = vmor %vm2237, %vm2238
      %v2240 = vsel %vm2239, %v2232, %v2236
      %v2241 = vand.u32 2147483647, %v2175
      %vm2242 = vcmp.eq.f32.partialorder %v2241, 8.507059e+37
      %v2243 = vand.u32 %v2175, 2147483648
      %v2244 = vor.u32 1.1754944e-38, %v2243
      %v2245 = vsel %vm2242, %v2244, %v2240
      %v2246 = vmul.f32 %v2143, %v2245
      %v2247 = vrcp.pop %v2177
      %v2248 = vmul.f32 %v2177, %v2247
      %v2249 = vsub.f32 1.0, %v2248
      %v2250 = vmul.f32 %v2247, %v2249
      %v2251 = vadd.f32 %v2247, %v2250
      %vm2252 = vweird.f32 %v2177
      %vm2253 = vweird.f32 %v2247
      %vm2254 = vmor %vm2252, %vm2253
      %v2255 = vsel %vm2254, %v2247, %v2251
      %v2256 = vand.u32 2147483647, %v2177
      %vm2257 = vcmp.eq.f32.partialorder %v2256, 8.507059e+37
      %v2258 = vand.u32 %v2177, 2147483648
      %v2259 = vor.u32 1.1754944e-38, %v2258
      %v2260 = vsel %vm2257, %v2259, %v2255
      %v2261 = vmul.f32 %v2145, %v2260
      %v2262 = vrcp.pop %v2179
      %v2263 = vmul.f32 %v2179, %v2262
      %v2264 = vsub.f32 1.0, %v2263
      %v2265 = vmul.f32 %v2262, %v2264
      %v2266 = vadd.f32 %v2262, %v2265
      %vm2267 = vweird.f32 %v2179
      %vm2268 = vweird.f32 %v2262
      %vm2269 = vmor %vm2267, %vm2268
      %v2270 = vsel %vm2269, %v2262, %v2266
      %v2271 = vand.u32 2147483647, %v2179
      %vm2272 = vcmp.eq.f32.partialorder %v2271, 8.507059e+37
      %v2273 = vand.u32 %v2179, 2147483648
      %v2274 = vor.u32 1.1754944e-38, %v2273
      %v2275 = vsel %vm2272, %v2274, %v2270
      %v2276 = vmul.f32 %v2147, %v2275
      %v2277 = vrcp.pop %v2181
      %v2278 = vmul.f32 %v2181, %v2277
      %v2279 = vsub.f32 1.0, %v2278
      %v2280 = vmul.f32 %v2277, %v2279
      %v2281 = vadd.f32 %v2277, %v2280
      %vm2282 = vweird.f32 %v2181
      %vm2283 = vweird.f32 %v2277
      %vm2284 = vmor %vm2282, %vm2283
      %v2285 = vsel %vm2284, %v2277, %v2281
      %v2286 = vand.u32 2147483647, %v2181
      %vm2287 = vcmp.eq.f32.partialorder %v2286, 8.507059e+37
      %v2288 = vand.u32 %v2181, 2147483648
      %v2289 = vor.u32 1.1754944e-38, %v2288
      %v2290 = vsel %vm2287, %v2289, %v2285
      %v2291 = vmul.f32 %v2149, %v2290
      %v2292 = vrcp.pop %v2183
      %v2293 = vmul.f32 %v2183, %v2292
      %v2294 = vsub.f32 1.0, %v2293
      %v2295 = vmul.f32 %v2292, %v2294
      %v2296 = vadd.f32 %v2292, %v2295
      %vm2297 = vweird.f32 %v2183
      %vm2298 = vweird.f32 %v2292
      %vm2299 = vmor %vm2297, %vm2298
      %v2300 = vsel %vm2299, %v2292, %v2296
      %v2301 = vand.u32 2147483647, %v2183
      %vm2302 = vcmp.eq.f32.partialorder %v2301, 8.507059e+37
      %v2303 = vand.u32 %v2183, 2147483648
      %v2304 = vor.u32 1.1754944e-38, %v2303
      %v2305 = vsel %vm2302, %v2304, %v2300
      %v2306 = vmul.f32 %v2151, %v2305
      %v2307 = vrcp.pop %v2185
      %v2308 = vmul.f32 %v2185, %v2307
      %v2309 = vsub.f32 1.0, %v2308
      %v2310 = vmul.f32 %v2307, %v2309
      %v2311 = vadd.f32 %v2307, %v2310
      %vm2312 = vweird.f32 %v2185
      %vm2313 = vweird.f32 %v2307
      %vm2314 = vmor %vm2312, %vm2313
      %v2315 = vsel %vm2314, %v2307, %v2311
      %v2316 = vand.u32 2147483647, %v2185
      %vm2317 = vcmp.eq.f32.partialorder %v2316, 8.507059e+37
      %v2318 = vand.u32 %v2185, 2147483648
      %v2319 = vor.u32 1.1754944e-38, %v2318
      %v2320 = vsel %vm2317, %v2319, %v2315
      %v2321 = vmul.f32 %v2153, %v2320
      %v2322 = vrcp.pop %v2187
      %v2323 = vmul.f32 %v2187, %v2322
      %v2324 = vsub.f32 1.0, %v2323
      %v2325 = vmul.f32 %v2322, %v2324
      %v2326 = vadd.f32 %v2322, %v2325
      %vm2327 = vweird.f32 %v2187
      %vm2328 = vweird.f32 %v2322
      %vm2329 = vmor %vm2327, %vm2328
      %v2330 = vsel %vm2329, %v2322, %v2326
      %v2331 = vand.u32 2147483647, %v2187
      %vm2332 = vcmp.eq.f32.partialorder %v2331, 8.507059e+37
      %v2333 = vand.u32 %v2187, 2147483648
      %v2334 = vor.u32 1.1754944e-38, %v2333
      %v2335 = vsel %vm2332, %v2334, %v2330
      %v2336 = vmul.f32 %v2155, %v2335
      %v2337 = vrcp.pop %v2189
      %v2338 = vmul.f32 %v2189, %v2337
      %v2339 = vsub.f32 1.0, %v2338
      %v2340 = vmul.f32 %v2337, %v2339
      %v2341 = vadd.f32 %v2337, %v2340
      %vm2342 = vweird.f32 %v2189
      %vm2343 = vweird.f32 %v2337
      %vm2344 = vmor %vm2342, %vm2343
      %v2345 = vsel %vm2344, %v2337, %v2341
      %v2346 = vand.u32 2147483647, %v2189
      %vm2347 = vcmp.eq.f32.partialorder %v2346, 8.507059e+37
      %v2348 = vand.u32 %v2189, 2147483648
      %v2349 = vor.u32 1.1754944e-38, %v2348
      %v2350 = vsel %vm2347, %v2349, %v2345
      %v2351 = vmul.f32 %v2157, %v2350
      %v2352 = vrcp.pop %v2191
      %v2353 = vmul.f32 %v2191, %v2352
      %v2354 = vsub.f32 1.0, %v2353
      %v2355 = vmul.f32 %v2352, %v2354
      %v2356 = vadd.f32 %v2352, %v2355
      %vm2357 = vweird.f32 %v2191
      %vm2358 = vweird.f32 %v2352
      %vm2359 = vmor %vm2357, %vm2358
      %v2360 = vsel %vm2359, %v2352, %v2356
      %v2361 = vand.u32 2147483647, %v2191
      %vm2362 = vcmp.eq.f32.partialorder %v2361, 8.507059e+37
      %v2363 = vand.u32 %v2191, 2147483648
      %v2364 = vor.u32 1.1754944e-38, %v2363
      %v2365 = vsel %vm2362, %v2364, %v2360
      %v2366 = vmul.f32 %v2159, %v2365
      %v2367 = vrcp.pop %v2193
      %v2368 = vmul.f32 %v2193, %v2367
      %v2369 = vsub.f32 1.0, %v2368
      %v2370 = vmul.f32 %v2367, %v2369
      %v2371 = vadd.f32 %v2367, %v2370
      %vm2372 = vweird.f32 %v2193
      %vm2373 = vweird.f32 %v2367
      %vm2374 = vmor %vm2372, %vm2373
      %v2375 = vsel %vm2374, %v2367, %v2371
      %v2376 = vand.u32 2147483647, %v2193
      %vm2377 = vcmp.eq.f32.partialorder %v2376, 8.507059e+37
      %v2378 = vand.u32 %v2193, 2147483648
      %v2379 = vor.u32 1.1754944e-38, %v2378
      %v2380 = vsel %vm2377, %v2379, %v2375
      %v2381 = vmul.f32 %v2161, %v2380
      %v2382 = vrcp.pop %v2195
      %v2383 = vmul.f32 %v2195, %v2382
      %v2384 = vsub.f32 1.0, %v2383
      %v2385 = vmul.f32 %v2382, %v2384
      %v2386 = vadd.f32 %v2382, %v2385
      %vm2387 = vweird.f32 %v2195
      %vm2388 = vweird.f32 %v2382
      %vm2389 = vmor %vm2387, %vm2388
      %v2390 = vsel %vm2389, %v2382, %v2386
      %v2391 = vand.u32 2147483647, %v2195
      %vm2392 = vcmp.eq.f32.partialorder %v2391, 8.507059e+37
      %v2393 = vand.u32 %v2195, 2147483648
      %v2394 = vor.u32 1.1754944e-38, %v2393
      %v2395 = vsel %vm2392, %v2394, %v2390
      %v2396 = vmul.f32 %v2163, %v2395
      %v2397 = vrcp.pop %v2197
      %v2398 = vmul.f32 %v2197, %v2397
      %v2399 = vsub.f32 1.0, %v2398
      %v2400 = vmul.f32 %v2397, %v2399
      %v2401 = vadd.f32 %v2397, %v2400
      %vm2402 = vweird.f32 %v2197
      %vm2403 = vweird.f32 %v2397
      %vm2404 = vmor %vm2402, %vm2403
      %v2405 = vsel %vm2404, %v2397, %v2401
      %v2406 = vand.u32 2147483647, %v2197
      %vm2407 = vcmp.eq.f32.partialorder %v2406, 8.507059e+37
      %v2408 = vand.u32 %v2197, 2147483648
      %v2409 = vor.u32 1.1754944e-38, %v2408
      %v2410 = vsel %vm2407, %v2409, %v2405
      %v2411 = vmul.f32 %v2165, %v2410
      %v2412 = vrcp.pop %v2199
      %v2413 = vmul.f32 %v2199, %v2412
      %v2414 = vsub.f32 1.0, %v2413
      %v2415 = vmul.f32 %v2412, %v2414
      %v2416 = vadd.f32 %v2412, %v2415
      %vm2417 = vweird.f32 %v2199
      %vm2418 = vweird.f32 %v2412
      %vm2419 = vmor %vm2417, %vm2418
      %v2420 = vsel %vm2419, %v2412, %v2416
      %v2421 = vand.u32 2147483647, %v2199
      %vm2422 = vcmp.eq.f32.partialorder %v2421, 8.507059e+37
      %v2423 = vand.u32 %v2199, 2147483648
      %v2424 = vor.u32 1.1754944e-38, %v2423
      %v2425 = vsel %vm2422, %v2424, %v2420
      %v2426 = vmul.f32 %v2167, %v2425
      %v2427 = vrcp.pop %v2201
      %v2428 = vmul.f32 %v2201, %v2427
      %v2429 = vsub.f32 1.0, %v2428
      %v2430 = vmul.f32 %v2427, %v2429
      %v2431 = vadd.f32 %v2427, %v2430
      %vm2432 = vweird.f32 %v2201
      %vm2433 = vweird.f32 %v2427
      %vm2434 = vmor %vm2432, %vm2433
      %v2435 = vsel %vm2434, %v2427, %v2431
      %v2436 = vand.u32 2147483647, %v2201
      %vm2437 = vcmp.eq.f32.partialorder %v2436, 8.507059e+37
      %v2438 = vand.u32 %v2201, 2147483648
      %v2439 = vor.u32 1.1754944e-38, %v2438
      %v2440 = vsel %vm2437, %v2439, %v2435
      %v2441 = vmul.f32 %v2169, %v2440
      %2442 = vrot.lane.b32.xlu0 %v593, 112
      %v2443 = vpop.permute.xlu0 %2442
      %2444 = vrot.lane.b32.xlu0 %v596, 112
      %v2445 = vpop.permute.xlu0 %2444
      %2446 = vrot.lane.b32.xlu0 %v599, 112
      %v2447 = vpop.permute.xlu0 %2446
      %2448 = vrot.lane.b32.xlu0 %v602, 112
      %v2449 = vpop.permute.xlu0 %2448
      %2450 = vrot.lane.b32.xlu0 %v605, 112
      %v2451 = vpop.permute.xlu0 %2450
      %2452 = vrot.lane.b32.xlu0 %v608, 112
      %v2453 = vpop.permute.xlu0 %2452
      %2454 = vrot.lane.b32.xlu0 %v611, 112
      %v2455 = vpop.permute.xlu0 %2454
      %2456 = vrot.lane.b32.xlu0 %v614, 112
      %v2457 = vpop.permute.xlu0 %2456
      %2458 = vrot.lane.b32.xlu0 %v617, 112
      %v2459 = vpop.permute.xlu0 %2458
      %2460 = vrot.lane.b32.xlu0 %v620, 112
      %v2461 = vpop.permute.xlu0 %2460
      %2462 = vrot.lane.b32.xlu0 %v623, 112
      %v2463 = vpop.permute.xlu0 %2462
      %2464 = vrot.lane.b32.xlu0 %v626, 112
      %v2465 = vpop.permute.xlu0 %2464
      %2466 = vrot.lane.b32.xlu0 %v629, 112
      %v2467 = vpop.permute.xlu0 %2466
      %2468 = vrot.lane.b32.xlu0 %v632, 112
      %v2469 = vpop.permute.xlu0 %2468
      %2470 = vrot.lane.b32.xlu0 %v635, 112
      %v2471 = vpop.permute.xlu0 %2470
      %2472 = vrot.lane.b32.xlu0 %v638, 112
      %v2473 = vpop.permute.xlu0 %2472
      %2490 = vmatpush.msra.mxu0 %v2473
      %2491 = vmatpush.msra.mxu0 %v2471
      %2492 = vmatpush.msra.mxu0 %v2469
      %2493 = vmatpush.msra.mxu0 %v2467
      %2494 = vmatpush.msra.mxu0 %v2465
      %2495 = vmatpush.msra.mxu0 %v2463
      %2496 = vmatpush.msra.mxu0 %v2461
      %2497 = vmatpush.msra.mxu0 %v2459
      %2498 = vmatpush.msra.mxu0 %v2457
      %2499 = vmatpush.msra.mxu0 %v2455
      %2500 = vmatpush.msra.mxu0 %v2453
      %2501 = vmatpush.msra.mxu0 %v2451
      %2502 = vmatpush.msra.mxu0 %v2449
      %2503 = vmatpush.msra.mxu0 %v2447
      %2504 = vmatpush.msra.mxu0 %v2445
      %2505 = vmatpush.msra.mxu0 %v2443
      %2506 = vmatmul.f32.gmra.mxu0 %v2216
      %v2507 = vpop.f32.mrf.mxu0
      %v2508 = vadd.f32 0.0, %v2507
      %2509 = vmatmul.f32.gmra.mxu0 %v2231
      %v2510 = vpop.f32.mrf.mxu0
      %v2511 = vadd.f32 0.0, %v2510
      %2512 = vmatmul.f32.gmra.mxu0 %v2246
      %v2513 = vpop.f32.mrf.mxu0
      %v2514 = vadd.f32 0.0, %v2513
      %2515 = vmatmul.f32.gmra.mxu0 %v2261
      %v2516 = vpop.f32.mrf.mxu0
      %v2517 = vadd.f32 0.0, %v2516
      %2518 = vmatmul.f32.gmra.mxu0 %v2276
      %v2519 = vpop.f32.mrf.mxu0
      %v2520 = vadd.f32 0.0, %v2519
      %2521 = vmatmul.f32.gmra.mxu0 %v2291
      %v2522 = vpop.f32.mrf.mxu0
      %v2523 = vadd.f32 0.0, %v2522
      %2524 = vmatmul.f32.gmra.mxu0 %v2306
      %v2525 = vpop.f32.mrf.mxu0
      %v2526 = vadd.f32 0.0, %v2525
      %2527 = vmatmul.f32.gmra.mxu0 %v2321
      %v2528 = vpop.f32.mrf.mxu0
      %v2529 = vadd.f32 0.0, %v2528
      %2530 = vmatmul.f32.gmra.mxu0 %v2336
      %v2531 = vpop.f32.mrf.mxu0
      %v2532 = vadd.f32 0.0, %v2531
      %2533 = vmatmul.f32.gmra.mxu0 %v2351
      %v2534 = vpop.f32.mrf.mxu0
      %v2535 = vadd.f32 0.0, %v2534
      %2536 = vmatmul.f32.gmra.mxu0 %v2366
      %v2537 = vpop.f32.mrf.mxu0
      %v2538 = vadd.f32 0.0, %v2537
      %2539 = vmatmul.f32.gmra.mxu0 %v2381
      %v2540 = vpop.f32.mrf.mxu0
      %v2541 = vadd.f32 0.0, %v2540
      %2542 = vmatmul.f32.gmra.mxu0 %v2396
      %v2543 = vpop.f32.mrf.mxu0
      %v2544 = vadd.f32 0.0, %v2543
      %2545 = vmatmul.f32.gmra.mxu0 %v2411
      %v2546 = vpop.f32.mrf.mxu0
      %v2547 = vadd.f32 0.0, %v2546
      %2548 = vmatmul.f32.gmra.mxu0 %v2426
      %v2549 = vpop.f32.mrf.mxu0
      %v2550 = vadd.f32 0.0, %v2549
      %2551 = vmatmul.f32.gmra.mxu0 %v2441
      %v2552 = vpop.f32.mrf.mxu0
      %v2553 = vadd.f32 0.0, %v2552
      %2554 = vdwg.mxu0
      %2555 = vrot.lane.b32.xlu0 %v447, 104
      %v2556 = vpop.permute.xlu0 %2555
      %2557 = vrot.lane.b32.xlu0 %v450, 104
      %v2558 = vpop.permute.xlu0 %2557
      %2559 = vrot.lane.b32.xlu0 %v453, 104
      %v2560 = vpop.permute.xlu0 %2559
      %2561 = vrot.lane.b32.xlu0 %v456, 104
      %v2562 = vpop.permute.xlu0 %2561
      %2563 = vrot.lane.b32.xlu0 %v459, 104
      %v2564 = vpop.permute.xlu0 %2563
      %2565 = vrot.lane.b32.xlu0 %v462, 104
      %v2566 = vpop.permute.xlu0 %2565
      %2567 = vrot.lane.b32.xlu0 %v465, 104
      %v2568 = vpop.permute.xlu0 %2567
      %2569 = vrot.lane.b32.xlu0 %v468, 104
      %v2570 = vpop.permute.xlu0 %2569
      %2571 = vrot.lane.b32.xlu0 %v471, 104
      %v2572 = vpop.permute.xlu0 %2571
      %2573 = vrot.lane.b32.xlu0 %v474, 104
      %v2574 = vpop.permute.xlu0 %2573
      %2575 = vrot.lane.b32.xlu0 %v477, 104
      %v2576 = vpop.permute.xlu0 %2575
      %2577 = vrot.lane.b32.xlu0 %v480, 104
      %v2578 = vpop.permute.xlu0 %2577
      %2579 = vrot.lane.b32.xlu0 %v483, 104
      %v2580 = vpop.permute.xlu0 %2579
      %2581 = vrot.lane.b32.xlu0 %v486, 104
      %v2582 = vpop.permute.xlu0 %2581
      %2583 = vrot.lane.b32.xlu0 %v489, 104
      %v2584 = vpop.permute.xlu0 %2583
      %2585 = vrot.lane.b32.xlu0 %v492, 104
      %v2586 = vpop.permute.xlu0 %2585
      %2587 = vrot.lane.b32.xlu0 %v520, 104
      %v2588 = vpop.permute.xlu0 %2587
      %2589 = vrot.lane.b32.xlu0 %v523, 104
      %v2590 = vpop.permute.xlu0 %2589
      %2591 = vrot.lane.b32.xlu0 %v526, 104
      %v2592 = vpop.permute.xlu0 %2591
      %2593 = vrot.lane.b32.xlu0 %v529, 104
      %v2594 = vpop.permute.xlu0 %2593
      %2595 = vrot.lane.b32.xlu0 %v532, 104
      %v2596 = vpop.permute.xlu0 %2595
      %2597 = vrot.lane.b32.xlu0 %v535, 104
      %v2598 = vpop.permute.xlu0 %2597
      %2599 = vrot.lane.b32.xlu0 %v538, 104
      %v2600 = vpop.permute.xlu0 %2599
      %2601 = vrot.lane.b32.xlu0 %v541, 104
      %v2602 = vpop.permute.xlu0 %2601
      %2603 = vrot.lane.b32.xlu0 %v544, 104
      %v2604 = vpop.permute.xlu0 %2603
      %2605 = vrot.lane.b32.xlu0 %v547, 104
      %v2606 = vpop.permute.xlu0 %2605
      %2607 = vrot.lane.b32.xlu0 %v550, 104
      %v2608 = vpop.permute.xlu0 %2607
      %2609 = vrot.lane.b32.xlu0 %v553, 104
      %v2610 = vpop.permute.xlu0 %2609
      %2611 = vrot.lane.b32.xlu0 %v556, 104
      %v2612 = vpop.permute.xlu0 %2611
      %2613 = vrot.lane.b32.xlu0 %v559, 104
      %v2614 = vpop.permute.xlu0 %2613
      %2615 = vrot.lane.b32.xlu0 %v562, 104
      %v2616 = vpop.permute.xlu0 %2615
      %2617 = vrot.lane.b32.xlu0 %v565, 104
      %v2618 = vpop.permute.xlu0 %2617
      %v2619 = vsel %vm644, %v2556, 0
      %v2621 = vsel %vm644, %v2558, 0
      %v2623 = vsel %vm644, %v2560, 0
      %v2625 = vsel %vm644, %v2562, 0
      %v2627 = vsel %vm644, %v2564, 0
      %v2629 = vsel %vm644, %v2566, 0
      %v2631 = vsel %vm644, %v2568, 0
      %v2633 = vsel %vm644, %v2570, 0
      %v2635 = vsel %vm644, %v2572, 0
      %v2637 = vsel %vm644, %v2574, 0
      %v2639 = vsel %vm644, %v2576, 0
      %v2641 = vsel %vm644, %v2578, 0
      %v2643 = vsel %vm644, %v2580, 0
      %v2645 = vsel %vm644, %v2582, 0
      %v2647 = vsel %vm644, %v2584, 0
      %v2649 = vsel %vm644, %v2586, 0
      %v2651 = vsel %vm644, %v2588, 0
      %v2653 = vsel %vm644, %v2590, 0
      %v2655 = vsel %vm644, %v2592, 0
      %v2657 = vsel %vm644, %v2594, 0
      %v2659 = vsel %vm644, %v2596, 0
      %v2661 = vsel %vm644, %v2598, 0
      %v2663 = vsel %vm644, %v2600, 0
      %v2665 = vsel %vm644, %v2602, 0
      %v2667 = vsel %vm644, %v2604, 0
      %v2669 = vsel %vm644, %v2606, 0
      %v2671 = vsel %vm644, %v2608, 0
      %v2673 = vsel %vm644, %v2610, 0
      %v2675 = vsel %vm644, %v2612, 0
      %v2677 = vsel %vm644, %v2614, 0
      %v2679 = vsel %vm644, %v2616, 0
      %v2681 = vsel %vm644, %v2618, 0
      %2683 = vmatpush.xpose.msra.mxu0 %v2681
      %2684 = vmatpush.xpose.msra.mxu0 %v2679
      %2685 = vmatpush.xpose.msra.mxu0 %v2677
      %2686 = vmatpush.xpose.msra.mxu0 %v2675
      %2687 = vmatpush.xpose.msra.mxu0 %v2673
      %2688 = vmatpush.xpose.msra.mxu0 %v2671
      %2689 = vmatpush.xpose.msra.mxu0 %v2669
      %2690 = vmatpush.xpose.msra.mxu0 %v2667
      %2691 = vmatpush.xpose.msra.mxu0 %v2665
      %2692 = vmatpush.xpose.msra.mxu0 %v2663
      %2693 = vmatpush.xpose.msra.mxu0 %v2661
      %2694 = vmatpush.xpose.msra.mxu0 %v2659
      %2695 = vmatpush.xpose.msra.mxu0 %v2657
      %2696 = vmatpush.xpose.msra.mxu0 %v2655
      %2697 = vmatpush.xpose.msra.mxu0 %v2653
      %2698 = vmatpush.xpose.msra.mxu0 %v2651
      %2699 = vmatmul.f32.gmra.mxu0 %v2619
      %v2700 = vpop.f32.mrf.mxu0
      %v2701 = vadd.f32 %v643, %v2700
      %2702 = vmatmul.f32.gmra.mxu0 %v2621
      %v2703 = vpop.f32.mrf.mxu0
      %v2704 = vadd.f32 %v643, %v2703
      %2705 = vmatmul.f32.gmra.mxu0 %v2623
      %v2706 = vpop.f32.mrf.mxu0
      %v2707 = vadd.f32 %v643, %v2706
      %2708 = vmatmul.f32.gmra.mxu0 %v2625
      %v2709 = vpop.f32.mrf.mxu0
      %v2710 = vadd.f32 %v643, %v2709
      %2711 = vmatmul.f32.gmra.mxu0 %v2627
      %v2712 = vpop.f32.mrf.mxu0
      %v2713 = vadd.f32 %v643, %v2712
      %2714 = vmatmul.f32.gmra.mxu0 %v2629
      %v2715 = vpop.f32.mrf.mxu0
      %v2716 = vadd.f32 %v643, %v2715
      %2717 = vmatmul.f32.gmra.mxu0 %v2631
      %v2718 = vpop.f32.mrf.mxu0
      %v2719 = vadd.f32 %v643, %v2718
      %2720 = vmatmul.f32.gmra.mxu0 %v2633
      %v2721 = vpop.f32.mrf.mxu0
      %v2722 = vadd.f32 %v643, %v2721
      %2723 = vmatmul.f32.gmra.mxu0 %v2635
      %v2724 = vpop.f32.mrf.mxu0
      %v2725 = vadd.f32 %v643, %v2724
      %2726 = vmatmul.f32.gmra.mxu0 %v2637
      %v2727 = vpop.f32.mrf.mxu0
      %v2728 = vadd.f32 %v643, %v2727
      %2729 = vmatmul.f32.gmra.mxu0 %v2639
      %v2730 = vpop.f32.mrf.mxu0
      %v2731 = vadd.f32 %v643, %v2730
      %2732 = vmatmul.f32.gmra.mxu0 %v2641
      %v2733 = vpop.f32.mrf.mxu0
      %v2734 = vadd.f32 %v643, %v2733
      %2735 = vmatmul.f32.gmra.mxu0 %v2643
      %v2736 = vpop.f32.mrf.mxu0
      %v2737 = vadd.f32 %v643, %v2736
      %2738 = vmatmul.f32.gmra.mxu0 %v2645
      %v2739 = vpop.f32.mrf.mxu0
      %v2740 = vadd.f32 %v643, %v2739
      %2741 = vmatmul.f32.gmra.mxu0 %v2647
      %v2742 = vpop.f32.mrf.mxu0
      %v2743 = vadd.f32 %v643, %v2742
      %2744 = vmatmul.f32.gmra.mxu0 %v2649
      %v2745 = vpop.f32.mrf.mxu0
      %v2746 = vadd.f32 %v643, %v2745
      %2747 = vdwg.mxu0
      %2748 = vmax.xlane.f32.xlu0 %v2701
      %v2749 = vpop.xlane.xlu0 %2748
      %2750 = vmax.xlane.f32.xlu0 %v2704
      %v2751 = vpop.xlane.xlu0 %2750
      %2752 = vmax.xlane.f32.xlu0 %v2707
      %v2753 = vpop.xlane.xlu0 %2752
      %2754 = vmax.xlane.f32.xlu0 %v2710
      %v2755 = vpop.xlane.xlu0 %2754
      %2756 = vmax.xlane.f32.xlu0 %v2713
      %v2757 = vpop.xlane.xlu0 %2756
      %2758 = vmax.xlane.f32.xlu0 %v2716
      %v2759 = vpop.xlane.xlu0 %2758
      %2760 = vmax.xlane.f32.xlu0 %v2719
      %v2761 = vpop.xlane.xlu0 %2760
      %2762 = vmax.xlane.f32.xlu0 %v2722
      %v2763 = vpop.xlane.xlu0 %2762
      %2764 = vmax.xlane.f32.xlu0 %v2725
      %v2765 = vpop.xlane.xlu0 %2764
      %2766 = vmax.xlane.f32.xlu0 %v2728
      %v2767 = vpop.xlane.xlu0 %2766
      %2768 = vmax.xlane.f32.xlu0 %v2731
      %v2769 = vpop.xlane.xlu0 %2768
      %2770 = vmax.xlane.f32.xlu0 %v2734
      %v2771 = vpop.xlane.xlu0 %2770
      %2772 = vmax.xlane.f32.xlu0 %v2737
      %v2773 = vpop.xlane.xlu0 %2772
      %2774 = vmax.xlane.f32.xlu0 %v2740
      %v2775 = vpop.xlane.xlu0 %2774
      %2776 = vmax.xlane.f32.xlu0 %v2743
      %v2777 = vpop.xlane.xlu0 %2776
      %2778 = vmax.xlane.f32.xlu0 %v2746
      %v2779 = vpop.xlane.xlu0 %2778
      %v2780 = vsub.f32 %v2701, %v2749
      %v2781 = vsub.f32 %v2704, %v2751
      %v2782 = vsub.f32 %v2707, %v2753
      %v2783 = vsub.f32 %v2710, %v2755
      %v2784 = vsub.f32 %v2713, %v2757
      %v2785 = vsub.f32 %v2716, %v2759
      %v2786 = vsub.f32 %v2719, %v2761
      %v2787 = vsub.f32 %v2722, %v2763
      %v2788 = vsub.f32 %v2725, %v2765
      %v2789 = vsub.f32 %v2728, %v2767
      %v2790 = vsub.f32 %v2731, %v2769
      %v2791 = vsub.f32 %v2734, %v2771
      %v2792 = vsub.f32 %v2737, %v2773
      %v2793 = vsub.f32 %v2740, %v2775
      %v2794 = vsub.f32 %v2743, %v2777
      %v2795 = vsub.f32 %v2746, %v2779
      %v2796 = vmul.f32 %v2780, 1.442695
      %v2797 = vpow.pop %v2796
      %v2798 = vmul.f32 %v2781, 1.442695
      %v2799 = vpow.pop %v2798
      %v2800 = vmul.f32 %v2782, 1.442695
      %v2801 = vpow.pop %v2800
      %v2802 = vmul.f32 %v2783, 1.442695
      %v2803 = vpow.pop %v2802
      %v2804 = vmul.f32 %v2784, 1.442695
      %v2805 = vpow.pop %v2804
      %v2806 = vmul.f32 %v2785, 1.442695
      %v2807 = vpow.pop %v2806
      %v2808 = vmul.f32 %v2786, 1.442695
      %v2809 = vpow.pop %v2808
      %v2810 = vmul.f32 %v2787, 1.442695
      %v2811 = vpow.pop %v2810
      %v2812 = vmul.f32 %v2788, 1.442695
      %v2813 = vpow.pop %v2812
      %v2814 = vmul.f32 %v2789, 1.442695
      %v2815 = vpow.pop %v2814
      %v2816 = vmul.f32 %v2790, 1.442695
      %v2817 = vpow.pop %v2816
      %v2818 = vmul.f32 %v2791, 1.442695
      %v2819 = vpow.pop %v2818
      %v2820 = vmul.f32 %v2792, 1.442695
      %v2821 = vpow.pop %v2820
      %v2822 = vmul.f32 %v2793, 1.442695
      %v2823 = vpow.pop %v2822
      %v2824 = vmul.f32 %v2794, 1.442695
      %v2825 = vpow.pop %v2824
      %v2826 = vmul.f32 %v2795, 1.442695
      %v2827 = vpow.pop %v2826
      %2828 = vadd.xlane.f32.xlu0 %v2797
      %v2829 = vpop.xlane.xlu0 %2828
      %2830 = vadd.xlane.f32.xlu0 %v2799
      %v2831 = vpop.xlane.xlu0 %2830
      %2832 = vadd.xlane.f32.xlu0 %v2801
      %v2833 = vpop.xlane.xlu0 %2832
      %2834 = vadd.xlane.f32.xlu0 %v2803
      %v2835 = vpop.xlane.xlu0 %2834
      %2836 = vadd.xlane.f32.xlu0 %v2805
      %v2837 = vpop.xlane.xlu0 %2836
      %2838 = vadd.xlane.f32.xlu0 %v2807
      %v2839 = vpop.xlane.xlu0 %2838
      %2840 = vadd.xlane.f32.xlu0 %v2809
      %v2841 = vpop.xlane.xlu0 %2840
      %2842 = vadd.xlane.f32.xlu0 %v2811
      %v2843 = vpop.xlane.xlu0 %2842
      %2844 = vadd.xlane.f32.xlu0 %v2813
      %v2845 = vpop.xlane.xlu0 %2844
      %2846 = vadd.xlane.f32.xlu0 %v2815
      %v2847 = vpop.xlane.xlu0 %2846
      %2848 = vadd.xlane.f32.xlu0 %v2817
      %v2849 = vpop.xlane.xlu0 %2848
      %2850 = vadd.xlane.f32.xlu0 %v2819
      %v2851 = vpop.xlane.xlu0 %2850
      %2852 = vadd.xlane.f32.xlu0 %v2821
      %v2853 = vpop.xlane.xlu0 %2852
      %2854 = vadd.xlane.f32.xlu0 %v2823
      %v2855 = vpop.xlane.xlu0 %2854
      %2856 = vadd.xlane.f32.xlu0 %v2825
      %v2857 = vpop.xlane.xlu0 %2856
      %2858 = vadd.xlane.f32.xlu0 %v2827
      %v2859 = vpop.xlane.xlu0 %2858
      %v2860 = vrcp.pop %v2829
      %v2861 = vmul.f32 %v2829, %v2860
      %v2862 = vsub.f32 1.0, %v2861
      %v2863 = vmul.f32 %v2860, %v2862
      %v2864 = vadd.f32 %v2860, %v2863
      %vm2865 = vweird.f32 %v2829
      %vm2866 = vweird.f32 %v2860
      %vm2867 = vmor %vm2865, %vm2866
      %v2868 = vsel %vm2867, %v2860, %v2864
      %v2869 = vand.u32 2147483647, %v2829
      %vm2870 = vcmp.eq.f32.partialorder %v2869, 8.507059e+37
      %v2871 = vand.u32 %v2829, 2147483648
      %v2872 = vor.u32 1.1754944e-38, %v2871
      %v2873 = vsel %vm2870, %v2872, %v2868
      %v2874 = vmul.f32 %v2797, %v2873
      %v2875 = vrcp.pop %v2831
      %v2876 = vmul.f32 %v2831, %v2875
      %v2877 = vsub.f32 1.0, %v2876
      %v2878 = vmul.f32 %v2875, %v2877
      %v2879 = vadd.f32 %v2875, %v2878
      %vm2880 = vweird.f32 %v2831
      %vm2881 = vweird.f32 %v2875
      %vm2882 = vmor %vm2880, %vm2881
      %v2883 = vsel %vm2882, %v2875, %v2879
      %v2884 = vand.u32 2147483647, %v2831
      %vm2885 = vcmp.eq.f32.partialorder %v2884, 8.507059e+37
      %v2886 = vand.u32 %v2831, 2147483648
      %v2887 = vor.u32 1.1754944e-38, %v2886
      %v2888 = vsel %vm2885, %v2887, %v2883
      %v2889 = vmul.f32 %v2799, %v2888
      %v2890 = vrcp.pop %v2833
      %v2891 = vmul.f32 %v2833, %v2890
      %v2892 = vsub.f32 1.0, %v2891
      %v2893 = vmul.f32 %v2890, %v2892
      %v2894 = vadd.f32 %v2890, %v2893
      %vm2895 = vweird.f32 %v2833
      %vm2896 = vweird.f32 %v2890
      %vm2897 = vmor %vm2895, %vm2896
      %v2898 = vsel %vm2897, %v2890, %v2894
      %v2899 = vand.u32 2147483647, %v2833
      %vm2900 = vcmp.eq.f32.partialorder %v2899, 8.507059e+37
      %v2901 = vand.u32 %v2833, 2147483648
      %v2902 = vor.u32 1.1754944e-38, %v2901
      %v2903 = vsel %vm2900, %v2902, %v2898
      %v2904 = vmul.f32 %v2801, %v2903
      %v2905 = vrcp.pop %v2835
      %v2906 = vmul.f32 %v2835, %v2905
      %v2907 = vsub.f32 1.0, %v2906
      %v2908 = vmul.f32 %v2905, %v2907
      %v2909 = vadd.f32 %v2905, %v2908
      %vm2910 = vweird.f32 %v2835
      %vm2911 = vweird.f32 %v2905
      %vm2912 = vmor %vm2910, %vm2911
      %v2913 = vsel %vm2912, %v2905, %v2909
      %v2914 = vand.u32 2147483647, %v2835
      %vm2915 = vcmp.eq.f32.partialorder %v2914, 8.507059e+37
      %v2916 = vand.u32 %v2835, 2147483648
      %v2917 = vor.u32 1.1754944e-38, %v2916
      %v2918 = vsel %vm2915, %v2917, %v2913
      %v2919 = vmul.f32 %v2803, %v2918
      %v2920 = vrcp.pop %v2837
      %v2921 = vmul.f32 %v2837, %v2920
      %v2922 = vsub.f32 1.0, %v2921
      %v2923 = vmul.f32 %v2920, %v2922
      %v2924 = vadd.f32 %v2920, %v2923
      %vm2925 = vweird.f32 %v2837
      %vm2926 = vweird.f32 %v2920
      %vm2927 = vmor %vm2925, %vm2926
      %v2928 = vsel %vm2927, %v2920, %v2924
      %v2929 = vand.u32 2147483647, %v2837
      %vm2930 = vcmp.eq.f32.partialorder %v2929, 8.507059e+37
      %v2931 = vand.u32 %v2837, 2147483648
      %v2932 = vor.u32 1.1754944e-38, %v2931
      %v2933 = vsel %vm2930, %v2932, %v2928
      %v2934 = vmul.f32 %v2805, %v2933
      %v2935 = vrcp.pop %v2839
      %v2936 = vmul.f32 %v2839, %v2935
      %v2937 = vsub.f32 1.0, %v2936
      %v2938 = vmul.f32 %v2935, %v2937
      %v2939 = vadd.f32 %v2935, %v2938
      %vm2940 = vweird.f32 %v2839
      %vm2941 = vweird.f32 %v2935
      %vm2942 = vmor %vm2940, %vm2941
      %v2943 = vsel %vm2942, %v2935, %v2939
      %v2944 = vand.u32 2147483647, %v2839
      %vm2945 = vcmp.eq.f32.partialorder %v2944, 8.507059e+37
      %v2946 = vand.u32 %v2839, 2147483648
      %v2947 = vor.u32 1.1754944e-38, %v2946
      %v2948 = vsel %vm2945, %v2947, %v2943
      %v2949 = vmul.f32 %v2807, %v2948
      %v2950 = vrcp.pop %v2841
      %v2951 = vmul.f32 %v2841, %v2950
      %v2952 = vsub.f32 1.0, %v2951
      %v2953 = vmul.f32 %v2950, %v2952
      %v2954 = vadd.f32 %v2950, %v2953
      %vm2955 = vweird.f32 %v2841
      %vm2956 = vweird.f32 %v2950
      %vm2957 = vmor %vm2955, %vm2956
      %v2958 = vsel %vm2957, %v2950, %v2954
      %v2959 = vand.u32 2147483647, %v2841
      %vm2960 = vcmp.eq.f32.partialorder %v2959, 8.507059e+37
      %v2961 = vand.u32 %v2841, 2147483648
      %v2962 = vor.u32 1.1754944e-38, %v2961
      %v2963 = vsel %vm2960, %v2962, %v2958
      %v2964 = vmul.f32 %v2809, %v2963
      %v2965 = vrcp.pop %v2843
      %v2966 = vmul.f32 %v2843, %v2965
      %v2967 = vsub.f32 1.0, %v2966
      %v2968 = vmul.f32 %v2965, %v2967
      %v2969 = vadd.f32 %v2965, %v2968
      %vm2970 = vweird.f32 %v2843
      %vm2971 = vweird.f32 %v2965
      %vm2972 = vmor %vm2970, %vm2971
      %v2973 = vsel %vm2972, %v2965, %v2969
      %v2974 = vand.u32 2147483647, %v2843
      %vm2975 = vcmp.eq.f32.partialorder %v2974, 8.507059e+37
      %v2976 = vand.u32 %v2843, 2147483648
      %v2977 = vor.u32 1.1754944e-38, %v2976
      %v2978 = vsel %vm2975, %v2977, %v2973
      %v2979 = vmul.f32 %v2811, %v2978
      %v2980 = vrcp.pop %v2845
      %v2981 = vmul.f32 %v2845, %v2980
      %v2982 = vsub.f32 1.0, %v2981
      %v2983 = vmul.f32 %v2980, %v2982
      %v2984 = vadd.f32 %v2980, %v2983
      %vm2985 = vweird.f32 %v2845
      %vm2986 = vweird.f32 %v2980
      %vm2987 = vmor %vm2985, %vm2986
      %v2988 = vsel %vm2987, %v2980, %v2984
      %v2989 = vand.u32 2147483647, %v2845
      %vm2990 = vcmp.eq.f32.partialorder %v2989, 8.507059e+37
      %v2991 = vand.u32 %v2845, 2147483648
      %v2992 = vor.u32 1.1754944e-38, %v2991
      %v2993 = vsel %vm2990, %v2992, %v2988
      %v2994 = vmul.f32 %v2813, %v2993
      %v2995 = vrcp.pop %v2847
      %v2996 = vmul.f32 %v2847, %v2995
      %v2997 = vsub.f32 1.0, %v2996
      %v2998 = vmul.f32 %v2995, %v2997
      %v2999 = vadd.f32 %v2995, %v2998
      %vm3000 = vweird.f32 %v2847
      %vm3001 = vweird.f32 %v2995
      %vm3002 = vmor %vm3000, %vm3001
      %v3003 = vsel %vm3002, %v2995, %v2999
      %v3004 = vand.u32 2147483647, %v2847
      %vm3005 = vcmp.eq.f32.partialorder %v3004, 8.507059e+37
      %v3006 = vand.u32 %v2847, 2147483648
      %v3007 = vor.u32 1.1754944e-38, %v3006
      %v3008 = vsel %vm3005, %v3007, %v3003
      %v3009 = vmul.f32 %v2815, %v3008
      %v3010 = vrcp.pop %v2849
      %v3011 = vmul.f32 %v2849, %v3010
      %v3012 = vsub.f32 1.0, %v3011
      %v3013 = vmul.f32 %v3010, %v3012
      %v3014 = vadd.f32 %v3010, %v3013
      %vm3015 = vweird.f32 %v2849
      %vm3016 = vweird.f32 %v3010
      %vm3017 = vmor %vm3015, %vm3016
      %v3018 = vsel %vm3017, %v3010, %v3014
      %v3019 = vand.u32 2147483647, %v2849
      %vm3020 = vcmp.eq.f32.partialorder %v3019, 8.507059e+37
      %v3021 = vand.u32 %v2849, 2147483648
      %v3022 = vor.u32 1.1754944e-38, %v3021
      %v3023 = vsel %vm3020, %v3022, %v3018
      %v3024 = vmul.f32 %v2817, %v3023
      %v3025 = vrcp.pop %v2851
      %v3026 = vmul.f32 %v2851, %v3025
      %v3027 = vsub.f32 1.0, %v3026
      %v3028 = vmul.f32 %v3025, %v3027
      %v3029 = vadd.f32 %v3025, %v3028
      %vm3030 = vweird.f32 %v2851
      %vm3031 = vweird.f32 %v3025
      %vm3032 = vmor %vm3030, %vm3031
      %v3033 = vsel %vm3032, %v3025, %v3029
      %v3034 = vand.u32 2147483647, %v2851
      %vm3035 = vcmp.eq.f32.partialorder %v3034, 8.507059e+37
      %v3036 = vand.u32 %v2851, 2147483648
      %v3037 = vor.u32 1.1754944e-38, %v3036
      %v3038 = vsel %vm3035, %v3037, %v3033
      %v3039 = vmul.f32 %v2819, %v3038
      %v3040 = vrcp.pop %v2853
      %v3041 = vmul.f32 %v2853, %v3040
      %v3042 = vsub.f32 1.0, %v3041
      %v3043 = vmul.f32 %v3040, %v3042
      %v3044 = vadd.f32 %v3040, %v3043
      %vm3045 = vweird.f32 %v2853
      %vm3046 = vweird.f32 %v3040
      %vm3047 = vmor %vm3045, %vm3046
      %v3048 = vsel %vm3047, %v3040, %v3044
      %v3049 = vand.u32 2147483647, %v2853
      %vm3050 = vcmp.eq.f32.partialorder %v3049, 8.507059e+37
      %v3051 = vand.u32 %v2853, 2147483648
      %v3052 = vor.u32 1.1754944e-38, %v3051
      %v3053 = vsel %vm3050, %v3052, %v3048
      %v3054 = vmul.f32 %v2821, %v3053
      %v3055 = vrcp.pop %v2855
      %v3056 = vmul.f32 %v2855, %v3055
      %v3057 = vsub.f32 1.0, %v3056
      %v3058 = vmul.f32 %v3055, %v3057
      %v3059 = vadd.f32 %v3055, %v3058
      %vm3060 = vweird.f32 %v2855
      %vm3061 = vweird.f32 %v3055
      %vm3062 = vmor %vm3060, %vm3061
      %v3063 = vsel %vm3062, %v3055, %v3059
      %v3064 = vand.u32 2147483647, %v2855
      %vm3065 = vcmp.eq.f32.partialorder %v3064, 8.507059e+37
      %v3066 = vand.u32 %v2855, 2147483648
      %v3067 = vor.u32 1.1754944e-38, %v3066
      %v3068 = vsel %vm3065, %v3067, %v3063
      %v3069 = vmul.f32 %v2823, %v3068
      %v3070 = vrcp.pop %v2857
      %v3071 = vmul.f32 %v2857, %v3070
      %v3072 = vsub.f32 1.0, %v3071
      %v3073 = vmul.f32 %v3070, %v3072
      %v3074 = vadd.f32 %v3070, %v3073
      %vm3075 = vweird.f32 %v2857
      %vm3076 = vweird.f32 %v3070
      %vm3077 = vmor %vm3075, %vm3076
      %v3078 = vsel %vm3077, %v3070, %v3074
      %v3079 = vand.u32 2147483647, %v2857
      %vm3080 = vcmp.eq.f32.partialorder %v3079, 8.507059e+37
      %v3081 = vand.u32 %v2857, 2147483648
      %v3082 = vor.u32 1.1754944e-38, %v3081
      %v3083 = vsel %vm3080, %v3082, %v3078
      %v3084 = vmul.f32 %v2825, %v3083
      %v3085 = vrcp.pop %v2859
      %v3086 = vmul.f32 %v2859, %v3085
      %v3087 = vsub.f32 1.0, %v3086
      %v3088 = vmul.f32 %v3085, %v3087
      %v3089 = vadd.f32 %v3085, %v3088
      %vm3090 = vweird.f32 %v2859
      %vm3091 = vweird.f32 %v3085
      %vm3092 = vmor %vm3090, %vm3091
      %v3093 = vsel %vm3092, %v3085, %v3089
      %v3094 = vand.u32 2147483647, %v2859
      %vm3095 = vcmp.eq.f32.partialorder %v3094, 8.507059e+37
      %v3096 = vand.u32 %v2859, 2147483648
      %v3097 = vor.u32 1.1754944e-38, %v3096
      %v3098 = vsel %vm3095, %v3097, %v3093
      %v3099 = vmul.f32 %v2827, %v3098
      %3100 = vrot.lane.b32.xlu0 %v593, 104
      %v3101 = vpop.permute.xlu0 %3100
      %3102 = vrot.lane.b32.xlu0 %v596, 104
      %v3103 = vpop.permute.xlu0 %3102
      %3104 = vrot.lane.b32.xlu0 %v599, 104
      %v3105 = vpop.permute.xlu0 %3104
      %3106 = vrot.lane.b32.xlu0 %v602, 104
      %v3107 = vpop.permute.xlu0 %3106
      %3108 = vrot.lane.b32.xlu0 %v605, 104
      %v3109 = vpop.permute.xlu0 %3108
      %3110 = vrot.lane.b32.xlu0 %v608, 104
      %v3111 = vpop.permute.xlu0 %3110
      %3112 = vrot.lane.b32.xlu0 %v611, 104
      %v3113 = vpop.permute.xlu0 %3112
      %3114 = vrot.lane.b32.xlu0 %v614, 104
      %v3115 = vpop.permute.xlu0 %3114
      %3116 = vrot.lane.b32.xlu0 %v617, 104
      %v3117 = vpop.permute.xlu0 %3116
      %3118 = vrot.lane.b32.xlu0 %v620, 104
      %v3119 = vpop.permute.xlu0 %3118
      %3120 = vrot.lane.b32.xlu0 %v623, 104
      %v3121 = vpop.permute.xlu0 %3120
      %3122 = vrot.lane.b32.xlu0 %v626, 104
      %v3123 = vpop.permute.xlu0 %3122
      %3124 = vrot.lane.b32.xlu0 %v629, 104
      %v3125 = vpop.permute.xlu0 %3124
      %3126 = vrot.lane.b32.xlu0 %v632, 104
      %v3127 = vpop.permute.xlu0 %3126
      %3128 = vrot.lane.b32.xlu0 %v635, 104
      %v3129 = vpop.permute.xlu0 %3128
      %3130 = vrot.lane.b32.xlu0 %v638, 104
      %v3131 = vpop.permute.xlu0 %3130
      %3148 = vmatpush.msra.mxu0 %v3131
      %3149 = vmatpush.msra.mxu0 %v3129
      %3150 = vmatpush.msra.mxu0 %v3127
      %3151 = vmatpush.msra.mxu0 %v3125
      %3152 = vmatpush.msra.mxu0 %v3123
      %3153 = vmatpush.msra.mxu0 %v3121
      %3154 = vmatpush.msra.mxu0 %v3119
      %3155 = vmatpush.msra.mxu0 %v3117
      %3156 = vmatpush.msra.mxu0 %v3115
      %3157 = vmatpush.msra.mxu0 %v3113
      %3158 = vmatpush.msra.mxu0 %v3111
      %3159 = vmatpush.msra.mxu0 %v3109
      %3160 = vmatpush.msra.mxu0 %v3107
      %3161 = vmatpush.msra.mxu0 %v3105
      %3162 = vmatpush.msra.mxu0 %v3103
      %3163 = vmatpush.msra.mxu0 %v3101
      %3164 = vmatmul.f32.gmra.mxu0 %v2874
      %v3165 = vpop.f32.mrf.mxu0
      %v3166 = vadd.f32 0.0, %v3165
      %3167 = vmatmul.f32.gmra.mxu0 %v2889
      %v3168 = vpop.f32.mrf.mxu0
      %v3169 = vadd.f32 0.0, %v3168
      %3170 = vmatmul.f32.gmra.mxu0 %v2904
      %v3171 = vpop.f32.mrf.mxu0
      %v3172 = vadd.f32 0.0, %v3171
      %3173 = vmatmul.f32.gmra.mxu0 %v2919
      %v3174 = vpop.f32.mrf.mxu0
      %v3175 = vadd.f32 0.0, %v3174
      %3176 = vmatmul.f32.gmra.mxu0 %v2934
      %v3177 = vpop.f32.mrf.mxu0
      %v3178 = vadd.f32 0.0, %v3177
      %3179 = vmatmul.f32.gmra.mxu0 %v2949
      %v3180 = vpop.f32.mrf.mxu0
      %v3181 = vadd.f32 0.0, %v3180
      %3182 = vmatmul.f32.gmra.mxu0 %v2964
      %v3183 = vpop.f32.mrf.mxu0
      %v3184 = vadd.f32 0.0, %v3183
      %3185 = vmatmul.f32.gmra.mxu0 %v2979
      %v3186 = vpop.f32.mrf.mxu0
      %v3187 = vadd.f32 0.0, %v3186
      %3188 = vmatmul.f32.gmra.mxu0 %v2994
      %v3189 = vpop.f32.mrf.mxu0
      %v3190 = vadd.f32 0.0, %v3189
      %3191 = vmatmul.f32.gmra.mxu0 %v3009
      %v3192 = vpop.f32.mrf.mxu0
      %v3193 = vadd.f32 0.0, %v3192
      %3194 = vmatmul.f32.gmra.mxu0 %v3024
      %v3195 = vpop.f32.mrf.mxu0
      %v3196 = vadd.f32 0.0, %v3195
      %3197 = vmatmul.f32.gmra.mxu0 %v3039
      %v3198 = vpop.f32.mrf.mxu0
      %v3199 = vadd.f32 0.0, %v3198
      %3200 = vmatmul.f32.gmra.mxu0 %v3054
      %v3201 = vpop.f32.mrf.mxu0
      %v3202 = vadd.f32 0.0, %v3201
      %3203 = vmatmul.f32.gmra.mxu0 %v3069
      %v3204 = vpop.f32.mrf.mxu0
      %v3205 = vadd.f32 0.0, %v3204
      %3206 = vmatmul.f32.gmra.mxu0 %v3084
      %v3207 = vpop.f32.mrf.mxu0
      %v3208 = vadd.f32 0.0, %v3207
      %3209 = vmatmul.f32.gmra.mxu0 %v3099
      %v3210 = vpop.f32.mrf.mxu0
      %v3211 = vadd.f32 0.0, %v3210
      %3212 = vdwg.mxu0
      %3229 = vrot.lane.b32.xlu0 %v1850, 8
      %v3230 = vpop.permute.xlu0 %3229
      %3231 = vrot.lane.b32.xlu0 %v1853, 8
      %v3232 = vpop.permute.xlu0 %3231
      %3233 = vrot.lane.b32.xlu0 %v1856, 8
      %v3234 = vpop.permute.xlu0 %3233
      %3235 = vrot.lane.b32.xlu0 %v1859, 8
      %v3236 = vpop.permute.xlu0 %3235
      %3237 = vrot.lane.b32.xlu0 %v1862, 8
      %v3238 = vpop.permute.xlu0 %3237
      %3239 = vrot.lane.b32.xlu0 %v1865, 8
      %v3240 = vpop.permute.xlu0 %3239
      %3241 = vrot.lane.b32.xlu0 %v1868, 8
      %v3242 = vpop.permute.xlu0 %3241
      %3243 = vrot.lane.b32.xlu0 %v1871, 8
      %v3244 = vpop.permute.xlu0 %3243
      %3245 = vrot.lane.b32.xlu0 %v1874, 8
      %v3246 = vpop.permute.xlu0 %3245
      %3247 = vrot.lane.b32.xlu0 %v1877, 8
      %v3248 = vpop.permute.xlu0 %3247
      %3249 = vrot.lane.b32.xlu0 %v1880, 8
      %v3250 = vpop.permute.xlu0 %3249
      %3251 = vrot.lane.b32.xlu0 %v1883, 8
      %v3252 = vpop.permute.xlu0 %3251
      %3253 = vrot.lane.b32.xlu0 %v1886, 8
      %v3254 = vpop.permute.xlu0 %3253
      %3255 = vrot.lane.b32.xlu0 %v1889, 8
      %v3256 = vpop.permute.xlu0 %3255
      %3257 = vrot.lane.b32.xlu0 %v1892, 8
      %v3258 = vpop.permute.xlu0 %3257
      %3259 = vrot.lane.b32.xlu0 %v1895, 8
      %v3260 = vpop.permute.xlu0 %3259
      %3293 = vrot.lane.b32.xlu0 %v2508, 16
      %v3294 = vpop.permute.xlu0 %3293
      %3295 = vrot.lane.b32.xlu0 %v2511, 16
      %v3296 = vpop.permute.xlu0 %3295
      %3297 = vrot.lane.b32.xlu0 %v2514, 16
      %v3298 = vpop.permute.xlu0 %3297
      %3299 = vrot.lane.b32.xlu0 %v2517, 16
      %v3300 = vpop.permute.xlu0 %3299
      %3301 = vrot.lane.b32.xlu0 %v2520, 16
      %v3302 = vpop.permute.xlu0 %3301
      %3303 = vrot.lane.b32.xlu0 %v2523, 16
      %v3304 = vpop.permute.xlu0 %3303
      %3305 = vrot.lane.b32.xlu0 %v2526, 16
      %v3306 = vpop.permute.xlu0 %3305
      %3307 = vrot.lane.b32.xlu0 %v2529, 16
      %v3308 = vpop.permute.xlu0 %3307
      %3309 = vrot.lane.b32.xlu0 %v2532, 16
      %v3310 = vpop.permute.xlu0 %3309
      %3311 = vrot.lane.b32.xlu0 %v2535, 16
      %v3312 = vpop.permute.xlu0 %3311
      %3313 = vrot.lane.b32.xlu0 %v2538, 16
      %v3314 = vpop.permute.xlu0 %3313
      %3315 = vrot.lane.b32.xlu0 %v2541, 16
      %v3316 = vpop.permute.xlu0 %3315
      %3317 = vrot.lane.b32.xlu0 %v2544, 16
      %v3318 = vpop.permute.xlu0 %3317
      %3319 = vrot.lane.b32.xlu0 %v2547, 16
      %v3320 = vpop.permute.xlu0 %3319
      %3321 = vrot.lane.b32.xlu0 %v2550, 16
      %v3322 = vpop.permute.xlu0 %3321
      %3323 = vrot.lane.b32.xlu0 %v2553, 16
      %v3324 = vpop.permute.xlu0 %3323
      %3357 = vrot.lane.b32.xlu0 %v3166, 24
      %v3358 = vpop.permute.xlu0 %3357
      %3359 = vrot.lane.b32.xlu0 %v3169, 24
      %v3360 = vpop.permute.xlu0 %3359
      %3361 = vrot.lane.b32.xlu0 %v3172, 24
      %v3362 = vpop.permute.xlu0 %3361
      %3363 = vrot.lane.b32.xlu0 %v3175, 24
      %v3364 = vpop.permute.xlu0 %3363
      %3365 = vrot.lane.b32.xlu0 %v3178, 24
      %v3366 = vpop.permute.xlu0 %3365
      %3367 = vrot.lane.b32.xlu0 %v3181, 24
      %v3368 = vpop.permute.xlu0 %3367
      %3369 = vrot.lane.b32.xlu0 %v3184, 24
      %v3370 = vpop.permute.xlu0 %3369
      %3371 = vrot.lane.b32.xlu0 %v3187, 24
      %v3372 = vpop.permute.xlu0 %3371
      %3373 = vrot.lane.b32.xlu0 %v3190, 24
      %v3374 = vpop.permute.xlu0 %3373
      %3375 = vrot.lane.b32.xlu0 %v3193, 24
      %v3376 = vpop.permute.xlu0 %3375
      %3377 = vrot.lane.b32.xlu0 %v3196, 24
      %v3378 = vpop.permute.xlu0 %3377
      %3379 = vrot.lane.b32.xlu0 %v3199, 24
      %v3380 = vpop.permute.xlu0 %3379
      %3381 = vrot.lane.b32.xlu0 %v3202, 24
      %v3382 = vpop.permute.xlu0 %3381
      %3383 = vrot.lane.b32.xlu0 %v3205, 24
      %v3384 = vpop.permute.xlu0 %3383
      %3385 = vrot.lane.b32.xlu0 %v3208, 24
      %v3386 = vpop.permute.xlu0 %3385
      %3387 = vrot.lane.b32.xlu0 %v3211, 24
      %v3388 = vpop.permute.xlu0 %3387
      %v3405 = vsel %vm644, %v1176, %v3230
      %v3406 = vsel %vm644, %v1179, %v3232
      %v3407 = vsel %vm644, %v1182, %v3234
      %v3408 = vsel %vm644, %v1185, %v3236
      %v3409 = vsel %vm644, %v1188, %v3238
      %v3410 = vsel %vm644, %v1191, %v3240
      %v3411 = vsel %vm644, %v1194, %v3242
      %v3412 = vsel %vm644, %v1197, %v3244
      %v3413 = vsel %vm644, %v1200, %v3246
      %v3414 = vsel %vm644, %v1203, %v3248
      %v3415 = vsel %vm644, %v1206, %v3250
      %v3416 = vsel %vm644, %v1209, %v3252
      %v3417 = vsel %vm644, %v1212, %v3254
      %v3418 = vsel %vm644, %v1215, %v3256
      %v3419 = vsel %vm644, %v1218, %v3258
      %v3420 = vsel %vm644, %v1221, %v3260
      %vm3421 = vcmask 130048
      %v3422 = vsel %vm3421, %v3405, %v3294
      %v3423 = vsel %vm3421, %v3406, %v3296
      %v3424 = vsel %vm3421, %v3407, %v3298
      %v3425 = vsel %vm3421, %v3408, %v3300
      %v3426 = vsel %vm3421, %v3409, %v3302
      %v3427 = vsel %vm3421, %v3410, %v3304
      %v3428 = vsel %vm3421, %v3411, %v3306
      %v3429 = vsel %vm3421, %v3412, %v3308
      %v3430 = vsel %vm3421, %v3413, %v3310
      %v3431 = vsel %vm3421, %v3414, %v3312
      %v3432 = vsel %vm3421, %v3415, %v3314
      %v3433 = vsel %vm3421, %v3416, %v3316
      %v3434 = vsel %vm3421, %v3417, %v3318
      %v3435 = vsel %vm3421, %v3418, %v3320
      %v3436 = vsel %vm3421, %v3419, %v3322
      %v3437 = vsel %vm3421, %v3420, %v3324
      %vm3438 = vcmask 195584
      %v3439 = vsel %vm3438, %v3422, %v3358
      %v3440 = vsel %vm3438, %v3423, %v3360
      %v3441 = vsel %vm3438, %v3424, %v3362
      %v3442 = vsel %vm3438, %v3425, %v3364
      %v3443 = vsel %vm3438, %v3426, %v3366
      %v3444 = vsel %vm3438, %v3427, %v3368
      %v3445 = vsel %vm3438, %v3428, %v3370
      %v3446 = vsel %vm3438, %v3429, %v3372
      %v3447 = vsel %vm3438, %v3430, %v3374
      %v3448 = vsel %vm3438, %v3431, %v3376
      %v3449 = vsel %vm3438, %v3432, %v3378
      %v3450 = vsel %vm3438, %v3433, %v3380
      %v3451 = vsel %vm3438, %v3434, %v3382
      %v3452 = vsel %vm3438, %v3435, %v3384
      %v3453 = vsel %vm3438, %v3436, %v3386
      %v3454 = vsel %vm3438, %v3437, %v3388
      %v3455 = vld [vmem:[%s7] sm:$0xff]
      %v3456 = vld [vmem:[%s7 + $0x8] sm:$0xff]
      %v3457 = vld [vmem:[%s7 + $0x10] sm:$0xff]
      %v3458 = vld [vmem:[%s7 + $0x18] sm:$0xff]
      %v3459 = vld [vmem:[%s8] sm:$0x1]
      %v3461 = vperm.slane %v3459, 0
      %v3464 = vsel %vm380, %v3439, 0
      %v3467 = vsel %vm380, %v3440, 0
      %v3470 = vsel %vm380, %v3441, 0
      %v3473 = vsel %vm380, %v3442, 0
      %v3476 = vsel %vm380, %v3443, 0
      %v3479 = vsel %vm380, %v3444, 0
      %v3482 = vsel %vm380, %v3445, 0
      %v3485 = vsel %vm380, %v3446, 0
      %v3488 = vsel %vm380, %v3447, 0
      %v3491 = vsel %vm380, %v3448, 0
      %v3494 = vsel %vm380, %v3449, 0
      %v3497 = vsel %vm380, %v3450, 0
      %v3500 = vsel %vm380, %v3451, 0
      %v3503 = vsel %vm380, %v3452, 0
      %v3506 = vsel %vm380, %v3453, 0
      %v3509 = vsel %vm380, %v3454, 0
      %3511 = vmatpush.msra.mxu0 0.0
      %3512 = vmatpush.msra.mxu0 0.0
      %3513 = vmatpush.msra.mxu0 0.0
      %3514 = vmatpush.msra.mxu0 0.0
      %3515 = vmatpush.msra.mxu0 0.0
      %3516 = vmatpush.msra.mxu0 0.0
      %3517 = vmatpush.msra.mxu0 0.0
      %3518 = vmatpush.msra.mxu0 0.0
      %3519 = vmatpush.msra.mxu0 0.0
      %3520 = vmatpush.msra.mxu0 0.0
      %3521 = vmatpush.msra.mxu0 0.0
      %3522 = vmatpush.msra.mxu0 0.0
      %3523 = vmatpush.msra.mxu0 %v3458
      %3524 = vmatpush.msra.mxu0 %v3457
      %3525 = vmatpush.msra.mxu0 %v3456
      %3526 = vmatpush.msra.mxu0 %v3455
      %3527 = vmatmul.f32.gmra.mxu0 %v3464
      %v3528 = vpop.f32.mrf.mxu0
      %v3529 = vadd.f32 %v3461, %v3528
      %3530 = vmatmul.f32.gmra.mxu0 %v3467
      %v3531 = vpop.f32.mrf.mxu0
      %v3532 = vadd.f32 %v3461, %v3531
      %3533 = vmatmul.f32.gmra.mxu0 %v3470
      %v3534 = vpop.f32.mrf.mxu0
      %v3535 = vadd.f32 %v3461, %v3534
      %3536 = vmatmul.f32.gmra.mxu0 %v3473
      %v3537 = vpop.f32.mrf.mxu0
      %v3538 = vadd.f32 %v3461, %v3537
      %3539 = vmatmul.f32.gmra.mxu0 %v3476
      %v3540 = vpop.f32.mrf.mxu0
      %v3541 = vadd.f32 %v3461, %v3540
      %3542 = vmatmul.f32.gmra.mxu0 %v3479
      %v3543 = vpop.f32.mrf.mxu0
      %v3544 = vadd.f32 %v3461, %v3543
      %3545 = vmatmul.f32.gmra.mxu0 %v3482
      %v3546 = vpop.f32.mrf.mxu0
      %v3547 = vadd.f32 %v3461, %v3546
      %3548 = vmatmul.f32.gmra.mxu0 %v3485
      %v3549 = vpop.f32.mrf.mxu0
      %v3550 = vadd.f32 %v3461, %v3549
      %3551 = vmatmul.f32.gmra.mxu0 %v3488
      %v3552 = vpop.f32.mrf.mxu0
      %v3553 = vadd.f32 %v3461, %v3552
      %3554 = vmatmul.f32.gmra.mxu0 %v3491
      %v3555 = vpop.f32.mrf.mxu0
      %v3556 = vadd.f32 %v3461, %v3555
      %3557 = vmatmul.f32.gmra.mxu0 %v3494
      %v3558 = vpop.f32.mrf.mxu0
      %v3559 = vadd.f32 %v3461, %v3558
      %3560 = vmatmul.f32.gmra.mxu0 %v3497
      %v3561 = vpop.f32.mrf.mxu0
      %v3562 = vadd.f32 %v3461, %v3561
      %3563 = vmatmul.f32.gmra.mxu0 %v3500
      %v3564 = vpop.f32.mrf.mxu0
      %v3565 = vadd.f32 %v3461, %v3564
      %3566 = vmatmul.f32.gmra.mxu0 %v3503
      %v3567 = vpop.f32.mrf.mxu0
      %v3568 = vadd.f32 %v3461, %v3567
      %3569 = vmatmul.f32.gmra.mxu0 %v3506
      %v3570 = vpop.f32.mrf.mxu0
      %v3571 = vadd.f32 %v3461, %v3570
      %3572 = vmatmul.f32.gmra.mxu0 %v3509
      %v3573 = vpop.f32.mrf.mxu0
      %v3574 = vadd.f32 %v3461, %v3573
      %3575 = vdwg.mxu0
      %3576 = vst.msk [vmem:[%s354] sm:$0xff] %vm380, %v3529
      %3577 = vst.msk [vmem:[%s354 + $0x8] sm:$0xff] %vm380, %v3532
      %3578 = vst.msk [vmem:[%s354 + $0x10] sm:$0xff] %vm380, %v3535
      %3579 = vst.msk [vmem:[%s354 + $0x18] sm:$0xff] %vm380, %v3538
      %3580 = vst.msk [vmem:[%s354 + $0x20] sm:$0xff] %vm380, %v3541
      %3581 = vst.msk [vmem:[%s354 + $0x28] sm:$0xff] %vm380, %v3544
      %3582 = vst.msk [vmem:[%s354 + $0x30] sm:$0xff] %vm380, %v3547
      %3583 = vst.msk [vmem:[%s354 + $0x38] sm:$0xff] %vm380, %v3550
      %3584 = vst.msk [vmem:[%s354 + $0x40] sm:$0xff] %vm380, %v3553
      %3585 = vst.msk [vmem:[%s354 + $0x48] sm:$0xff] %vm380, %v3556
      %3586 = vst.msk [vmem:[%s354 + $0x50] sm:$0xff] %vm380, %v3559
      %3587 = vst.msk [vmem:[%s354 + $0x58] sm:$0xff] %vm380, %v3562
      %3588 = vst.msk [vmem:[%s354 + $0x60] sm:$0xff] %vm380, %v3565
      %3589 = vst.msk [vmem:[%s354 + $0x68] sm:$0xff] %vm380, %v3568
      %3590 = vst.msk [vmem:[%s354 + $0x70] sm:$0xff] %vm380, %v3571
      %3591 = vst.msk [vmem:[%s354 + $0x78] sm:$0xff] %vm380, %v3574
      %s3592 = smul.u32 16, %s25
      %p3593 = scmp.lt.s32.totalorder %s24, 1
      %s3594 = scalar_select %p3593, %s24, 1
      %p3595 = scmp.lt.s32.totalorder %s3592, 15
      %s3596 = scalar_select %p3595, %s3592, 15
      %s3597 = smul.addr %s3594, 16
      %s3598 = sadd.s32 %s3596, %s3597
      %s3599 = smul.addr %s3598, 8
      %s3600 = scalar_lea.vmem %s9, %s3599
      // Predicated region
      $region57: #{tpu_custom_call.1} parent=55 // pred_check
        %p3601 = pneg %p246
      $region58: #{tpu_custom_call.1} parent=55 // pred_check_branch
        %3603 = sbr.rel (%p3601) target = $region60
      $region59: #{tpu_custom_call.1} parent=55 // pred_region
        %s3604 = smul.u32 16, %s25
      $region60: #{tpu_custom_call.1} parent=55 // pred_fallthru
        _
    $region56: #{tpu_custom_call.1} parent=5 // pred_fallthru
      _
    %p3605 = scmp.le.s32.totalorder 2, %s15
    // Predicated region
    $region61: #{tpu_custom_call.1} parent=5 // pred_check
      %p3606 = pneg %p3605
    $region62: #{tpu_custom_call.1} parent=5 // pred_check_branch
      %3608 = sbr.rel (%p3606) target = $region64
    $region63: #{tpu_custom_call.1} parent=5 // pred_region
      %s3609 = ssub.s32 %s15, 2
      // Predicated region
      $region65: #{tpu_custom_call.1} parent=63 // pred_check
        %p3610 = pneg %p252
      $region66: #{tpu_custom_call.1} parent=63 // pred_check_branch
        %3612 = sbr.rel (%p3610) target = $region68
      $region67: #{tpu_custom_call.1} parent=63 // pred_region
        %s3613 = smul.u32 16, %s27
        %p3614 = scmp.lt.s32.totalorder %s26, 1
        %s3615 = scalar_select %p3614, %s26, 1
        %p3616 = scmp.lt.s32.totalorder %s3613, 15
        %s3617 = scalar_select %p3616, %s3613, 15
        %s3618 = smul.addr %s3615, 16
        %s3619 = sadd.s32 %s3617, %s3618
        %s3620 = smul.addr %s3619, 8
        %s3621 = scalar_lea.vmem %s9, %s3620
      $region68: #{tpu_custom_call.1} parent=63 // pred_fallthru
        _
    $region64: #{tpu_custom_call.1} parent=5 // pred_fallthru
      _
  $region6: #{tpu_custom_call.1} parent=0 // loop_footer
    %s19 = sadd.s32 1, %s15
  $region7: #{tpu_custom_call.1} parent=0 // loop_footer_branch
    %14 = sbr.rel target = $region3
  $region8: #{tpu_custom_call.1} parent=0 // loop_exit
    _

</llo_original>
